<compile_context>
chip_gen: v5e
topology: v5e:2x2
jax: 0.10.0
libtpu: 0.0.40
codegen_flags: <defaults>
</compile_context>

<pallas_src>
import functools

import jax
import jax.numpy as jnp
from jax.experimental import pallas as pl
from jax.experimental.pallas import tpu as pltpu

# NeRF embedder from get_embedder(5):
#   include_input=True, input_dims=3, num_freqs=5, log_sampling=True
#   freq_bands = 2**linspace(0, 4, 5) = [1, 2, 4, 8, 16], fns = [sin, cos]
#   input_ch = 3 + 3*2*5 = 33
NUM_FREQS = 5
INPUT_DIMS = 3
EMBED_DIM = INPUT_DIMS * (1 + 2 * NUM_FREQS)  # 33

# Padded, 8-aligned feature-slab layout (contraction axis of the fused GEMM):
#   rows  0..2  : world coords x
#   rows  3..7  : zero pad
#   rows  8..22 : sin(f_k * x), freq-major (f = 1, 2, 4, 8, 16)
#   row     23  : zero pad
#   rows 24..38 : cos(f_k * x), freq-major
#   row     39  : constant 1.0 (bias folded into the weight matrix)
K_PAD = 40
_COORD_ROW = 0
_SIN_ROW = 8
_COS_ROW = 24
_ONES_ROW = 39

# Column indices of the original nn.Linear weight (c_dim, 33) for the
# regrouped [x | sin(f_k x) | cos(f_k x)] channel order used by the kernel.
_SIN_COLS = tuple(3 + 6 * k + d for k in range(NUM_FREQS) for d in range(INPUT_DIMS))
_COS_COLS = tuple(6 + 6 * k + d for k in range(NUM_FREQS) for d in range(INPUT_DIMS))


def _round_up(x, m):
    return ((x + m - 1) // m) * m


def _encoder_kernel(ijk_ref, vs_ref, org_ref, w_ref, out_ref, slab_ref):
    """Blocks (points on the lane axis):
         ijk_ref : (3, TN)      int32 voxel indices
         vs_ref  : (3, 1)       voxel size
         org_ref : (3, 1)       grid origin
         w_ref   : (C, K_PAD)   column-regrouped mix_fc weight, bias in col 39
         out_ref : (C, TN)
         slab_ref: (K_PAD, TN)  VMEM scratch holding the fused feature slab
    """
    tn = slab_ref.shape[1]
    f32 = jnp.float32

    # grid_to_world folded in: coords = ijk * voxel_size + origin  (VPU)
    coords = ijk_ref[...].astype(f32) * vs_ref[...] + org_ref[...]          # (3, TN)

    # ---- assemble the (K_PAD, TN) feature slab in VMEM scratch -------------
    slab_ref[pl.ds(_COORD_ROW, INPUT_DIMS), :] = coords
    # Pad rows must hold finite values (their weight columns are zero, but the
    # scratch is uninitialized and the "parallel" grid may be core-split, so a
    # program_id==0 init is not safe) -> write them every step (7 cheap rows).
    slab_ref[pl.ds(INPUT_DIMS, _SIN_ROW - INPUT_DIMS), :] = jnp.zeros(
        (_SIN_ROW - INPUT_DIMS, tn), f32)
    slab_ref[pl.ds(_SIN_ROW + NUM_FREQS * INPUT_DIMS, 1), :] = jnp.zeros((1, tn), f32)
    slab_ref[pl.ds(_ONES_ROW, 1), :] = jnp.ones((1, tn), f32)   # bias row

    # Power-of-two frequency bands: evaluate sin/cos only at f=1, derive
    # f = 2, 4, 8, 16 via the double-angle recurrence on the VPU
    # (sin 2a = 2 sin a cos a, cos 2a = 1 - 2 sin^2 a).
    s = jnp.sin(coords)
    c = jnp.cos(coords)
    slab_ref[pl.ds(_SIN_ROW, INPUT_DIMS), :] = s
    slab_ref[pl.ds(_COS_ROW, INPUT_DIMS), :] = c
    for k in range(1, NUM_FREQS):
        s, c = 2.0 * s * c, 1.0 - 2.0 * s * s
        slab_ref[pl.ds(_SIN_ROW + INPUT_DIMS * k, INPUT_DIMS), :] = s
        slab_ref[pl.ds(_COS_ROW + INPUT_DIMS * k, INPUT_DIMS), :] = c

    # ---- mix_fc (+ bias) as ONE fused MXU dot over the slab ----------------
    out_ref[...] = jnp.dot(
        w_ref[...], slab_ref[...], preferred_element_type=jnp.float32
    ).astype(out_ref.dtype)


def prepare_mix_fc(weight, bias):
    """One-time (init-time) regroup of nn.Linear(33, c_dim) parameters into the
    padded (c_dim, K_PAD) matrix matching the kernel's slab layout, with the
    bias folded into column 39 (slab's constant-ones row)."""
    w = jnp.asarray(weight, jnp.float32)
    b = jnp.asarray(bias, jnp.float32)
    C = w.shape[0]
    w_pad = jnp.zeros((C, K_PAD), jnp.float32)
    w_pad = w_pad.at[:, _COORD_ROW:_COORD_ROW + INPUT_DIMS].set(w[:, :INPUT_DIMS])
    w_pad = w_pad.at[:, _SIN_ROW:_SIN_ROW + NUM_FREQS * INPUT_DIMS].set(
        jnp.take(w, jnp.array(_SIN_COLS), axis=1))
    w_pad = w_pad.at[:, _COS_ROW:_COS_ROW + NUM_FREQS * INPUT_DIMS].set(
        jnp.take(w, jnp.array(_COS_COLS), axis=1))
    w_pad = w_pad.at[:, _ONES_ROW].set(b)
    return w_pad


@functools.partial(jax.jit, static_argnames=("tile_n", "out_dtype", "channels_first"))
def encoder_forward(ijk, voxel_size, origin, w_pad, *, tile_n=8192,
                    out_dtype=jnp.float32, channels_first=False):
    """ijk: (N, 3) int voxel indices; w_pad: (c_dim, K_PAD) from prepare_mix_fc.
    Returns (N, c_dim) (module semantics), or (c_dim, N) if channels_first=True
    (skips the wrapper-side output transpose for consumers that can take it)."""
    N = ijk.shape[0]
    C = w_pad.shape[0]

    # Big tiles amortize the ~0.35us/grid-step overhead; cap so the grid keeps
    # >= 2 balanced steps when possible (v7x shards the parallel axis over its
    # two TensorCores).
    tn = min(tile_n, max(128, _round_up(-(-N // 2), 128)))
    n_pad = _round_up(N, tn)

    # Points-on-lanes layout: (3, n_pad) int32 (tiny: 12 B/point).
    ijk_t = jnp.pad(jnp.asarray(ijk, jnp.int32).T, ((0, 0), (0, n_pad - N)))
    vs = jnp.asarray(voxel_size, jnp.float32).reshape(INPUT_DIMS, 1)
    org = jnp.asarray(origin, jnp.float32).reshape(INPUT_DIMS, 1)

    out_t = pl.pallas_call(
        _encoder_kernel,
        out_shape=jax.ShapeDtypeStruct((C, n_pad), out_dtype),
        grid_spec=pltpu.PrefetchScalarGridSpec(
            num_scalar_prefetch=0,
            grid=(n_pad // tn,),
            in_specs=[
                pl.BlockSpec((INPUT_DIMS, tn), lambda i: (0, i)),   # ijk tile
                pl.BlockSpec((INPUT_DIMS, 1), lambda i: (0, 0)),    # voxel_size
                pl.BlockSpec((INPUT_DIMS, 1), lambda i: (0, 0)),    # origin
                pl.BlockSpec((C, K_PAD), lambda i: (0, 0)),         # fused weight (+bias)
            ],
            out_specs=pl.BlockSpec((C, tn), lambda i: (0, i)),
            scratch_shapes=[pltpu.VMEM((K_PAD, tn), jnp.float32)],
        ),
        compiler_params=pltpu.CompilerParams(
            dimension_semantics=("parallel",)),
    )(ijk_t, vs, org, w_pad)

    out_t = out_t[:, :N]
    if channels_first:
        return out_t            # (C, N): no extra HBM pass
    return out_t.T              # (N, C): matches the PyTorch module's layout


def encoder_reference(ijk, voxel_size, origin, weight, bias):
    coords = ijk.astype(jnp.float32) * voxel_size[None, :] + origin[None, :]
    feats = [coords]
    for k in range(NUM_FREQS):
        f = float(2.0 ** k)
        feats.append(jnp.sin(coords * f))
        feats.append(jnp.cos(coords * f))
    emb = jnp.concatenate(feats, axis=1)
    return jnp.matmul(emb, jnp.asarray(weight, jnp.float32).T,
                      precision=jax.lax.Precision.HIGHEST) \
        + jnp.asarray(bias, jnp.float32)[None, :]


if __name__ == "__main__":
    key = jax.random.PRNGKey(0)
    k_ijk, k_w, k_b = jax.random.split(key, 3)

    # Small synthetic "grid": N active voxels (jagged data flattened over batch).
    N = 5000                      # -> 2 balanced grid steps (tile_n capped at 2560)
    c_dim = 32                    # hparams.network.encoder.c_dim
    ijk = jax.random.randint(k_ijk, (N, 3), minval=-8, maxval=8, dtype=jnp.int32)
    voxel_size = jnp.array([0.1, 0.1, 0.1], jnp.float32)
    origin = jnp.array([0.05, 0.05, 0.05], jnp.float32)

    # Deterministic mix_fc parameters (nn.Linear(33, c_dim)).
    bound = 1.0 / (EMBED_DIM ** 0.5)
    w = jax.random.uniform(k_w, (c_dim, EMBED_DIM), jnp.float32, -bound, bound)
    b = jax.random.uniform(k_b, (c_dim,), jnp.float32, -bound, bound)

    # Init-time weight regroup (hoisted out of the per-call hot path).
    w_pad = prepare_mix_fc(w, b)

    out = encoder_forward(ijk, voxel_size, origin, w_pad)                      # (N, C)
    out = jax.block_until_ready(out)
    out_cf = encoder_forward(ijk, voxel_size, origin, w_pad, channels_first=True)  # (C, N)
    out_cf = jax.block_until_ready(out_cf)

    ref = encoder_reference(ijk, voxel_size, origin, w, b)
    assert out.shape == (N, c_dim), out.shape
    assert out_cf.shape == (c_dim, N), out_cf.shape
    # Slightly relaxed tolerance: the double-angle recurrence compounds a few
    # ulp over 4 doublings (observed error << 1e-4 in practice).
    assert jnp.allclose(out, ref, atol=2e-4, rtol=2e-4), "mismatch vs reference (NC)"
    assert jnp.allclose(out_cf.T, ref, atol=2e-4, rtol=2e-4), "mismatch vs reference (CN)"
    print("KERNEL_OK")
</pallas_src>

<mosaic_0001>
module attributes {stable_mosaic.version = 11 : i64} {
  func.func @_encoder_kernel(%arg0: i32, %arg1: memref<3x2560xi32, #tpu.memory_space<vmem>>, %arg2: memref<3x1xf32, #tpu.memory_space<vmem>>, %arg3: memref<3x1xf32, #tpu.memory_space<vmem>>, %arg4: memref<32x40xf32, #tpu.memory_space<vmem>>, %arg5: memref<32x2560xf32, #tpu.memory_space<vmem>>, %arg6: memref<40x2560xf32, #tpu.memory_space<vmem>>) attributes {dimension_semantics = [#tpu.dimension_semantics<parallel>], iteration_bounds = array<i64: 2>, scalar_prefetch = 0 : i64, scratch_operands = 1 : i64, tpu.core_type = #tpu.core_type<tc>, window_params = [{transform_indices = @transform_0, window_bounds = array<i64: 3, 2560>}, {pipeline_mode = #tpu.pipeline_mode<synchronous>, transform_indices = @transform_1, window_bounds = array<i64: 3, 1>}, {pipeline_mode = #tpu.pipeline_mode<synchronous>, transform_indices = @transform_2, window_bounds = array<i64: 3, 1>}, {pipeline_mode = #tpu.pipeline_mode<synchronous>, transform_indices = @transform_3, window_bounds = array<i64: 32, 40>}, {transform_indices = @transform_4, window_bounds = array<i64: 32, 2560>}]} {
    %c0 = arith.constant 0 : index
    %c0_0 = arith.constant 0 : index
    %0 = vector.load %arg1[%c0, %c0_0] : memref<3x2560xi32, #tpu.memory_space<vmem>>, vector<3x2560xi32>
    %1 = arith.sitofp %0 : vector<3x2560xi32> to vector<3x2560xf32>
    %c0_1 = arith.constant 0 : index
    %c0_2 = arith.constant 0 : index
    %2 = vector.load %arg2[%c0_1, %c0_2] : memref<3x1xf32, #tpu.memory_space<vmem>>, vector<3x1xf32>
    %3 = vector.broadcast %2 : vector<3x1xf32> to vector<3x2560xf32>
    %4 = arith.mulf %1, %3 : vector<3x2560xf32>
    %c0_3 = arith.constant 0 : index
    %c0_4 = arith.constant 0 : index
    %5 = vector.load %arg3[%c0_3, %c0_4] : memref<3x1xf32, #tpu.memory_space<vmem>>, vector<3x1xf32>
    %6 = vector.broadcast %5 : vector<3x1xf32> to vector<3x2560xf32>
    %7 = arith.addf %4, %6 : vector<3x2560xf32>
    %c0_5 = arith.constant 0 : index
    %c0_6 = arith.constant 0 : index
    %8 = vector.load %arg6[%c0_5, %c0_6] : memref<40x2560xf32, #tpu.memory_space<vmem>>, vector<3x2560xf32>
    tpu.vector_store %arg6[%c0_5, %c0_6], %7 {strides = array<i32>} : memref<40x2560xf32, #tpu.memory_space<vmem>>, vector<3x2560xf32>,
    %cst = arith.constant 0.000000e+00 : f32
    %9 = vector.broadcast %cst : f32 to vector<5x2560xf32>
    %c3 = arith.constant 3 : index
    %c0_7 = arith.constant 0 : index
    %10 = vector.load %arg6[%c3, %c0_7] : memref<40x2560xf32, #tpu.memory_space<vmem>>, vector<5x2560xf32>
    tpu.vector_store %arg6[%c3, %c0_7], %9 {strides = array<i32>} : memref<40x2560xf32, #tpu.memory_space<vmem>>, vector<5x2560xf32>,
    %cst_8 = arith.constant 0.000000e+00 : f32
    %11 = vector.broadcast %cst_8 : f32 to vector<1x2560xf32>
    %c23 = arith.constant 23 : index
    %c0_9 = arith.constant 0 : index
    %12 = vector.load %arg6[%c23, %c0_9] : memref<40x2560xf32, #tpu.memory_space<vmem>>, vector<1x2560xf32>
    tpu.vector_store %arg6[%c23, %c0_9], %11 {strides = array<i32>} : memref<40x2560xf32, #tpu.memory_space<vmem>>, vector<1x2560xf32>,
    %cst_10 = arith.constant 1.000000e+00 : f32
    %13 = vector.broadcast %cst_10 : f32 to vector<1x2560xf32>
    %c39 = arith.constant 39 : index
    %c0_11 = arith.constant 0 : index
    %14 = vector.load %arg6[%c39, %c0_11] : memref<40x2560xf32, #tpu.memory_space<vmem>>, vector<1x2560xf32>
    tpu.vector_store %arg6[%c39, %c0_11], %13 {strides = array<i32>} : memref<40x2560xf32, #tpu.memory_space<vmem>>, vector<1x2560xf32>,
    %15 = math.sin %7 : vector<3x2560xf32>
    %16 = math.cos %7 : vector<3x2560xf32>
    %c8 = arith.constant 8 : index
    %c0_12 = arith.constant 0 : index
    %17 = vector.load %arg6[%c8, %c0_12] : memref<40x2560xf32, #tpu.memory_space<vmem>>, vector<3x2560xf32>
    tpu.vector_store %arg6[%c8, %c0_12], %15 {strides = array<i32>} : memref<40x2560xf32, #tpu.memory_space<vmem>>, vector<3x2560xf32>,
    %c24 = arith.constant 24 : index
    %c0_13 = arith.constant 0 : index
    %18 = vector.load %arg6[%c24, %c0_13] : memref<40x2560xf32, #tpu.memory_space<vmem>>, vector<3x2560xf32>
    tpu.vector_store %arg6[%c24, %c0_13], %16 {strides = array<i32>} : memref<40x2560xf32, #tpu.memory_space<vmem>>, vector<3x2560xf32>,
    %cst_14 = arith.constant 2.000000e+00 : f32
    %19 = vector.broadcast %cst_14 : f32 to vector<3x2560xf32>
    %20 = arith.mulf %19, %15 : vector<3x2560xf32>
    %21 = arith.mulf %20, %16 : vector<3x2560xf32>
    %cst_15 = arith.constant 2.000000e+00 : f32
    %22 = vector.broadcast %cst_15 : f32 to vector<3x2560xf32>
    %23 = arith.mulf %22, %15 : vector<3x2560xf32>
    %24 = arith.mulf %23, %15 : vector<3x2560xf32>
    %cst_16 = arith.constant 1.000000e+00 : f32
    %25 = vector.broadcast %cst_16 : f32 to vector<3x2560xf32>
    %26 = arith.subf %25, %24 : vector<3x2560xf32>
    %c11 = arith.constant 11 : index
    %c0_17 = arith.constant 0 : index
    %27 = vector.load %arg6[%c11, %c0_17] : memref<40x2560xf32, #tpu.memory_space<vmem>>, vector<3x2560xf32>
    tpu.vector_store %arg6[%c11, %c0_17], %21 {strides = array<i32>} : memref<40x2560xf32, #tpu.memory_space<vmem>>, vector<3x2560xf32>,
    %c27 = arith.constant 27 : index
    %c0_18 = arith.constant 0 : index
    %28 = vector.load %arg6[%c27, %c0_18] : memref<40x2560xf32, #tpu.memory_space<vmem>>, vector<3x2560xf32>
    tpu.vector_store %arg6[%c27, %c0_18], %26 {strides = array<i32>} : memref<40x2560xf32, #tpu.memory_space<vmem>>, vector<3x2560xf32>,
    %cst_19 = arith.constant 2.000000e+00 : f32
    %29 = vector.broadcast %cst_19 : f32 to vector<3x2560xf32>
    %30 = arith.mulf %29, %21 : vector<3x2560xf32>
    %31 = arith.mulf %30, %26 : vector<3x2560xf32>
    %cst_20 = arith.constant 2.000000e+00 : f32
    %32 = vector.broadcast %cst_20 : f32 to vector<3x2560xf32>
    %33 = arith.mulf %32, %21 : vector<3x2560xf32>
    %34 = arith.mulf %33, %21 : vector<3x2560xf32>
    %cst_21 = arith.constant 1.000000e+00 : f32
    %35 = vector.broadcast %cst_21 : f32 to vector<3x2560xf32>
    %36 = arith.subf %35, %34 : vector<3x2560xf32>
    %c14 = arith.constant 14 : index
    %c0_22 = arith.constant 0 : index
    %37 = vector.load %arg6[%c14, %c0_22] : memref<40x2560xf32, #tpu.memory_space<vmem>>, vector<3x2560xf32>
    tpu.vector_store %arg6[%c14, %c0_22], %31 {strides = array<i32>} : memref<40x2560xf32, #tpu.memory_space<vmem>>, vector<3x2560xf32>,
    %c30 = arith.constant 30 : index
    %c0_23 = arith.constant 0 : index
    %38 = vector.load %arg6[%c30, %c0_23] : memref<40x2560xf32, #tpu.memory_space<vmem>>, vector<3x2560xf32>
    tpu.vector_store %arg6[%c30, %c0_23], %36 {strides = array<i32>} : memref<40x2560xf32, #tpu.memory_space<vmem>>, vector<3x2560xf32>,
    %cst_24 = arith.constant 2.000000e+00 : f32
    %39 = vector.broadcast %cst_24 : f32 to vector<3x2560xf32>
    %40 = arith.mulf %39, %31 : vector<3x2560xf32>
    %41 = arith.mulf %40, %36 : vector<3x2560xf32>
    %cst_25 = arith.constant 2.000000e+00 : f32
    %42 = vector.broadcast %cst_25 : f32 to vector<3x2560xf32>
    %43 = arith.mulf %42, %31 : vector<3x2560xf32>
    %44 = arith.mulf %43, %31 : vector<3x2560xf32>
    %cst_26 = arith.constant 1.000000e+00 : f32
    %45 = vector.broadcast %cst_26 : f32 to vector<3x2560xf32>
    %46 = arith.subf %45, %44 : vector<3x2560xf32>
    %c17 = arith.constant 17 : index
    %c0_27 = arith.constant 0 : index
    %47 = vector.load %arg6[%c17, %c0_27] : memref<40x2560xf32, #tpu.memory_space<vmem>>, vector<3x2560xf32>
    tpu.vector_store %arg6[%c17, %c0_27], %41 {strides = array<i32>} : memref<40x2560xf32, #tpu.memory_space<vmem>>, vector<3x2560xf32>,
    %c33 = arith.constant 33 : index
    %c0_28 = arith.constant 0 : index
    %48 = vector.load %arg6[%c33, %c0_28] : memref<40x2560xf32, #tpu.memory_space<vmem>>, vector<3x2560xf32>
    tpu.vector_store %arg6[%c33, %c0_28], %46 {strides = array<i32>} : memref<40x2560xf32, #tpu.memory_space<vmem>>, vector<3x2560xf32>,
    %cst_29 = arith.constant 2.000000e+00 : f32
    %49 = vector.broadcast %cst_29 : f32 to vector<3x2560xf32>
    %50 = arith.mulf %49, %41 : vector<3x2560xf32>
    %51 = arith.mulf %50, %46 : vector<3x2560xf32>
    %cst_30 = arith.constant 2.000000e+00 : f32
    %52 = vector.broadcast %cst_30 : f32 to vector<3x2560xf32>
    %53 = arith.mulf %52, %41 : vector<3x2560xf32>
    %54 = arith.mulf %53, %41 : vector<3x2560xf32>
    %cst_31 = arith.constant 1.000000e+00 : f32
    %55 = vector.broadcast %cst_31 : f32 to vector<3x2560xf32>
    %56 = arith.subf %55, %54 : vector<3x2560xf32>
    %c20 = arith.constant 20 : index
    %c0_32 = arith.constant 0 : index
    %57 = vector.load %arg6[%c20, %c0_32] : memref<40x2560xf32, #tpu.memory_space<vmem>>, vector<3x2560xf32>
    tpu.vector_store %arg6[%c20, %c0_32], %51 {strides = array<i32>} : memref<40x2560xf32, #tpu.memory_space<vmem>>, vector<3x2560xf32>,
    %c36 = arith.constant 36 : index
    %c0_33 = arith.constant 0 : index
    %58 = vector.load %arg6[%c36, %c0_33] : memref<40x2560xf32, #tpu.memory_space<vmem>>, vector<3x2560xf32>
    tpu.vector_store %arg6[%c36, %c0_33], %56 {strides = array<i32>} : memref<40x2560xf32, #tpu.memory_space<vmem>>, vector<3x2560xf32>,
    %c0_34 = arith.constant 0 : index
    %c0_35 = arith.constant 0 : index
    %59 = vector.load %arg4[%c0_34, %c0_35] : memref<32x40xf32, #tpu.memory_space<vmem>>, vector<32x40xf32>
    %c0_36 = arith.constant 0 : index
    %c0_37 = arith.constant 0 : index
    %60 = vector.load %arg6[%c0_36, %c0_37] : memref<40x2560xf32, #tpu.memory_space<vmem>>, vector<40x2560xf32>
    %cst_38 = arith.constant dense<0.000000e+00> : vector<32x2560xf32>
    %61 = tpu.matmul %59, %60, %cst_38 {dimension_numbers = #tpu.dot_dimension_numbers<[1], [0], [0], [1], [0, 0, 1, 1], [], []>} : vector<32x40xf32>, vector<40x2560xf32>, vector<32x2560xf32> -> vector<32x2560xf32>
    %c0_39 = arith.constant 0 : index
    %c0_40 = arith.constant 0 : index
    %62 = vector.load %arg5[%c0_39, %c0_40] : memref<32x2560xf32, #tpu.memory_space<vmem>>, vector<32x2560xf32>
    tpu.vector_store %arg5[%c0_39, %c0_40], %61 {strides = array<i32>} : memref<32x2560xf32, #tpu.memory_space<vmem>>, vector<32x2560xf32>,
    return
  }
  func.func @transform_0(%arg0: i32) -> (i32, i32) {
    %c0_i32 = arith.constant 0 : i32
    %c0_i32_0 = arith.constant 0 : i32
    return %c0_i32, %arg0 : i32, i32
  }
  func.func @transform_1(%arg0: i32) -> (i32, i32) {
    %c0_i32 = arith.constant 0 : i32
    %c0_i32_0 = arith.constant 0 : i32
    %c0_i32_1 = arith.constant 0 : i32
    return %c0_i32, %c0_i32_0 : i32, i32
  }
  func.func @transform_2(%arg0: i32) -> (i32, i32) {
    %c0_i32 = arith.constant 0 : i32
    %c0_i32_0 = arith.constant 0 : i32
    %c0_i32_1 = arith.constant 0 : i32
    return %c0_i32, %c0_i32_0 : i32, i32
  }
  func.func @transform_3(%arg0: i32) -> (i32, i32) {
    %c0_i32 = arith.constant 0 : i32
    %c0_i32_0 = arith.constant 0 : i32
    %c0_i32_1 = arith.constant 0 : i32
    return %c0_i32, %c0_i32_0 : i32, i32
  }
  func.func @transform_4(%arg0: i32) -> (i32, i32) {
    %c0_i32 = arith.constant 0 : i32
    %c0_i32_0 = arith.constant 0 : i32
    return %c0_i32, %arg0 : i32, i32
  }
}

</mosaic_0001>

<llo_original>
// kernel: encoder_forward.1
$region0: #{encoder_forward.1}
  #allocation0 [shape = 'u32[]', space=smem, size = 0x4, offset = 0x4, fixed_abs, tag = 'smem constant byte address 0x4 - core index']
  #allocation1 [shape = 'u32[72,128]{1,0:T(1,128)}', space=vmem, size = 0x9000, scoped, tag = 'internal scratch']
  #allocation2 [shape = 'f32[40,2560]{1,0:T(8,128)}', space=vmem, size = 0x64000, scoped, tag = 'scratch operand']
  %s0 = inlined_call_operand.vmem [shape: s32[3,5120], index: 0, kind: input, shape index: {}]
  %s1 = inlined_call_operand.vmem [shape: f32[3,1], index: 1, kind: input, shape index: {}]
  %s2 = inlined_call_operand.vmem [shape: f32[3,1], index: 2, kind: input, shape index: {}]
  %s3 = inlined_call_operand.vmem [shape: f32[32,40], index: 3, kind: input, shape index: {}]
  %s4 = inlined_call_operand.vmem [shape: f32[32,5120], index: 4, kind: output, shape index: {}]
  %s5 = sld [smem:[#allocation0]]
  $region68: #{encoder_forward.1} parent=0
    _
  %s7 = ssub.s32 1, %s5
  %s8 = scalar_select 0, %s7, %s5
  $region1: #{encoder_forward.1} parent=0
    #allocation3 [shape = 'u8[655360]{0}', space=vmem, size = 0xa0000, scoped, tag = 'output window, operand 0']
    loop: start=0, step=1, limit=4
    $region2: #{encoder_forward.1} parent=1 // loop_pre_header
      _
    $region3: #{encoder_forward.1} parent=1 // loop_header
      %s10 = sphi 0, %s14
      %p11 = scmp.ge.s32.totalorder %s10, 4
      %s20 = sphi 0, %s22
      %s23 = sphi 0, %s20
      %s24 = sphi 0, %s23
      %s40 = sphi 0, %s24
      %s44 = sphi 0, %s44
      %s46 = sphi 0, %s44
      %s47 = sphi 0, %s46
      %s61 = sphi 0, %s47
      %s65 = sphi 0, %s65
      %s67 = sphi 0, %s65
      %s68 = sphi 0, %s67
      %s82 = sphi 0, %s68
      %s86 = sphi 0, %s86
      %s88 = sphi 0, %s86
      %s89 = sphi 0, %s88
      %s103 = sphi 0, %s89
      %s109 = sphi 0, %s111
      %s112 = sphi 0, %s109
      %s113 = sphi 0, %s112
      %s129 = sphi 0, %s113
    $region4: #{encoder_forward.1} parent=1 // loop_header_branch
      %13 = sbr.rel (%p11) target = $region8
    $region5: #{encoder_forward.1} parent=1 // loop_body
      %s15 = ssub.s32 %s10, 1
      %s16 = ssub.s32 %s10, 2
      %s17 = sadd.s32 %s10, 1
      %s18 = ssub.s32 %s10, %s17
      %p19 = scmp.eq.s32.totalorder %s18, 0
      %s21 = sadd.s32 %s20, 1
      %s22 = scalar_select %p19, %s20, %s21
      %p25 = pneg %p19
      %p26 = scmp.eq.s32.totalorder %s10, 1
      %p27 = por %p25, %p26
      %p28 = scmp.ne.s32.totalorder %s20, %s23
      %p29 = scmp.eq.s32.totalorder %s10, 0
      %p30 = por %p28, %p29
      %p31 = scmp.ne.s32.totalorder %s20, %s23
      %p32 = scmp.eq.s32.totalorder %s15, 1
      %p33 = por %p31, %p32
      %p34 = scmp.ne.s32.totalorder %s23, %s24
      %p35 = scmp.eq.s32.totalorder %s15, 0
      %p36 = por %p34, %p35
      %p37 = scmp.ne.s32.totalorder %s23, %s24
      %p38 = scmp.eq.s32.totalorder %s16, 1
      %p39 = por %p37, %p38
      %p41 = scmp.ne.s32.totalorder %s24, %s40
      %p42 = scmp.eq.s32.totalorder %s16, 0
      %p43 = por %p41, %p42
      %s45 = sadd.s32 %s44, 1
      %p48 = scmp.eq.s32.totalorder %s10, 1
      %p49 = scmp.ne.s32.totalorder %s44, %s46
      %p50 = scmp.eq.s32.totalorder %s10, 0
      %p51 = por %p49, %p50
      %p52 = scmp.ne.s32.totalorder %s44, %s46
      %p53 = scmp.eq.s32.totalorder %s15, 1
      %p54 = por %p52, %p53
      %p55 = scmp.ne.s32.totalorder %s46, %s47
      %p56 = scmp.eq.s32.totalorder %s15, 0
      %p57 = por %p55, %p56
      %p58 = scmp.ne.s32.totalorder %s46, %s47
      %p59 = scmp.eq.s32.totalorder %s16, 1
      %p60 = por %p58, %p59
      %p62 = scmp.ne.s32.totalorder %s47, %s61
      %p63 = scmp.eq.s32.totalorder %s16, 0
      %p64 = por %p62, %p63
      %s66 = sadd.s32 %s65, 1
      %p69 = scmp.eq.s32.totalorder %s10, 1
      %p70 = scmp.ne.s32.totalorder %s65, %s67
      %p71 = scmp.eq.s32.totalorder %s10, 0
      %p72 = por %p70, %p71
      %p73 = scmp.ne.s32.totalorder %s65, %s67
      %p74 = scmp.eq.s32.totalorder %s15, 1
      %p75 = por %p73, %p74
      %p76 = scmp.ne.s32.totalorder %s67, %s68
      %p77 = scmp.eq.s32.totalorder %s15, 0
      %p78 = por %p76, %p77
      %p79 = scmp.ne.s32.totalorder %s67, %s68
      %p80 = scmp.eq.s32.totalorder %s16, 1
      %p81 = por %p79, %p80
      %p83 = scmp.ne.s32.totalorder %s68, %s82
      %p84 = scmp.eq.s32.totalorder %s16, 0
      %p85 = por %p83, %p84
      %s87 = sadd.s32 %s86, 1
      %p90 = scmp.eq.s32.totalorder %s10, 1
      %p91 = scmp.ne.s32.totalorder %s86, %s88
      %p92 = scmp.eq.s32.totalorder %s10, 0
      %p93 = por %p91, %p92
      %p94 = scmp.ne.s32.totalorder %s86, %s88
      %p95 = scmp.eq.s32.totalorder %s15, 1
      %p96 = por %p94, %p95
      %p97 = scmp.ne.s32.totalorder %s88, %s89
      %p98 = scmp.eq.s32.totalorder %s15, 0
      %p99 = por %p97, %p98
      %p100 = scmp.ne.s32.totalorder %s88, %s89
      %p101 = scmp.eq.s32.totalorder %s16, 1
      %p102 = por %p100, %p101
      %p104 = scmp.ne.s32.totalorder %s89, %s103
      %p105 = scmp.eq.s32.totalorder %s16, 0
      %p106 = por %p104, %p105
      %s107 = ssub.s32 %s10, %s17
      %p108 = scmp.eq.s32.totalorder %s107, 0
      %s110 = sadd.s32 %s109, 1
      %s111 = scalar_select %p108, %s109, %s110
      %p114 = pneg %p108
      %p115 = scmp.eq.s32.totalorder %s10, 1
      %p116 = por %p114, %p115
      %p117 = scmp.ne.s32.totalorder %s109, %s112
      %p118 = scmp.eq.s32.totalorder %s10, 0
      %p119 = por %p117, %p118
      %p120 = scmp.ne.s32.totalorder %s109, %s112
      %p121 = scmp.eq.s32.totalorder %s15, 1
      %p122 = por %p120, %p121
      %p123 = scmp.ne.s32.totalorder %s112, %s113
      %p124 = scmp.eq.s32.totalorder %s15, 0
      %p125 = por %p123, %p124
      %p126 = scmp.ne.s32.totalorder %s112, %s113
      %p127 = scmp.eq.s32.totalorder %s16, 1
      %p128 = por %p126, %p127
      %p130 = scmp.ne.s32.totalorder %s113, %s129
      %p131 = scmp.eq.s32.totalorder %s16, 0
      %p132 = por %p130, %p131
      %p133 = scmp.le.s32.totalorder 1, %s10
      %p134 = scmp.lt.s32.totalorder %s10, 3
      %p135 = pnand %p133, %p134
      %p136 = pneg %p135
      // Predicated region
      $region9: #{encoder_forward.1} parent=5 // pred_check
        _
      $region10: #{encoder_forward.1} parent=5 // pred_check_branch
        %138 = sbr.rel (%p135) target = $region12
      $region11: #{encoder_forward.1} parent=5 // pred_region
        %s139 = ssub.s32 %s10, 1
        // Predicated region
        $region13: #{encoder_forward.1} parent=11 // pred_check
          %p140 = pneg %p57
        $region14: #{encoder_forward.1} parent=11 // pred_check_branch
          %142 = sbr.rel (%p140) target = $region16
        $region15: #{encoder_forward.1} parent=11 // pred_region
          _
        $region16: #{encoder_forward.1} parent=11 // pred_fallthru
          _
        // Predicated region
        $region17: #{encoder_forward.1} parent=11 // pred_check
          %p143 = pneg %p78
        $region18: #{encoder_forward.1} parent=11 // pred_check_branch
          %145 = sbr.rel (%p143) target = $region20
        $region19: #{encoder_forward.1} parent=11 // pred_region
          _
        $region20: #{encoder_forward.1} parent=11 // pred_fallthru
          _
        // Predicated region
        $region21: #{encoder_forward.1} parent=11 // pred_check
          %p146 = pneg %p99
        $region22: #{encoder_forward.1} parent=11 // pred_check_branch
          %148 = sbr.rel (%p146) target = $region24
        $region23: #{encoder_forward.1} parent=11 // pred_region
          _
        $region24: #{encoder_forward.1} parent=11 // pred_fallthru
          _
      $region12: #{encoder_forward.1} parent=5 // pred_fallthru
        _
      %p149 = scmp.lt.s32.totalorder %s10, 2
      // Predicated region
      $region25: #{encoder_forward.1} parent=5 // pred_check
        %p150 = pneg %p149
      $region26: #{encoder_forward.1} parent=5 // pred_check_branch
        %152 = sbr.rel (%p150) target = $region28
      $region27: #{encoder_forward.1} parent=5 // pred_region
        // Predicated region
        $region29: #{encoder_forward.1} parent=27 // pred_check
          %p153 = pneg %p30
        $region30: #{encoder_forward.1} parent=27 // pred_check_branch
          %155 = sbr.rel (%p153) target = $region32
        $region31: #{encoder_forward.1} parent=27 // pred_region
          %s156 = smul.u32 20, %s10
          %p157 = scmp.lt.s32.totalorder %s156, 39
          %s158 = scalar_select %p157, %s156, 39
          %s159 = smul.addr %s158, 4
          %s160 = scalar_lea.vmem %s0, %s159
          %s161 = smul.u32 20, %s10
        $region32: #{encoder_forward.1} parent=27 // pred_fallthru
          _
      $region28: #{encoder_forward.1} parent=5 // pred_fallthru
        _
      %p162 = scmp.le.s32.totalorder 1, %s10
      %p163 = scmp.lt.s32.totalorder %s10, 3
      %p164 = pnand %p162, %p163
      %p165 = pneg %p164
      // Predicated region
      $region33: #{encoder_forward.1} parent=5 // pred_check
        _
      $region34: #{encoder_forward.1} parent=5 // pred_check_branch
        %167 = sbr.rel (%p164) target = $region36
      $region35: #{encoder_forward.1} parent=5 // pred_region
        %s168 = ssub.s32 %s10, 1
        %s169 = smul.u32 20, %s15
        %p170 = scmp.lt.s32.totalorder %s169, 39
        %s171 = scalar_select %p170, %s169, 39
        %s172 = smul.addr %s171, 4
        %s173 = scalar_lea.vmem %s0, %s172
        %p174 = pneg %p36
        %p175 = pneg %p33
        %p176 = pneg %p57
        %p177 = pneg %p54
        %p178 = pneg %p78
        %p179 = pneg %p75
        %p180 = pneg %p99
        %p181 = pneg %p96
        %p182 = pneg %p125
        %p183 = pneg %p122
        %s184 = sand.u32 %s112, 1
        %s185 = sand.u32 %s112, 1
        %s186 = smul.addr %s185, 640
        %s187 = scalar_lea.vmem [#allocation3], %s186
        %s188 = smul.u32 20, %s15
        %p189 = scmp.lt.s32.totalorder %s188, 39
        %s190 = scalar_select %p189, %s188, 39
        %s191 = smul.addr %s190, 4
        %s192 = scalar_lea.vmem %s0, %s191
        %s193 = smul.u32 20, %s15
        %s194 = smul.u32 20, %s15
        %v195 = vld [vmem:[%s192] sm:$0x77]
        %v196 = vld [vmem:[%s192 + $0x8] sm:$0x77]
        %v197 = vld [vmem:[%s192 + $0x10] sm:$0x77]
        %v198 = vld [vmem:[%s192 + $0x18] sm:$0x77]
        %v199 = vld [vmem:[%s192 + $0x20] sm:$0x77]
        %v200 = vld [vmem:[%s192 + $0x28] sm:$0x77]
        %v201 = vld [vmem:[%s192 + $0x30] sm:$0x77]
        %v202 = vld [vmem:[%s192 + $0x38] sm:$0x77]
        %v203 = vld [vmem:[%s192 + $0x40] sm:$0x77]
        %v204 = vld [vmem:[%s192 + $0x48] sm:$0x77]
        %v205 = vcvt.s32.f32 %v195
        %v206 = vcvt.s32.f32 %v196
        %v207 = vcvt.s32.f32 %v197
        %v208 = vcvt.s32.f32 %v198
        %v209 = vcvt.s32.f32 %v199
        %v210 = vcvt.s32.f32 %v200
        %v211 = vcvt.s32.f32 %v201
        %v212 = vcvt.s32.f32 %v202
        %v213 = vcvt.s32.f32 %v203
        %v214 = vcvt.s32.f32 %v204
        %v215 = vld [vmem:[%s1] sm:$0x7]
        %217 = vset.pattern.permute.xlu0 0
        %218 = vperm.xlu0 %217, %v215
        %v219 = vpop.permute.xlu0 %218
        %v221 = vunpack.c.l.s4 839922192
        %v222 = vunpack.c.0.s8 %v221
        %v223 = vperm.slane %v219, %v222
        %v225 = vmul.f32 %v205, %v223
        %v226 = vmul.f32 %v206, %v223
        %v227 = vmul.f32 %v207, %v223
        %v228 = vmul.f32 %v208, %v223
        %v229 = vmul.f32 %v209, %v223
        %v230 = vmul.f32 %v210, %v223
        %v231 = vmul.f32 %v211, %v223
        %v232 = vmul.f32 %v212, %v223
        %v233 = vmul.f32 %v213, %v223
        %v234 = vmul.f32 %v214, %v223
        %v235 = vld [vmem:[%s2] sm:$0x7]
        %237 = vset.pattern.permute.xlu0 0
        %238 = vperm.xlu0 %237, %v235
        %v239 = vpop.permute.xlu0 %238
        %v241 = vunpack.c.l.s4 839922192
        %v242 = vunpack.c.0.s8 %v241
        %v243 = vperm.slane %v239, %v242
        %v245 = vadd.f32 %v225, %v243
        %v246 = vadd.f32 %v226, %v243
        %v247 = vadd.f32 %v227, %v243
        %v248 = vadd.f32 %v228, %v243
        %v249 = vadd.f32 %v229, %v243
        %v250 = vadd.f32 %v230, %v243
        %v251 = vadd.f32 %v231, %v243
        %v252 = vadd.f32 %v232, %v243
        %v253 = vadd.f32 %v233, %v243
        %v254 = vadd.f32 %v234, %v243
        %265 = vst [vmem:[#allocation1] ss:$2 sm:$0xff] %v245
        %s266 = scalar_lea.vmem [#allocation1], 16
        %267 = vst [vmem:[%s266] ss:$2 sm:$0xff] %v246
        %s268 = scalar_lea.vmem [#allocation1], 32
        %269 = vst [vmem:[%s268] ss:$2 sm:$0xff] %v247
        %s270 = scalar_lea.vmem [#allocation1], 48
        %271 = vst [vmem:[%s270] ss:$2 sm:$0xff] %v248
        %v272 = vld.sshfl [vmem:[#allocation1] sm:$0xff pattern:$0x75316420]
        %v273 = vld.sshfl [vmem:[#allocation1 + $0x8] sm:$0xff pattern:$0x75316420]
        %v274 = vld.sshfl [vmem:[#allocation1 + $0x10] sm:$0xff pattern:$0x75316420]
        %v275 = vld.sshfl [vmem:[#allocation1 + $0x18] sm:$0xff pattern:$0x75316420]
        %v276 = vld.sshfl [vmem:[#allocation1 + $0x20] sm:$0xff pattern:$0x75316420]
        %v277 = vld.sshfl [vmem:[#allocation1 + $0x28] sm:$0xff pattern:$0x75316420]
        %v278 = vld.sshfl [vmem:[#allocation1 + $0x30] sm:$0xff pattern:$0x75316420]
        %v279 = vld.sshfl [vmem:[#allocation1 + $0x38] sm:$0xff pattern:$0x75316420]
        %280 = vst [vmem:[#allocation1] ss:$2 sm:$0xff] %v249
        %281 = vst [vmem:[%s266] ss:$2 sm:$0xff] %v250
        %282 = vst [vmem:[%s268] ss:$2 sm:$0xff] %v251
        %283 = vst [vmem:[%s270] ss:$2 sm:$0xff] %v252
        %v284 = vld.sshfl [vmem:[#allocation1] sm:$0xff pattern:$0x75316420]
        %v285 = vld.sshfl [vmem:[#allocation1 + $0x8] sm:$0xff pattern:$0x75316420]
        %v286 = vld.sshfl [vmem:[#allocation1 + $0x10] sm:$0xff pattern:$0x75316420]
        %v287 = vld.sshfl [vmem:[#allocation1 + $0x18] sm:$0xff pattern:$0x75316420]
        %v288 = vld.sshfl [vmem:[#allocation1 + $0x20] sm:$0xff pattern:$0x75316420]
        %v289 = vld.sshfl [vmem:[#allocation1 + $0x28] sm:$0xff pattern:$0x75316420]
        %v290 = vld.sshfl [vmem:[#allocation1 + $0x30] sm:$0xff pattern:$0x75316420]
        %v291 = vld.sshfl [vmem:[#allocation1 + $0x38] sm:$0xff pattern:$0x75316420]
        %292 = vst [vmem:[#allocation1] ss:$2 sm:$0xff] %v253
        %293 = vst [vmem:[%s266] ss:$2 sm:$0xff] %v254
        %v294 = vld.sshfl [vmem:[#allocation1] sm:$0xff pattern:$0x75316420]
        %v295 = vld.sshfl [vmem:[#allocation1 + $0x8] sm:$0xff pattern:$0x75316420]
        %v296 = vld.sshfl [vmem:[#allocation1 + $0x10] sm:$0xff pattern:$0x75316420]
        %v297 = vld.sshfl [vmem:[#allocation1 + $0x18] sm:$0xff pattern:$0x75316420]
        %318 = vst [vmem:[#allocation2] sm:$0x7] %v272
        %319 = vst [vmem:[#allocation2 + $0x8] sm:$0x7] %v273
        %320 = vst [vmem:[#allocation2 + $0x10] sm:$0x7] %v274
        %321 = vst [vmem:[#allocation2 + $0x18] sm:$0x7] %v275
        %322 = vst [vmem:[#allocation2 + $0x20] sm:$0x7] %v276
        %323 = vst [vmem:[#allocation2 + $0x28] sm:$0x7] %v277
        %324 = vst [vmem:[#allocation2 + $0x30] sm:$0x7] %v278
        %325 = vst [vmem:[#allocation2 + $0x38] sm:$0x7] %v279
        %326 = vst [vmem:[#allocation2 + $0x40] sm:$0x7] %v284
        %327 = vst [vmem:[#allocation2 + $0x48] sm:$0x7] %v285
        %328 = vst [vmem:[#allocation2 + $0x50] sm:$0x7] %v286
        %329 = vst [vmem:[#allocation2 + $0x58] sm:$0x7] %v287
        %330 = vst [vmem:[#allocation2 + $0x60] sm:$0x7] %v288
        %331 = vst [vmem:[#allocation2 + $0x68] sm:$0x7] %v289
        %332 = vst [vmem:[#allocation2 + $0x70] sm:$0x7] %v290
        %333 = vst [vmem:[#allocation2 + $0x78] sm:$0x7] %v291
        %334 = vst [vmem:[#allocation2 + $0x80] sm:$0x7] %v294
        %335 = vst [vmem:[#allocation2 + $0x88] sm:$0x7] %v295
        %336 = vst [vmem:[#allocation2 + $0x90] sm:$0x7] %v296
        %337 = vst [vmem:[#allocation2 + $0x98] sm:$0x7] %v297
        %338 = vst [vmem:[#allocation2] sm:$0xf8] 0.0
        %339 = vst [vmem:[#allocation2 + $0x8] sm:$0xf8] 0.0
        %340 = vst [vmem:[#allocation2 + $0x10] sm:$0xf8] 0.0
        %341 = vst [vmem:[#allocation2 + $0x18] sm:$0xf8] 0.0
        %342 = vst [vmem:[#allocation2 + $0x20] sm:$0xf8] 0.0
        %343 = vst [vmem:[#allocation2 + $0x28] sm:$0xf8] 0.0
        %344 = vst [vmem:[#allocation2 + $0x30] sm:$0xf8] 0.0
        %345 = vst [vmem:[#allocation2 + $0x38] sm:$0xf8] 0.0
        %346 = vst [vmem:[#allocation2 + $0x40] sm:$0xf8] 0.0
        %347 = vst [vmem:[#allocation2 + $0x48] sm:$0xf8] 0.0
        %348 = vst [vmem:[#allocation2 + $0x50] sm:$0xf8] 0.0
        %349 = vst [vmem:[#allocation2 + $0x58] sm:$0xf8] 0.0
        %350 = vst [vmem:[#allocation2 + $0x60] sm:$0xf8] 0.0
        %351 = vst [vmem:[#allocation2 + $0x68] sm:$0xf8] 0.0
        %352 = vst [vmem:[#allocation2 + $0x70] sm:$0xf8] 0.0
        %353 = vst [vmem:[#allocation2 + $0x78] sm:$0xf8] 0.0
        %354 = vst [vmem:[#allocation2 + $0x80] sm:$0xf8] 0.0
        %355 = vst [vmem:[#allocation2 + $0x88] sm:$0xf8] 0.0
        %356 = vst [vmem:[#allocation2 + $0x90] sm:$0xf8] 0.0
        %357 = vst [vmem:[#allocation2 + $0x98] sm:$0xf8] 0.0
        %s358 = scalar_lea.vmem [#allocation2], 327
        %359 = vst [vmem:[%s358] ss:$8 sm:$0xf] 0.0
        %360 = vst [vmem:[%s358] ss:$8 sm:$0xf0] 0.0
        %s361 = scalar_lea.vmem [#allocation2], 391
        %362 = vst [vmem:[%s361] ss:$8 sm:$0xf] 0.0
        %363 = vst [vmem:[%s361] ss:$8 sm:$0xf0] 0.0
        %v364 = vlaneseq
        %vm365 = vcmp.ge.s32.totalorder %v364, 0
        %vm366 = vcmp.lt.s32.totalorder %v364, 512
        %vm367 = vmand %vm365, %vm366
        %s368 = scalar_lea.vmem [#allocation2], 455
        %369 = vst.msk [vmem:[%s368] ss:$8 sm:$0xf] %vm367, 0.0
        %370 = vst.msk [vmem:[%s368] ss:$8 sm:$0x0] %vm367, 0.0
        %s371 = scalar_lea.vmem [#allocation2], 647
        %372 = vst [vmem:[%s371] ss:$8 sm:$0xf] 1.0
        %373 = vst [vmem:[%s371] ss:$8 sm:$0xf0] 1.0
        %s374 = scalar_lea.vmem [#allocation2], 711
        %375 = vst [vmem:[%s374] ss:$8 sm:$0xf] 1.0
        %376 = vst [vmem:[%s374] ss:$8 sm:$0xf0] 1.0
        %s377 = scalar_lea.vmem [#allocation2], 775
        %378 = vst.msk [vmem:[%s377] ss:$8 sm:$0xf] %vm367, 1.0
        %379 = vst.msk [vmem:[%s377] ss:$8 sm:$0x0] %vm367, 1.0
        %v380 = vand.u32 2147483647, %v245
        %vm381 = vcmp.le.f32.partialorder %v380, 0.7853982
        %vm382 = vcmp.lt.s32.totalorder %v245, 0
        %v383 = vand.u32 %v245, 2139095040
        %v384 = vshrl.u32 %v383, 23
        %v385 = vsub.s32 %v384, 127
        %v386 = vand.u32 2147483647, %v245
        %v387 = vand.u32 %v386, 8388607
        %v388 = vor.u32 %v387, 8388608
        %v389 = vsub.s32 0, %v388
        %v390 = vadd.s32 %v385, 1
        %vm391 = vcmp.gt.s32.totalorder %v390, 0
        %v392 = vsel %vm391, %v390, 0
        %v393 = vshrl.u32 %v392, 5
        %v394 = vand.u32 %v392, 31
        %v395 = vsub.s32 32, %v394
        %v396 = vshrl.u32 683565275, %v395
        %v397 = vshll.u32 683565275, %v394
        %v398 = vshrl.u32 2475754826, %v395
        %v399 = vor.u32 %v397, %v398
        %v400 = vshll.u32 2475754826, %v394
        %v401 = vshrl.u32 2131351028, %v395
        %v402 = vor.u32 %v400, %v401
        %v403 = vshll.u32 2131351028, %v394
        %v404 = vshrl.u32 2102212464, %v395
        %v405 = vor.u32 %v403, %v404
        %v406 = vshll.u32 2102212464, %v394
        %v407 = vshrl.u32 920167782, %v395
        %v408 = vor.u32 %v406, %v407
        %v409 = vshll.u32 920167782, %v394
        %v410 = vshrl.u32 1326507024, %v395
        %v411 = vor.u32 %v409, %v410
        %vm412 = vcmp.lt.s32.totalorder %v393, 1
        %vm413 = vcmp.lt.s32.totalorder %v393, 2
        %vm414 = vcmp.lt.s32.totalorder %v393, 3
        %vm415 = vcmp.lt.s32.totalorder %v393, 4
        %v416 = vsel %vm412, %v396, %v399
        %v417 = vsel %vm415, %v405, 2102212464
        %v418 = vsel %vm414, %v402, %v417
        %v419 = vsel %vm413, %v416, %v418
        %v420 = vsel %vm412, %v399, %v402
        %v421 = vsel %vm415, %v408, 920167782
        %v422 = vsel %vm414, %v405, %v421
        %v423 = vsel %vm413, %v420, %v422
        %v424 = vsel %vm412, %v402, %v405
        %v425 = vsel %vm415, %v411, 1326507024
        %v426 = vsel %vm414, %v408, %v425
        %v427 = vsel %vm413, %v424, %v426
        %v428 = vshll.u32 %v388, 8
        %v429 = vand.u32 %v428, 65535
        %v430 = vshrl.u32 %v428, 16
        %v431 = vand.u32 %v427, 65535
        %v432 = vshrl.u32 %v427, 16
        %v433 = vmul.u32 %v429, %v431
        %v434 = vmul.u32 %v429, %v432
        %v435 = vmul.u32 %v430, %v431
        %v436 = vmul.u32 %v430, %v432
        %v437 = vshll.u32 %v434, 16
        %v438 = vshrl.u32 %v434, 16
        %v439 = vshll.u32 %v435, 16
        %v440 = vshrl.u32 %v435, 16
        %vm441 = vc.u32 %v433, %v437
        %v442 = vsel %vm441, 1, 0
        %v443 = vadd.s32 %v433, %v437
        %v444 = vadd.s32 %v436, %v442
        %vm445 = vc.u32 %v443, %v439
        %v446 = vsel %vm445, 1, 0
        %v447 = vadd.s32 %v443, %v439
        %v448 = vadd.s32 %v444, %v446
        %v449 = vadd.s32 %v448, %v438
        %v450 = vadd.s32 %v449, %v440
        %v451 = vand.u32 %v428, 65535
        %v452 = vshrl.u32 %v428, 16
        %v453 = vand.u32 %v423, 65535
        %v454 = vshrl.u32 %v423, 16
        %v455 = vmul.u32 %v451, %v453
        %v456 = vmul.u32 %v451, %v454
        %v457 = vmul.u32 %v452, %v453
        %v458 = vmul.u32 %v452, %v454
        %v459 = vshll.u32 %v456, 16
        %v460 = vshrl.u32 %v456, 16
        %v461 = vshll.u32 %v457, 16
        %v462 = vshrl.u32 %v457, 16
        %vm463 = vc.u32 %v455, %v459
        %v464 = vsel %vm463, 1, 0
        %v465 = vadd.s32 %v455, %v459
        %v466 = vadd.s32 %v458, %v464
        %vm467 = vc.u32 %v465, %v461
        %v468 = vsel %vm467, 1, 0
        %v469 = vadd.s32 %v465, %v461
        %v470 = vadd.s32 %v466, %v468
        %v471 = vadd.s32 %v470, %v460
        %v472 = vadd.s32 %v471, %v462
        %v473 = vmul.u32 %v428, %v419
        %v474 = vadd.s32 %v450, %v469
        %vm475 = vc.u32 %v450, %v469
        %v476 = vadd.s32 %v472, 1
        %v477 = vsel %vm475, %v476, %v472
        %v478 = vadd.s32 %v473, %v477
        %v479 = vadd.s32 %v478, 536870912
        %v480 = vshrl.u32 %v479, 30
        %v481 = vshll.u32 %v480, 30
        %v482 = vsub.s32 %v478, %v481
        %vm483 = vcmp.lt.s32.totalorder %v482, 0
        %v484 = vsub.s32 0, %v482
        %v485 = vsel %vm483, %v484, %v482
        %v486 = vclz %v485
        %v487 = vsub.s32 %v486, 2
        %vm488 = vcmp.gt.s32.totalorder 0, %v487
        %v489 = vsel %vm488, 0, %v487
        %v490 = vsub.s32 32, %v489
        %v491 = vshll.u32 %v482, %v489
        %v492 = vshrl.u32 %v474, %v490
        %v493 = vor.u32 %v491, %v492
        %v494 = vsub.s32 4294967266, %v489
        %v495 = vadd.s32 %v494, 127
        %v496 = vshll.u32 %v495, 23
        %v497 = vor.u32 4788187, %v496
        %v498 = vand.u32 2147483647, %v497
        %v500 = vcvt.s32.f32 %v493
        %v501 = vmul.f32 %v500, %v498
        %v502 = vxor.u32 %v501, 2147483648
        %v503 = vsel %vm382, %v502, %v501
        %v504 = vsub.s32 4, %v480
        %v505 = vsel %vm382, %v504, %v480
        %v506 = vsel %vm381, %v245, %v503
        %v507 = vsel %vm381, 0, %v505
        %v508 = vmul.f32 %v506, %v506
        %v509 = vmul.f32 %v508, -0.001358992
        %v510 = vadd.f32 %v509, 0.041655596
        %v511 = vmul.f32 %v508, %v510
        %v512 = vadd.f32 %v511, -0.4999988
        %v513 = vmul.f32 %v508, %v512
        %v514 = vadd.f32 1.0, %v513
        %v515 = vmul.f32 %v506, %v506
        %v516 = vmul.f32 %v515, -0.00019511016
        %v517 = vadd.f32 %v516, 0.008332121
        %v518 = vmul.f32 %v515, %v517
        %v519 = vadd.f32 %v518, -0.16666654
        %v520 = vmul.f32 %v515, %v519
        %v521 = vadd.f32 %v520, 1.0
        %v522 = vmul.f32 %v521, %v506
        %vm523 = vweird.f32 %v245
        %v524 = vadd.s32 %v507, 3
        %v525 = vand.u32 %v524, 3
        %vm526 = vcmp.lt.s32.totalorder %v525, 2
        %vm527 = vcmp.eq.s32.totalorder %v525, 0
        %v528 = vxor.u32 %v522, 2147483648
        %v529 = vsel %vm527, %v514, %v528
        %vm530 = vcmp.eq.s32.totalorder %v525, 2
        %v531 = vxor.u32 %v514, 2147483648
        %v532 = vsel %vm530, %v531, %v522
        %v533 = vsel %vm526, %v529, %v532
        %v534 = vsel %vm523, nan, %v533
        %v535 = vand.u32 2147483647, %v246
        %vm536 = vcmp.le.f32.partialorder %v535, 0.7853982
        %vm537 = vcmp.lt.s32.totalorder %v246, 0
        %v538 = vand.u32 %v246, 2139095040
        %v539 = vshrl.u32 %v538, 23
        %v540 = vsub.s32 %v539, 127
        %v541 = vand.u32 2147483647, %v246
        %v542 = vand.u32 %v541, 8388607
        %v543 = vor.u32 %v542, 8388608
        %v544 = vsub.s32 0, %v543
        %v545 = vadd.s32 %v540, 1
        %vm546 = vcmp.gt.s32.totalorder %v545, 0
        %v547 = vsel %vm546, %v545, 0
        %v548 = vshrl.u32 %v547, 5
        %v549 = vand.u32 %v547, 31
        %v550 = vsub.s32 32, %v549
        %v551 = vshrl.u32 683565275, %v550
        %v552 = vshll.u32 683565275, %v549
        %v553 = vshrl.u32 2475754826, %v550
        %v554 = vor.u32 %v552, %v553
        %v555 = vshll.u32 2475754826, %v549
        %v556 = vshrl.u32 2131351028, %v550
        %v557 = vor.u32 %v555, %v556
        %v558 = vshll.u32 2131351028, %v549
        %v559 = vshrl.u32 2102212464, %v550
        %v560 = vor.u32 %v558, %v559
        %v561 = vshll.u32 2102212464, %v549
        %v562 = vshrl.u32 920167782, %v550
        %v563 = vor.u32 %v561, %v562
        %v564 = vshll.u32 920167782, %v549
        %v565 = vshrl.u32 1326507024, %v550
        %v566 = vor.u32 %v564, %v565
        %vm567 = vcmp.lt.s32.totalorder %v548, 1
        %vm568 = vcmp.lt.s32.totalorder %v548, 2
        %vm569 = vcmp.lt.s32.totalorder %v548, 3
        %vm570 = vcmp.lt.s32.totalorder %v548, 4
        %v571 = vsel %vm567, %v551, %v554
        %v572 = vsel %vm570, %v560, 2102212464
        %v573 = vsel %vm569, %v557, %v572
        %v574 = vsel %vm568, %v571, %v573
        %v575 = vsel %vm567, %v554, %v557
        %v576 = vsel %vm570, %v563, 920167782
        %v577 = vsel %vm569, %v560, %v576
        %v578 = vsel %vm568, %v575, %v577
        %v579 = vsel %vm567, %v557, %v560
        %v580 = vsel %vm570, %v566, 1326507024
        %v581 = vsel %vm569, %v563, %v580
        %v582 = vsel %vm568, %v579, %v581
        %v583 = vshll.u32 %v543, 8
        %v584 = vand.u32 %v583, 65535
        %v585 = vshrl.u32 %v583, 16
        %v586 = vand.u32 %v582, 65535
        %v587 = vshrl.u32 %v582, 16
        %v588 = vmul.u32 %v584, %v586
        %v589 = vmul.u32 %v584, %v587
        %v590 = vmul.u32 %v585, %v586
        %v591 = vmul.u32 %v585, %v587
        %v592 = vshll.u32 %v589, 16
        %v593 = vshrl.u32 %v589, 16
        %v594 = vshll.u32 %v590, 16
        %v595 = vshrl.u32 %v590, 16
        %vm596 = vc.u32 %v588, %v592
        %v597 = vsel %vm596, 1, 0
        %v598 = vadd.s32 %v588, %v592
        %v599 = vadd.s32 %v591, %v597
        %vm600 = vc.u32 %v598, %v594
        %v601 = vsel %vm600, 1, 0
        %v602 = vadd.s32 %v598, %v594
        %v603 = vadd.s32 %v599, %v601
        %v604 = vadd.s32 %v603, %v593
        %v605 = vadd.s32 %v604, %v595
        %v606 = vand.u32 %v583, 65535
        %v607 = vshrl.u32 %v583, 16
        %v608 = vand.u32 %v578, 65535
        %v609 = vshrl.u32 %v578, 16
        %v610 = vmul.u32 %v606, %v608
        %v611 = vmul.u32 %v606, %v609
        %v612 = vmul.u32 %v607, %v608
        %v613 = vmul.u32 %v607, %v609
        %v614 = vshll.u32 %v611, 16
        %v615 = vshrl.u32 %v611, 16
        %v616 = vshll.u32 %v612, 16
        %v617 = vshrl.u32 %v612, 16
        %vm618 = vc.u32 %v610, %v614
        %v619 = vsel %vm618, 1, 0
        %v620 = vadd.s32 %v610, %v614
        %v621 = vadd.s32 %v613, %v619
        %vm622 = vc.u32 %v620, %v616
        %v623 = vsel %vm622, 1, 0
        %v624 = vadd.s32 %v620, %v616
        %v625 = vadd.s32 %v621, %v623
        %v626 = vadd.s32 %v625, %v615
        %v627 = vadd.s32 %v626, %v617
        %v628 = vmul.u32 %v583, %v574
        %v629 = vadd.s32 %v605, %v624
        %vm630 = vc.u32 %v605, %v624
        %v631 = vadd.s32 %v627, 1
        %v632 = vsel %vm630, %v631, %v627
        %v633 = vadd.s32 %v628, %v632
        %v634 = vadd.s32 %v633, 536870912
        %v635 = vshrl.u32 %v634, 30
        %v636 = vshll.u32 %v635, 30
        %v637 = vsub.s32 %v633, %v636
        %vm638 = vcmp.lt.s32.totalorder %v637, 0
        %v639 = vsub.s32 0, %v637
        %v640 = vsel %vm638, %v639, %v637
        %v641 = vclz %v640
        %v642 = vsub.s32 %v641, 2
        %vm643 = vcmp.gt.s32.totalorder 0, %v642
        %v644 = vsel %vm643, 0, %v642
        %v645 = vsub.s32 32, %v644
        %v646 = vshll.u32 %v637, %v644
        %v647 = vshrl.u32 %v629, %v645
        %v648 = vor.u32 %v646, %v647
        %v649 = vsub.s32 4294967266, %v644
        %v650 = vadd.s32 %v649, 127
        %v651 = vshll.u32 %v650, 23
        %v652 = vor.u32 4788187, %v651
        %v653 = vand.u32 2147483647, %v652
        %v655 = vcvt.s32.f32 %v648
        %v656 = vmul.f32 %v655, %v653
        %v657 = vxor.u32 %v656, 2147483648
        %v658 = vsel %vm537, %v657, %v656
        %v659 = vsub.s32 4, %v635
        %v660 = vsel %vm537, %v659, %v635
        %v661 = vsel %vm536, %v246, %v658
        %v662 = vsel %vm536, 0, %v660
        %v663 = vmul.f32 %v661, %v661
        %v664 = vmul.f32 %v663, -0.001358992
        %v665 = vadd.f32 %v664, 0.041655596
        %v666 = vmul.f32 %v663, %v665
        %v667 = vadd.f32 %v666, -0.4999988
        %v668 = vmul.f32 %v663, %v667
        %v669 = vadd.f32 1.0, %v668
        %v670 = vmul.f32 %v661, %v661
        %v671 = vmul.f32 %v670, -0.00019511016
        %v672 = vadd.f32 %v671, 0.008332121
        %v673 = vmul.f32 %v670, %v672
        %v674 = vadd.f32 %v673, -0.16666654
        %v675 = vmul.f32 %v670, %v674
        %v676 = vadd.f32 %v675, 1.0
        %v677 = vmul.f32 %v676, %v661
        %vm678 = vweird.f32 %v246
        %v679 = vadd.s32 %v662, 3
        %v680 = vand.u32 %v679, 3
        %vm681 = vcmp.lt.s32.totalorder %v680, 2
        %vm682 = vcmp.eq.s32.totalorder %v680, 0
        %v683 = vxor.u32 %v677, 2147483648
        %v684 = vsel %vm682, %v669, %v683
        %vm685 = vcmp.eq.s32.totalorder %v680, 2
        %v686 = vxor.u32 %v669, 2147483648
        %v687 = vsel %vm685, %v686, %v677
        %v688 = vsel %vm681, %v684, %v687
        %v689 = vsel %vm678, nan, %v688
        %v690 = vand.u32 2147483647, %v247
        %vm691 = vcmp.le.f32.partialorder %v690, 0.7853982
        %vm692 = vcmp.lt.s32.totalorder %v247, 0
        %v693 = vand.u32 %v247, 2139095040
        %v694 = vshrl.u32 %v693, 23
        %v695 = vsub.s32 %v694, 127
        %v696 = vand.u32 2147483647, %v247
        %v697 = vand.u32 %v696, 8388607
        %v698 = vor.u32 %v697, 8388608
        %v699 = vsub.s32 0, %v698
        %v700 = vadd.s32 %v695, 1
        %vm701 = vcmp.gt.s32.totalorder %v700, 0
        %v702 = vsel %vm701, %v700, 0
        %v703 = vshrl.u32 %v702, 5
        %v704 = vand.u32 %v702, 31
        %v705 = vsub.s32 32, %v704
        %v706 = vshrl.u32 683565275, %v705
        %v707 = vshll.u32 683565275, %v704
        %v708 = vshrl.u32 2475754826, %v705
        %v709 = vor.u32 %v707, %v708
        %v710 = vshll.u32 2475754826, %v704
        %v711 = vshrl.u32 2131351028, %v705
        %v712 = vor.u32 %v710, %v711
        %v713 = vshll.u32 2131351028, %v704
        %v714 = vshrl.u32 2102212464, %v705
        %v715 = vor.u32 %v713, %v714
        %v716 = vshll.u32 2102212464, %v704
        %v717 = vshrl.u32 920167782, %v705
        %v718 = vor.u32 %v716, %v717
        %v719 = vshll.u32 920167782, %v704
        %v720 = vshrl.u32 1326507024, %v705
        %v721 = vor.u32 %v719, %v720
        %vm722 = vcmp.lt.s32.totalorder %v703, 1
        %vm723 = vcmp.lt.s32.totalorder %v703, 2
        %vm724 = vcmp.lt.s32.totalorder %v703, 3
        %vm725 = vcmp.lt.s32.totalorder %v703, 4
        %v726 = vsel %vm722, %v706, %v709
        %v727 = vsel %vm725, %v715, 2102212464
        %v728 = vsel %vm724, %v712, %v727
        %v729 = vsel %vm723, %v726, %v728
        %v730 = vsel %vm722, %v709, %v712
        %v731 = vsel %vm725, %v718, 920167782
        %v732 = vsel %vm724, %v715, %v731
        %v733 = vsel %vm723, %v730, %v732
        %v734 = vsel %vm722, %v712, %v715
        %v735 = vsel %vm725, %v721, 1326507024
        %v736 = vsel %vm724, %v718, %v735
        %v737 = vsel %vm723, %v734, %v736
        %v738 = vshll.u32 %v698, 8
        %v739 = vand.u32 %v738, 65535
        %v740 = vshrl.u32 %v738, 16
        %v741 = vand.u32 %v737, 65535
        %v742 = vshrl.u32 %v737, 16
        %v743 = vmul.u32 %v739, %v741
        %v744 = vmul.u32 %v739, %v742
        %v745 = vmul.u32 %v740, %v741
        %v746 = vmul.u32 %v740, %v742
        %v747 = vshll.u32 %v744, 16
        %v748 = vshrl.u32 %v744, 16
        %v749 = vshll.u32 %v745, 16
        %v750 = vshrl.u32 %v745, 16
        %vm751 = vc.u32 %v743, %v747
        %v752 = vsel %vm751, 1, 0
        %v753 = vadd.s32 %v743, %v747
        %v754 = vadd.s32 %v746, %v752
        %vm755 = vc.u32 %v753, %v749
        %v756 = vsel %vm755, 1, 0
        %v757 = vadd.s32 %v753, %v749
        %v758 = vadd.s32 %v754, %v756
        %v759 = vadd.s32 %v758, %v748
        %v760 = vadd.s32 %v759, %v750
        %v761 = vand.u32 %v738, 65535
        %v762 = vshrl.u32 %v738, 16
        %v763 = vand.u32 %v733, 65535
        %v764 = vshrl.u32 %v733, 16
        %v765 = vmul.u32 %v761, %v763
        %v766 = vmul.u32 %v761, %v764
        %v767 = vmul.u32 %v762, %v763
        %v768 = vmul.u32 %v762, %v764
        %v769 = vshll.u32 %v766, 16
        %v770 = vshrl.u32 %v766, 16
        %v771 = vshll.u32 %v767, 16
        %v772 = vshrl.u32 %v767, 16
        %vm773 = vc.u32 %v765, %v769
        %v774 = vsel %vm773, 1, 0
        %v775 = vadd.s32 %v765, %v769
        %v776 = vadd.s32 %v768, %v774
        %vm777 = vc.u32 %v775, %v771
        %v778 = vsel %vm777, 1, 0
        %v779 = vadd.s32 %v775, %v771
        %v780 = vadd.s32 %v776, %v778
        %v781 = vadd.s32 %v780, %v770
        %v782 = vadd.s32 %v781, %v772
        %v783 = vmul.u32 %v738, %v729
        %v784 = vadd.s32 %v760, %v779
        %vm785 = vc.u32 %v760, %v779
        %v786 = vadd.s32 %v782, 1
        %v787 = vsel %vm785, %v786, %v782
        %v788 = vadd.s32 %v783, %v787
        %v789 = vadd.s32 %v788, 536870912
        %v790 = vshrl.u32 %v789, 30
        %v791 = vshll.u32 %v790, 30
        %v792 = vsub.s32 %v788, %v791
        %vm793 = vcmp.lt.s32.totalorder %v792, 0
        %v794 = vsub.s32 0, %v792
        %v795 = vsel %vm793, %v794, %v792
        %v796 = vclz %v795
        %v797 = vsub.s32 %v796, 2
        %vm798 = vcmp.gt.s32.totalorder 0, %v797
        %v799 = vsel %vm798, 0, %v797
        %v800 = vsub.s32 32, %v799
        %v801 = vshll.u32 %v792, %v799
        %v802 = vshrl.u32 %v784, %v800
        %v803 = vor.u32 %v801, %v802
        %v804 = vsub.s32 4294967266, %v799
        %v805 = vadd.s32 %v804, 127
        %v806 = vshll.u32 %v805, 23
        %v807 = vor.u32 4788187, %v806
        %v808 = vand.u32 2147483647, %v807
        %v810 = vcvt.s32.f32 %v803
        %v811 = vmul.f32 %v810, %v808
        %v812 = vxor.u32 %v811, 2147483648
        %v813 = vsel %vm692, %v812, %v811
        %v814 = vsub.s32 4, %v790
        %v815 = vsel %vm692, %v814, %v790
        %v816 = vsel %vm691, %v247, %v813
        %v817 = vsel %vm691, 0, %v815
        %v818 = vmul.f32 %v816, %v816
        %v819 = vmul.f32 %v818, -0.001358992
        %v820 = vadd.f32 %v819, 0.041655596
        %v821 = vmul.f32 %v818, %v820
        %v822 = vadd.f32 %v821, -0.4999988
        %v823 = vmul.f32 %v818, %v822
        %v824 = vadd.f32 1.0, %v823
        %v825 = vmul.f32 %v816, %v816
        %v826 = vmul.f32 %v825, -0.00019511016
        %v827 = vadd.f32 %v826, 0.008332121
        %v828 = vmul.f32 %v825, %v827
        %v829 = vadd.f32 %v828, -0.16666654
        %v830 = vmul.f32 %v825, %v829
        %v831 = vadd.f32 %v830, 1.0
        %v832 = vmul.f32 %v831, %v816
        %vm833 = vweird.f32 %v247
        %v834 = vadd.s32 %v817, 3
        %v835 = vand.u32 %v834, 3
        %vm836 = vcmp.lt.s32.totalorder %v835, 2
        %vm837 = vcmp.eq.s32.totalorder %v835, 0
        %v838 = vxor.u32 %v832, 2147483648
        %v839 = vsel %vm837, %v824, %v838
        %vm840 = vcmp.eq.s32.totalorder %v835, 2
        %v841 = vxor.u32 %v824, 2147483648
        %v842 = vsel %vm840, %v841, %v832
        %v843 = vsel %vm836, %v839, %v842
        %v844 = vsel %vm833, nan, %v843
        %v845 = vand.u32 2147483647, %v248
        %vm846 = vcmp.le.f32.partialorder %v845, 0.7853982
        %vm847 = vcmp.lt.s32.totalorder %v248, 0
        %v848 = vand.u32 %v248, 2139095040
        %v849 = vshrl.u32 %v848, 23
        %v850 = vsub.s32 %v849, 127
        %v851 = vand.u32 2147483647, %v248
        %v852 = vand.u32 %v851, 8388607
        %v853 = vor.u32 %v852, 8388608
        %v854 = vsub.s32 0, %v853
        %v855 = vadd.s32 %v850, 1
        %vm856 = vcmp.gt.s32.totalorder %v855, 0
        %v857 = vsel %vm856, %v855, 0
        %v858 = vshrl.u32 %v857, 5
        %v859 = vand.u32 %v857, 31
        %v860 = vsub.s32 32, %v859
        %v861 = vshrl.u32 683565275, %v860
        %v862 = vshll.u32 683565275, %v859
        %v863 = vshrl.u32 2475754826, %v860
        %v864 = vor.u32 %v862, %v863
        %v865 = vshll.u32 2475754826, %v859
        %v866 = vshrl.u32 2131351028, %v860
        %v867 = vor.u32 %v865, %v866
        %v868 = vshll.u32 2131351028, %v859
        %v869 = vshrl.u32 2102212464, %v860
        %v870 = vor.u32 %v868, %v869
        %v871 = vshll.u32 2102212464, %v859
        %v872 = vshrl.u32 920167782, %v860
        %v873 = vor.u32 %v871, %v872
        %v874 = vshll.u32 920167782, %v859
        %v875 = vshrl.u32 1326507024, %v860
        %v876 = vor.u32 %v874, %v875
        %vm877 = vcmp.lt.s32.totalorder %v858, 1
        %vm878 = vcmp.lt.s32.totalorder %v858, 2
        %vm879 = vcmp.lt.s32.totalorder %v858, 3
        %vm880 = vcmp.lt.s32.totalorder %v858, 4
        %v881 = vsel %vm877, %v861, %v864
        %v882 = vsel %vm880, %v870, 2102212464
        %v883 = vsel %vm879, %v867, %v882
        %v884 = vsel %vm878, %v881, %v883
        %v885 = vsel %vm877, %v864, %v867
        %v886 = vsel %vm880, %v873, 920167782
        %v887 = vsel %vm879, %v870, %v886
        %v888 = vsel %vm878, %v885, %v887
        %v889 = vsel %vm877, %v867, %v870
        %v890 = vsel %vm880, %v876, 1326507024
        %v891 = vsel %vm879, %v873, %v890
        %v892 = vsel %vm878, %v889, %v891
        %v893 = vshll.u32 %v853, 8
        %v894 = vand.u32 %v893, 65535
        %v895 = vshrl.u32 %v893, 16
        %v896 = vand.u32 %v892, 65535
        %v897 = vshrl.u32 %v892, 16
        %v898 = vmul.u32 %v894, %v896
        %v899 = vmul.u32 %v894, %v897
        %v900 = vmul.u32 %v895, %v896
        %v901 = vmul.u32 %v895, %v897
        %v902 = vshll.u32 %v899, 16
        %v903 = vshrl.u32 %v899, 16
        %v904 = vshll.u32 %v900, 16
        %v905 = vshrl.u32 %v900, 16
        %vm906 = vc.u32 %v898, %v902
        %v907 = vsel %vm906, 1, 0
        %v908 = vadd.s32 %v898, %v902
        %v909 = vadd.s32 %v901, %v907
        %vm910 = vc.u32 %v908, %v904
        %v911 = vsel %vm910, 1, 0
        %v912 = vadd.s32 %v908, %v904
        %v913 = vadd.s32 %v909, %v911
        %v914 = vadd.s32 %v913, %v903
        %v915 = vadd.s32 %v914, %v905
        %v916 = vand.u32 %v893, 65535
        %v917 = vshrl.u32 %v893, 16
        %v918 = vand.u32 %v888, 65535
        %v919 = vshrl.u32 %v888, 16
        %v920 = vmul.u32 %v916, %v918
        %v921 = vmul.u32 %v916, %v919
        %v922 = vmul.u32 %v917, %v918
        %v923 = vmul.u32 %v917, %v919
        %v924 = vshll.u32 %v921, 16
        %v925 = vshrl.u32 %v921, 16
        %v926 = vshll.u32 %v922, 16
        %v927 = vshrl.u32 %v922, 16
        %vm928 = vc.u32 %v920, %v924
        %v929 = vsel %vm928, 1, 0
        %v930 = vadd.s32 %v920, %v924
        %v931 = vadd.s32 %v923, %v929
        %vm932 = vc.u32 %v930, %v926
        %v933 = vsel %vm932, 1, 0
        %v934 = vadd.s32 %v930, %v926
        %v935 = vadd.s32 %v931, %v933
        %v936 = vadd.s32 %v935, %v925
        %v937 = vadd.s32 %v936, %v927
        %v938 = vmul.u32 %v893, %v884
        %v939 = vadd.s32 %v915, %v934
        %vm940 = vc.u32 %v915, %v934
        %v941 = vadd.s32 %v937, 1
        %v942 = vsel %vm940, %v941, %v937
        %v943 = vadd.s32 %v938, %v942
        %v944 = vadd.s32 %v943, 536870912
        %v945 = vshrl.u32 %v944, 30
        %v946 = vshll.u32 %v945, 30
        %v947 = vsub.s32 %v943, %v946
        %vm948 = vcmp.lt.s32.totalorder %v947, 0
        %v949 = vsub.s32 0, %v947
        %v950 = vsel %vm948, %v949, %v947
        %v951 = vclz %v950
        %v952 = vsub.s32 %v951, 2
        %vm953 = vcmp.gt.s32.totalorder 0, %v952
        %v954 = vsel %vm953, 0, %v952
        %v955 = vsub.s32 32, %v954
        %v956 = vshll.u32 %v947, %v954
        %v957 = vshrl.u32 %v939, %v955
        %v958 = vor.u32 %v956, %v957
        %v959 = vsub.s32 4294967266, %v954
        %v960 = vadd.s32 %v959, 127
        %v961 = vshll.u32 %v960, 23
        %v962 = vor.u32 4788187, %v961
        %v963 = vand.u32 2147483647, %v962
        %v965 = vcvt.s32.f32 %v958
        %v966 = vmul.f32 %v965, %v963
        %v967 = vxor.u32 %v966, 2147483648
        %v968 = vsel %vm847, %v967, %v966
        %v969 = vsub.s32 4, %v945
        %v970 = vsel %vm847, %v969, %v945
        %v971 = vsel %vm846, %v248, %v968
        %v972 = vsel %vm846, 0, %v970
        %v973 = vmul.f32 %v971, %v971
        %v974 = vmul.f32 %v973, -0.001358992
        %v975 = vadd.f32 %v974, 0.041655596
        %v976 = vmul.f32 %v973, %v975
        %v977 = vadd.f32 %v976, -0.4999988
        %v978 = vmul.f32 %v973, %v977
        %v979 = vadd.f32 1.0, %v978
        %v980 = vmul.f32 %v971, %v971
        %v981 = vmul.f32 %v980, -0.00019511016
        %v982 = vadd.f32 %v981, 0.008332121
        %v983 = vmul.f32 %v980, %v982
        %v984 = vadd.f32 %v983, -0.16666654
        %v985 = vmul.f32 %v980, %v984
        %v986 = vadd.f32 %v985, 1.0
        %v987 = vmul.f32 %v986, %v971
        %vm988 = vweird.f32 %v248
        %v989 = vadd.s32 %v972, 3
        %v990 = vand.u32 %v989, 3
        %vm991 = vcmp.lt.s32.totalorder %v990, 2
        %vm992 = vcmp.eq.s32.totalorder %v990, 0
        %v993 = vxor.u32 %v987, 2147483648
        %v994 = vsel %vm992, %v979, %v993
        %vm995 = vcmp.eq.s32.totalorder %v990, 2
        %v996 = vxor.u32 %v979, 2147483648
        %v997 = vsel %vm995, %v996, %v987
        %v998 = vsel %vm991, %v994, %v997
        %v999 = vsel %vm988, nan, %v998
        %v1000 = vand.u32 2147483647, %v249
        %vm1001 = vcmp.le.f32.partialorder %v1000, 0.7853982
        %vm1002 = vcmp.lt.s32.totalorder %v249, 0
        %v1003 = vand.u32 %v249, 2139095040
        %v1004 = vshrl.u32 %v1003, 23
        %v1005 = vsub.s32 %v1004, 127
        %v1006 = vand.u32 2147483647, %v249
        %v1007 = vand.u32 %v1006, 8388607
        %v1008 = vor.u32 %v1007, 8388608
        %v1009 = vsub.s32 0, %v1008
        %v1010 = vadd.s32 %v1005, 1
        %vm1011 = vcmp.gt.s32.totalorder %v1010, 0
        %v1012 = vsel %vm1011, %v1010, 0
        %v1013 = vshrl.u32 %v1012, 5
        %v1014 = vand.u32 %v1012, 31
        %v1015 = vsub.s32 32, %v1014
        %v1016 = vshrl.u32 683565275, %v1015
        %v1017 = vshll.u32 683565275, %v1014
        %v1018 = vshrl.u32 2475754826, %v1015
        %v1019 = vor.u32 %v1017, %v1018
        %v1020 = vshll.u32 2475754826, %v1014
        %v1021 = vshrl.u32 2131351028, %v1015
        %v1022 = vor.u32 %v1020, %v1021
        %v1023 = vshll.u32 2131351028, %v1014
        %v1024 = vshrl.u32 2102212464, %v1015
        %v1025 = vor.u32 %v1023, %v1024
        %v1026 = vshll.u32 2102212464, %v1014
        %v1027 = vshrl.u32 920167782, %v1015
        %v1028 = vor.u32 %v1026, %v1027
        %v1029 = vshll.u32 920167782, %v1014
        %v1030 = vshrl.u32 1326507024, %v1015
        %v1031 = vor.u32 %v1029, %v1030
        %vm1032 = vcmp.lt.s32.totalorder %v1013, 1
        %vm1033 = vcmp.lt.s32.totalorder %v1013, 2
        %vm1034 = vcmp.lt.s32.totalorder %v1013, 3
        %vm1035 = vcmp.lt.s32.totalorder %v1013, 4
        %v1036 = vsel %vm1032, %v1016, %v1019
        %v1037 = vsel %vm1035, %v1025, 2102212464
        %v1038 = vsel %vm1034, %v1022, %v1037
        %v1039 = vsel %vm1033, %v1036, %v1038
        %v1040 = vsel %vm1032, %v1019, %v1022
        %v1041 = vsel %vm1035, %v1028, 920167782
        %v1042 = vsel %vm1034, %v1025, %v1041
        %v1043 = vsel %vm1033, %v1040, %v1042
        %v1044 = vsel %vm1032, %v1022, %v1025
        %v1045 = vsel %vm1035, %v1031, 1326507024
        %v1046 = vsel %vm1034, %v1028, %v1045
        %v1047 = vsel %vm1033, %v1044, %v1046
        %v1048 = vshll.u32 %v1008, 8
        %v1049 = vand.u32 %v1048, 65535
        %v1050 = vshrl.u32 %v1048, 16
        %v1051 = vand.u32 %v1047, 65535
        %v1052 = vshrl.u32 %v1047, 16
        %v1053 = vmul.u32 %v1049, %v1051
        %v1054 = vmul.u32 %v1049, %v1052
        %v1055 = vmul.u32 %v1050, %v1051
        %v1056 = vmul.u32 %v1050, %v1052
        %v1057 = vshll.u32 %v1054, 16
        %v1058 = vshrl.u32 %v1054, 16
        %v1059 = vshll.u32 %v1055, 16
        %v1060 = vshrl.u32 %v1055, 16
        %vm1061 = vc.u32 %v1053, %v1057
        %v1062 = vsel %vm1061, 1, 0
        %v1063 = vadd.s32 %v1053, %v1057
        %v1064 = vadd.s32 %v1056, %v1062
        %vm1065 = vc.u32 %v1063, %v1059
        %v1066 = vsel %vm1065, 1, 0
        %v1067 = vadd.s32 %v1063, %v1059
        %v1068 = vadd.s32 %v1064, %v1066
        %v1069 = vadd.s32 %v1068, %v1058
        %v1070 = vadd.s32 %v1069, %v1060
        %v1071 = vand.u32 %v1048, 65535
        %v1072 = vshrl.u32 %v1048, 16
        %v1073 = vand.u32 %v1043, 65535
        %v1074 = vshrl.u32 %v1043, 16
        %v1075 = vmul.u32 %v1071, %v1073
        %v1076 = vmul.u32 %v1071, %v1074
        %v1077 = vmul.u32 %v1072, %v1073
        %v1078 = vmul.u32 %v1072, %v1074
        %v1079 = vshll.u32 %v1076, 16
        %v1080 = vshrl.u32 %v1076, 16
        %v1081 = vshll.u32 %v1077, 16
        %v1082 = vshrl.u32 %v1077, 16
        %vm1083 = vc.u32 %v1075, %v1079
        %v1084 = vsel %vm1083, 1, 0
        %v1085 = vadd.s32 %v1075, %v1079
        %v1086 = vadd.s32 %v1078, %v1084
        %vm1087 = vc.u32 %v1085, %v1081
        %v1088 = vsel %vm1087, 1, 0
        %v1089 = vadd.s32 %v1085, %v1081
        %v1090 = vadd.s32 %v1086, %v1088
        %v1091 = vadd.s32 %v1090, %v1080
        %v1092 = vadd.s32 %v1091, %v1082
        %v1093 = vmul.u32 %v1048, %v1039
        %v1094 = vadd.s32 %v1070, %v1089
        %vm1095 = vc.u32 %v1070, %v1089
        %v1096 = vadd.s32 %v1092, 1
        %v1097 = vsel %vm1095, %v1096, %v1092
        %v1098 = vadd.s32 %v1093, %v1097
        %v1099 = vadd.s32 %v1098, 536870912
        %v1100 = vshrl.u32 %v1099, 30
        %v1101 = vshll.u32 %v1100, 30
        %v1102 = vsub.s32 %v1098, %v1101
        %vm1103 = vcmp.lt.s32.totalorder %v1102, 0
        %v1104 = vsub.s32 0, %v1102
        %v1105 = vsel %vm1103, %v1104, %v1102
        %v1106 = vclz %v1105
        %v1107 = vsub.s32 %v1106, 2
        %vm1108 = vcmp.gt.s32.totalorder 0, %v1107
        %v1109 = vsel %vm1108, 0, %v1107
        %v1110 = vsub.s32 32, %v1109
        %v1111 = vshll.u32 %v1102, %v1109
        %v1112 = vshrl.u32 %v1094, %v1110
        %v1113 = vor.u32 %v1111, %v1112
        %v1114 = vsub.s32 4294967266, %v1109
        %v1115 = vadd.s32 %v1114, 127
        %v1116 = vshll.u32 %v1115, 23
        %v1117 = vor.u32 4788187, %v1116
        %v1118 = vand.u32 2147483647, %v1117
        %v1120 = vcvt.s32.f32 %v1113
        %v1121 = vmul.f32 %v1120, %v1118
        %v1122 = vxor.u32 %v1121, 2147483648
        %v1123 = vsel %vm1002, %v1122, %v1121
        %v1124 = vsub.s32 4, %v1100
        %v1125 = vsel %vm1002, %v1124, %v1100
        %v1126 = vsel %vm1001, %v249, %v1123
        %v1127 = vsel %vm1001, 0, %v1125
        %v1128 = vmul.f32 %v1126, %v1126
        %v1129 = vmul.f32 %v1128, -0.001358992
        %v1130 = vadd.f32 %v1129, 0.041655596
        %v1131 = vmul.f32 %v1128, %v1130
        %v1132 = vadd.f32 %v1131, -0.4999988
        %v1133 = vmul.f32 %v1128, %v1132
        %v1134 = vadd.f32 1.0, %v1133
        %v1135 = vmul.f32 %v1126, %v1126
        %v1136 = vmul.f32 %v1135, -0.00019511016
        %v1137 = vadd.f32 %v1136, 0.008332121
        %v1138 = vmul.f32 %v1135, %v1137
        %v1139 = vadd.f32 %v1138, -0.16666654
        %v1140 = vmul.f32 %v1135, %v1139
        %v1141 = vadd.f32 %v1140, 1.0
        %v1142 = vmul.f32 %v1141, %v1126
        %vm1143 = vweird.f32 %v249
        %v1144 = vadd.s32 %v1127, 3
        %v1145 = vand.u32 %v1144, 3
        %vm1146 = vcmp.lt.s32.totalorder %v1145, 2
        %vm1147 = vcmp.eq.s32.totalorder %v1145, 0
        %v1148 = vxor.u32 %v1142, 2147483648
        %v1149 = vsel %vm1147, %v1134, %v1148
        %vm1150 = vcmp.eq.s32.totalorder %v1145, 2
        %v1151 = vxor.u32 %v1134, 2147483648
        %v1152 = vsel %vm1150, %v1151, %v1142
        %v1153 = vsel %vm1146, %v1149, %v1152
        %v1154 = vsel %vm1143, nan, %v1153
        %v1155 = vand.u32 2147483647, %v250
        %vm1156 = vcmp.le.f32.partialorder %v1155, 0.7853982
        %vm1157 = vcmp.lt.s32.totalorder %v250, 0
        %v1158 = vand.u32 %v250, 2139095040
        %v1159 = vshrl.u32 %v1158, 23
        %v1160 = vsub.s32 %v1159, 127
        %v1161 = vand.u32 2147483647, %v250
        %v1162 = vand.u32 %v1161, 8388607
        %v1163 = vor.u32 %v1162, 8388608
        %v1164 = vsub.s32 0, %v1163
        %v1165 = vadd.s32 %v1160, 1
        %vm1166 = vcmp.gt.s32.totalorder %v1165, 0
        %v1167 = vsel %vm1166, %v1165, 0
        %v1168 = vshrl.u32 %v1167, 5
        %v1169 = vand.u32 %v1167, 31
        %v1170 = vsub.s32 32, %v1169
        %v1171 = vshrl.u32 683565275, %v1170
        %v1172 = vshll.u32 683565275, %v1169
        %v1173 = vshrl.u32 2475754826, %v1170
        %v1174 = vor.u32 %v1172, %v1173
        %v1175 = vshll.u32 2475754826, %v1169
        %v1176 = vshrl.u32 2131351028, %v1170
        %v1177 = vor.u32 %v1175, %v1176
        %v1178 = vshll.u32 2131351028, %v1169
        %v1179 = vshrl.u32 2102212464, %v1170
        %v1180 = vor.u32 %v1178, %v1179
        %v1181 = vshll.u32 2102212464, %v1169
        %v1182 = vshrl.u32 920167782, %v1170
        %v1183 = vor.u32 %v1181, %v1182
        %v1184 = vshll.u32 920167782, %v1169
        %v1185 = vshrl.u32 1326507024, %v1170
        %v1186 = vor.u32 %v1184, %v1185
        %vm1187 = vcmp.lt.s32.totalorder %v1168, 1
        %vm1188 = vcmp.lt.s32.totalorder %v1168, 2
        %vm1189 = vcmp.lt.s32.totalorder %v1168, 3
        %vm1190 = vcmp.lt.s32.totalorder %v1168, 4
        %v1191 = vsel %vm1187, %v1171, %v1174
        %v1192 = vsel %vm1190, %v1180, 2102212464
        %v1193 = vsel %vm1189, %v1177, %v1192
        %v1194 = vsel %vm1188, %v1191, %v1193
        %v1195 = vsel %vm1187, %v1174, %v1177
        %v1196 = vsel %vm1190, %v1183, 920167782
        %v1197 = vsel %vm1189, %v1180, %v1196
        %v1198 = vsel %vm1188, %v1195, %v1197
        %v1199 = vsel %vm1187, %v1177, %v1180
        %v1200 = vsel %vm1190, %v1186, 1326507024
        %v1201 = vsel %vm1189, %v1183, %v1200
        %v1202 = vsel %vm1188, %v1199, %v1201
        %v1203 = vshll.u32 %v1163, 8
        %v1204 = vand.u32 %v1203, 65535
        %v1205 = vshrl.u32 %v1203, 16
        %v1206 = vand.u32 %v1202, 65535
        %v1207 = vshrl.u32 %v1202, 16
        %v1208 = vmul.u32 %v1204, %v1206
        %v1209 = vmul.u32 %v1204, %v1207
        %v1210 = vmul.u32 %v1205, %v1206
        %v1211 = vmul.u32 %v1205, %v1207
        %v1212 = vshll.u32 %v1209, 16
        %v1213 = vshrl.u32 %v1209, 16
        %v1214 = vshll.u32 %v1210, 16
        %v1215 = vshrl.u32 %v1210, 16
        %vm1216 = vc.u32 %v1208, %v1212
        %v1217 = vsel %vm1216, 1, 0
        %v1218 = vadd.s32 %v1208, %v1212
        %v1219 = vadd.s32 %v1211, %v1217
        %vm1220 = vc.u32 %v1218, %v1214
        %v1221 = vsel %vm1220, 1, 0
        %v1222 = vadd.s32 %v1218, %v1214
        %v1223 = vadd.s32 %v1219, %v1221
        %v1224 = vadd.s32 %v1223, %v1213
        %v1225 = vadd.s32 %v1224, %v1215
        %v1226 = vand.u32 %v1203, 65535
        %v1227 = vshrl.u32 %v1203, 16
        %v1228 = vand.u32 %v1198, 65535
        %v1229 = vshrl.u32 %v1198, 16
        %v1230 = vmul.u32 %v1226, %v1228
        %v1231 = vmul.u32 %v1226, %v1229
        %v1232 = vmul.u32 %v1227, %v1228
        %v1233 = vmul.u32 %v1227, %v1229
        %v1234 = vshll.u32 %v1231, 16
        %v1235 = vshrl.u32 %v1231, 16
        %v1236 = vshll.u32 %v1232, 16
        %v1237 = vshrl.u32 %v1232, 16
        %vm1238 = vc.u32 %v1230, %v1234
        %v1239 = vsel %vm1238, 1, 0
        %v1240 = vadd.s32 %v1230, %v1234
        %v1241 = vadd.s32 %v1233, %v1239
        %vm1242 = vc.u32 %v1240, %v1236
        %v1243 = vsel %vm1242, 1, 0
        %v1244 = vadd.s32 %v1240, %v1236
        %v1245 = vadd.s32 %v1241, %v1243
        %v1246 = vadd.s32 %v1245, %v1235
        %v1247 = vadd.s32 %v1246, %v1237
        %v1248 = vmul.u32 %v1203, %v1194
        %v1249 = vadd.s32 %v1225, %v1244
        %vm1250 = vc.u32 %v1225, %v1244
        %v1251 = vadd.s32 %v1247, 1
        %v1252 = vsel %vm1250, %v1251, %v1247
        %v1253 = vadd.s32 %v1248, %v1252
        %v1254 = vadd.s32 %v1253, 536870912
        %v1255 = vshrl.u32 %v1254, 30
        %v1256 = vshll.u32 %v1255, 30
        %v1257 = vsub.s32 %v1253, %v1256
        %vm1258 = vcmp.lt.s32.totalorder %v1257, 0
        %v1259 = vsub.s32 0, %v1257
        %v1260 = vsel %vm1258, %v1259, %v1257
        %v1261 = vclz %v1260
        %v1262 = vsub.s32 %v1261, 2
        %vm1263 = vcmp.gt.s32.totalorder 0, %v1262
        %v1264 = vsel %vm1263, 0, %v1262
        %v1265 = vsub.s32 32, %v1264
        %v1266 = vshll.u32 %v1257, %v1264
        %v1267 = vshrl.u32 %v1249, %v1265
        %v1268 = vor.u32 %v1266, %v1267
        %v1269 = vsub.s32 4294967266, %v1264
        %v1270 = vadd.s32 %v1269, 127
        %v1271 = vshll.u32 %v1270, 23
        %v1272 = vor.u32 4788187, %v1271
        %v1273 = vand.u32 2147483647, %v1272
        %v1275 = vcvt.s32.f32 %v1268
        %v1276 = vmul.f32 %v1275, %v1273
        %v1277 = vxor.u32 %v1276, 2147483648
        %v1278 = vsel %vm1157, %v1277, %v1276
        %v1279 = vsub.s32 4, %v1255
        %v1280 = vsel %vm1157, %v1279, %v1255
        %v1281 = vsel %vm1156, %v250, %v1278
        %v1282 = vsel %vm1156, 0, %v1280
        %v1283 = vmul.f32 %v1281, %v1281
        %v1284 = vmul.f32 %v1283, -0.001358992
        %v1285 = vadd.f32 %v1284, 0.041655596
        %v1286 = vmul.f32 %v1283, %v1285
        %v1287 = vadd.f32 %v1286, -0.4999988
        %v1288 = vmul.f32 %v1283, %v1287
        %v1289 = vadd.f32 1.0, %v1288
        %v1290 = vmul.f32 %v1281, %v1281
        %v1291 = vmul.f32 %v1290, -0.00019511016
        %v1292 = vadd.f32 %v1291, 0.008332121
        %v1293 = vmul.f32 %v1290, %v1292
        %v1294 = vadd.f32 %v1293, -0.16666654
        %v1295 = vmul.f32 %v1290, %v1294
        %v1296 = vadd.f32 %v1295, 1.0
        %v1297 = vmul.f32 %v1296, %v1281
        %vm1298 = vweird.f32 %v250
        %v1299 = vadd.s32 %v1282, 3
        %v1300 = vand.u32 %v1299, 3
        %vm1301 = vcmp.lt.s32.totalorder %v1300, 2
        %vm1302 = vcmp.eq.s32.totalorder %v1300, 0
        %v1303 = vxor.u32 %v1297, 2147483648
        %v1304 = vsel %vm1302, %v1289, %v1303
        %vm1305 = vcmp.eq.s32.totalorder %v1300, 2
        %v1306 = vxor.u32 %v1289, 2147483648
        %v1307 = vsel %vm1305, %v1306, %v1297
        %v1308 = vsel %vm1301, %v1304, %v1307
        %v1309 = vsel %vm1298, nan, %v1308
        %v1310 = vand.u32 2147483647, %v251
        %vm1311 = vcmp.le.f32.partialorder %v1310, 0.7853982
        %vm1312 = vcmp.lt.s32.totalorder %v251, 0
        %v1313 = vand.u32 %v251, 2139095040
        %v1314 = vshrl.u32 %v1313, 23
        %v1315 = vsub.s32 %v1314, 127
        %v1316 = vand.u32 2147483647, %v251
        %v1317 = vand.u32 %v1316, 8388607
        %v1318 = vor.u32 %v1317, 8388608
        %v1319 = vsub.s32 0, %v1318
        %v1320 = vadd.s32 %v1315, 1
        %vm1321 = vcmp.gt.s32.totalorder %v1320, 0
        %v1322 = vsel %vm1321, %v1320, 0
        %v1323 = vshrl.u32 %v1322, 5
        %v1324 = vand.u32 %v1322, 31
        %v1325 = vsub.s32 32, %v1324
        %v1326 = vshrl.u32 683565275, %v1325
        %v1327 = vshll.u32 683565275, %v1324
        %v1328 = vshrl.u32 2475754826, %v1325
        %v1329 = vor.u32 %v1327, %v1328
        %v1330 = vshll.u32 2475754826, %v1324
        %v1331 = vshrl.u32 2131351028, %v1325
        %v1332 = vor.u32 %v1330, %v1331
        %v1333 = vshll.u32 2131351028, %v1324
        %v1334 = vshrl.u32 2102212464, %v1325
        %v1335 = vor.u32 %v1333, %v1334
        %v1336 = vshll.u32 2102212464, %v1324
        %v1337 = vshrl.u32 920167782, %v1325
        %v1338 = vor.u32 %v1336, %v1337
        %v1339 = vshll.u32 920167782, %v1324
        %v1340 = vshrl.u32 1326507024, %v1325
        %v1341 = vor.u32 %v1339, %v1340
        %vm1342 = vcmp.lt.s32.totalorder %v1323, 1
        %vm1343 = vcmp.lt.s32.totalorder %v1323, 2
        %vm1344 = vcmp.lt.s32.totalorder %v1323, 3
        %vm1345 = vcmp.lt.s32.totalorder %v1323, 4
        %v1346 = vsel %vm1342, %v1326, %v1329
        %v1347 = vsel %vm1345, %v1335, 2102212464
        %v1348 = vsel %vm1344, %v1332, %v1347
        %v1349 = vsel %vm1343, %v1346, %v1348
        %v1350 = vsel %vm1342, %v1329, %v1332
        %v1351 = vsel %vm1345, %v1338, 920167782
        %v1352 = vsel %vm1344, %v1335, %v1351
        %v1353 = vsel %vm1343, %v1350, %v1352
        %v1354 = vsel %vm1342, %v1332, %v1335
        %v1355 = vsel %vm1345, %v1341, 1326507024
        %v1356 = vsel %vm1344, %v1338, %v1355
        %v1357 = vsel %vm1343, %v1354, %v1356
        %v1358 = vshll.u32 %v1318, 8
        %v1359 = vand.u32 %v1358, 65535
        %v1360 = vshrl.u32 %v1358, 16
        %v1361 = vand.u32 %v1357, 65535
        %v1362 = vshrl.u32 %v1357, 16
        %v1363 = vmul.u32 %v1359, %v1361
        %v1364 = vmul.u32 %v1359, %v1362
        %v1365 = vmul.u32 %v1360, %v1361
        %v1366 = vmul.u32 %v1360, %v1362
        %v1367 = vshll.u32 %v1364, 16
        %v1368 = vshrl.u32 %v1364, 16
        %v1369 = vshll.u32 %v1365, 16
        %v1370 = vshrl.u32 %v1365, 16
        %vm1371 = vc.u32 %v1363, %v1367
        %v1372 = vsel %vm1371, 1, 0
        %v1373 = vadd.s32 %v1363, %v1367
        %v1374 = vadd.s32 %v1366, %v1372
        %vm1375 = vc.u32 %v1373, %v1369
        %v1376 = vsel %vm1375, 1, 0
        %v1377 = vadd.s32 %v1373, %v1369
        %v1378 = vadd.s32 %v1374, %v1376
        %v1379 = vadd.s32 %v1378, %v1368
        %v1380 = vadd.s32 %v1379, %v1370
        %v1381 = vand.u32 %v1358, 65535
        %v1382 = vshrl.u32 %v1358, 16
        %v1383 = vand.u32 %v1353, 65535
        %v1384 = vshrl.u32 %v1353, 16
        %v1385 = vmul.u32 %v1381, %v1383
        %v1386 = vmul.u32 %v1381, %v1384
        %v1387 = vmul.u32 %v1382, %v1383
        %v1388 = vmul.u32 %v1382, %v1384
        %v1389 = vshll.u32 %v1386, 16
        %v1390 = vshrl.u32 %v1386, 16
        %v1391 = vshll.u32 %v1387, 16
        %v1392 = vshrl.u32 %v1387, 16
        %vm1393 = vc.u32 %v1385, %v1389
        %v1394 = vsel %vm1393, 1, 0
        %v1395 = vadd.s32 %v1385, %v1389
        %v1396 = vadd.s32 %v1388, %v1394
        %vm1397 = vc.u32 %v1395, %v1391
        %v1398 = vsel %vm1397, 1, 0
        %v1399 = vadd.s32 %v1395, %v1391
        %v1400 = vadd.s32 %v1396, %v1398
        %v1401 = vadd.s32 %v1400, %v1390
        %v1402 = vadd.s32 %v1401, %v1392
        %v1403 = vmul.u32 %v1358, %v1349
        %v1404 = vadd.s32 %v1380, %v1399
        %vm1405 = vc.u32 %v1380, %v1399
        %v1406 = vadd.s32 %v1402, 1
        %v1407 = vsel %vm1405, %v1406, %v1402
        %v1408 = vadd.s32 %v1403, %v1407
        %v1409 = vadd.s32 %v1408, 536870912
        %v1410 = vshrl.u32 %v1409, 30
        %v1411 = vshll.u32 %v1410, 30
        %v1412 = vsub.s32 %v1408, %v1411
        %vm1413 = vcmp.lt.s32.totalorder %v1412, 0
        %v1414 = vsub.s32 0, %v1412
        %v1415 = vsel %vm1413, %v1414, %v1412
        %v1416 = vclz %v1415
        %v1417 = vsub.s32 %v1416, 2
        %vm1418 = vcmp.gt.s32.totalorder 0, %v1417
        %v1419 = vsel %vm1418, 0, %v1417
        %v1420 = vsub.s32 32, %v1419
        %v1421 = vshll.u32 %v1412, %v1419
        %v1422 = vshrl.u32 %v1404, %v1420
        %v1423 = vor.u32 %v1421, %v1422
        %v1424 = vsub.s32 4294967266, %v1419
        %v1425 = vadd.s32 %v1424, 127
        %v1426 = vshll.u32 %v1425, 23
        %v1427 = vor.u32 4788187, %v1426
        %v1428 = vand.u32 2147483647, %v1427
        %v1430 = vcvt.s32.f32 %v1423
        %v1431 = vmul.f32 %v1430, %v1428
        %v1432 = vxor.u32 %v1431, 2147483648
        %v1433 = vsel %vm1312, %v1432, %v1431
        %v1434 = vsub.s32 4, %v1410
        %v1435 = vsel %vm1312, %v1434, %v1410
        %v1436 = vsel %vm1311, %v251, %v1433
        %v1437 = vsel %vm1311, 0, %v1435
        %v1438 = vmul.f32 %v1436, %v1436
        %v1439 = vmul.f32 %v1438, -0.001358992
        %v1440 = vadd.f32 %v1439, 0.041655596
        %v1441 = vmul.f32 %v1438, %v1440
        %v1442 = vadd.f32 %v1441, -0.4999988
        %v1443 = vmul.f32 %v1438, %v1442
        %v1444 = vadd.f32 1.0, %v1443
        %v1445 = vmul.f32 %v1436, %v1436
        %v1446 = vmul.f32 %v1445, -0.00019511016
        %v1447 = vadd.f32 %v1446, 0.008332121
        %v1448 = vmul.f32 %v1445, %v1447
        %v1449 = vadd.f32 %v1448, -0.16666654
        %v1450 = vmul.f32 %v1445, %v1449
        %v1451 = vadd.f32 %v1450, 1.0
        %v1452 = vmul.f32 %v1451, %v1436
        %vm1453 = vweird.f32 %v251
        %v1454 = vadd.s32 %v1437, 3
        %v1455 = vand.u32 %v1454, 3
        %vm1456 = vcmp.lt.s32.totalorder %v1455, 2
        %vm1457 = vcmp.eq.s32.totalorder %v1455, 0
        %v1458 = vxor.u32 %v1452, 2147483648
        %v1459 = vsel %vm1457, %v1444, %v1458
        %vm1460 = vcmp.eq.s32.totalorder %v1455, 2
        %v1461 = vxor.u32 %v1444, 2147483648
        %v1462 = vsel %vm1460, %v1461, %v1452
        %v1463 = vsel %vm1456, %v1459, %v1462
        %v1464 = vsel %vm1453, nan, %v1463
        %v1465 = vand.u32 2147483647, %v252
        %vm1466 = vcmp.le.f32.partialorder %v1465, 0.7853982
        %vm1467 = vcmp.lt.s32.totalorder %v252, 0
        %v1468 = vand.u32 %v252, 2139095040
        %v1469 = vshrl.u32 %v1468, 23
        %v1470 = vsub.s32 %v1469, 127
        %v1471 = vand.u32 2147483647, %v252
        %v1472 = vand.u32 %v1471, 8388607
        %v1473 = vor.u32 %v1472, 8388608
        %v1474 = vsub.s32 0, %v1473
        %v1475 = vadd.s32 %v1470, 1
        %vm1476 = vcmp.gt.s32.totalorder %v1475, 0
        %v1477 = vsel %vm1476, %v1475, 0
        %v1478 = vshrl.u32 %v1477, 5
        %v1479 = vand.u32 %v1477, 31
        %v1480 = vsub.s32 32, %v1479
        %v1481 = vshrl.u32 683565275, %v1480
        %v1482 = vshll.u32 683565275, %v1479
        %v1483 = vshrl.u32 2475754826, %v1480
        %v1484 = vor.u32 %v1482, %v1483
        %v1485 = vshll.u32 2475754826, %v1479
        %v1486 = vshrl.u32 2131351028, %v1480
        %v1487 = vor.u32 %v1485, %v1486
        %v1488 = vshll.u32 2131351028, %v1479
        %v1489 = vshrl.u32 2102212464, %v1480
        %v1490 = vor.u32 %v1488, %v1489
        %v1491 = vshll.u32 2102212464, %v1479
        %v1492 = vshrl.u32 920167782, %v1480
        %v1493 = vor.u32 %v1491, %v1492
        %v1494 = vshll.u32 920167782, %v1479
        %v1495 = vshrl.u32 1326507024, %v1480
        %v1496 = vor.u32 %v1494, %v1495
        %vm1497 = vcmp.lt.s32.totalorder %v1478, 1
        %vm1498 = vcmp.lt.s32.totalorder %v1478, 2
        %vm1499 = vcmp.lt.s32.totalorder %v1478, 3
        %vm1500 = vcmp.lt.s32.totalorder %v1478, 4
        %v1501 = vsel %vm1497, %v1481, %v1484
        %v1502 = vsel %vm1500, %v1490, 2102212464
        %v1503 = vsel %vm1499, %v1487, %v1502
        %v1504 = vsel %vm1498, %v1501, %v1503
        %v1505 = vsel %vm1497, %v1484, %v1487
        %v1506 = vsel %vm1500, %v1493, 920167782
        %v1507 = vsel %vm1499, %v1490, %v1506
        %v1508 = vsel %vm1498, %v1505, %v1507
        %v1509 = vsel %vm1497, %v1487, %v1490
        %v1510 = vsel %vm1500, %v1496, 1326507024
        %v1511 = vsel %vm1499, %v1493, %v1510
        %v1512 = vsel %vm1498, %v1509, %v1511
        %v1513 = vshll.u32 %v1473, 8
        %v1514 = vand.u32 %v1513, 65535
        %v1515 = vshrl.u32 %v1513, 16
        %v1516 = vand.u32 %v1512, 65535
        %v1517 = vshrl.u32 %v1512, 16
        %v1518 = vmul.u32 %v1514, %v1516
        %v1519 = vmul.u32 %v1514, %v1517
        %v1520 = vmul.u32 %v1515, %v1516
        %v1521 = vmul.u32 %v1515, %v1517
        %v1522 = vshll.u32 %v1519, 16
        %v1523 = vshrl.u32 %v1519, 16
        %v1524 = vshll.u32 %v1520, 16
        %v1525 = vshrl.u32 %v1520, 16
        %vm1526 = vc.u32 %v1518, %v1522
        %v1527 = vsel %vm1526, 1, 0
        %v1528 = vadd.s32 %v1518, %v1522
        %v1529 = vadd.s32 %v1521, %v1527
        %vm1530 = vc.u32 %v1528, %v1524
        %v1531 = vsel %vm1530, 1, 0
        %v1532 = vadd.s32 %v1528, %v1524
        %v1533 = vadd.s32 %v1529, %v1531
        %v1534 = vadd.s32 %v1533, %v1523
        %v1535 = vadd.s32 %v1534, %v1525
        %v1536 = vand.u32 %v1513, 65535
        %v1537 = vshrl.u32 %v1513, 16
        %v1538 = vand.u32 %v1508, 65535
        %v1539 = vshrl.u32 %v1508, 16
        %v1540 = vmul.u32 %v1536, %v1538
        %v1541 = vmul.u32 %v1536, %v1539
        %v1542 = vmul.u32 %v1537, %v1538
        %v1543 = vmul.u32 %v1537, %v1539
        %v1544 = vshll.u32 %v1541, 16
        %v1545 = vshrl.u32 %v1541, 16
        %v1546 = vshll.u32 %v1542, 16
        %v1547 = vshrl.u32 %v1542, 16
        %vm1548 = vc.u32 %v1540, %v1544
        %v1549 = vsel %vm1548, 1, 0
        %v1550 = vadd.s32 %v1540, %v1544
        %v1551 = vadd.s32 %v1543, %v1549
        %vm1552 = vc.u32 %v1550, %v1546
        %v1553 = vsel %vm1552, 1, 0
        %v1554 = vadd.s32 %v1550, %v1546
        %v1555 = vadd.s32 %v1551, %v1553
        %v1556 = vadd.s32 %v1555, %v1545
        %v1557 = vadd.s32 %v1556, %v1547
        %v1558 = vmul.u32 %v1513, %v1504
        %v1559 = vadd.s32 %v1535, %v1554
        %vm1560 = vc.u32 %v1535, %v1554
        %v1561 = vadd.s32 %v1557, 1
        %v1562 = vsel %vm1560, %v1561, %v1557
        %v1563 = vadd.s32 %v1558, %v1562
        %v1564 = vadd.s32 %v1563, 536870912
        %v1565 = vshrl.u32 %v1564, 30
        %v1566 = vshll.u32 %v1565, 30
        %v1567 = vsub.s32 %v1563, %v1566
        %vm1568 = vcmp.lt.s32.totalorder %v1567, 0
        %v1569 = vsub.s32 0, %v1567
        %v1570 = vsel %vm1568, %v1569, %v1567
        %v1571 = vclz %v1570
        %v1572 = vsub.s32 %v1571, 2
        %vm1573 = vcmp.gt.s32.totalorder 0, %v1572
        %v1574 = vsel %vm1573, 0, %v1572
        %v1575 = vsub.s32 32, %v1574
        %v1576 = vshll.u32 %v1567, %v1574
        %v1577 = vshrl.u32 %v1559, %v1575
        %v1578 = vor.u32 %v1576, %v1577
        %v1579 = vsub.s32 4294967266, %v1574
        %v1580 = vadd.s32 %v1579, 127
        %v1581 = vshll.u32 %v1580, 23
        %v1582 = vor.u32 4788187, %v1581
        %v1583 = vand.u32 2147483647, %v1582
        %v1585 = vcvt.s32.f32 %v1578
        %v1586 = vmul.f32 %v1585, %v1583
        %v1587 = vxor.u32 %v1586, 2147483648
        %v1588 = vsel %vm1467, %v1587, %v1586
        %v1589 = vsub.s32 4, %v1565
        %v1590 = vsel %vm1467, %v1589, %v1565
        %v1591 = vsel %vm1466, %v252, %v1588
        %v1592 = vsel %vm1466, 0, %v1590
        %v1593 = vmul.f32 %v1591, %v1591
        %v1594 = vmul.f32 %v1593, -0.001358992
        %v1595 = vadd.f32 %v1594, 0.041655596
        %v1596 = vmul.f32 %v1593, %v1595
        %v1597 = vadd.f32 %v1596, -0.4999988
        %v1598 = vmul.f32 %v1593, %v1597
        %v1599 = vadd.f32 1.0, %v1598
        %v1600 = vmul.f32 %v1591, %v1591
        %v1601 = vmul.f32 %v1600, -0.00019511016
        %v1602 = vadd.f32 %v1601, 0.008332121
        %v1603 = vmul.f32 %v1600, %v1602
        %v1604 = vadd.f32 %v1603, -0.16666654
        %v1605 = vmul.f32 %v1600, %v1604
        %v1606 = vadd.f32 %v1605, 1.0
        %v1607 = vmul.f32 %v1606, %v1591
        %vm1608 = vweird.f32 %v252
        %v1609 = vadd.s32 %v1592, 3
        %v1610 = vand.u32 %v1609, 3
        %vm1611 = vcmp.lt.s32.totalorder %v1610, 2
        %vm1612 = vcmp.eq.s32.totalorder %v1610, 0
        %v1613 = vxor.u32 %v1607, 2147483648
        %v1614 = vsel %vm1612, %v1599, %v1613
        %vm1615 = vcmp.eq.s32.totalorder %v1610, 2
        %v1616 = vxor.u32 %v1599, 2147483648
        %v1617 = vsel %vm1615, %v1616, %v1607
        %v1618 = vsel %vm1611, %v1614, %v1617
        %v1619 = vsel %vm1608, nan, %v1618
        %v1620 = vand.u32 2147483647, %v253
        %vm1621 = vcmp.le.f32.partialorder %v1620, 0.7853982
        %vm1622 = vcmp.lt.s32.totalorder %v253, 0
        %v1623 = vand.u32 %v253, 2139095040
        %v1624 = vshrl.u32 %v1623, 23
        %v1625 = vsub.s32 %v1624, 127
        %v1626 = vand.u32 2147483647, %v253
        %v1627 = vand.u32 %v1626, 8388607
        %v1628 = vor.u32 %v1627, 8388608
        %v1629 = vsub.s32 0, %v1628
        %v1630 = vadd.s32 %v1625, 1
        %vm1631 = vcmp.gt.s32.totalorder %v1630, 0
        %v1632 = vsel %vm1631, %v1630, 0
        %v1633 = vshrl.u32 %v1632, 5
        %v1634 = vand.u32 %v1632, 31
        %v1635 = vsub.s32 32, %v1634
        %v1636 = vshrl.u32 683565275, %v1635
        %v1637 = vshll.u32 683565275, %v1634
        %v1638 = vshrl.u32 2475754826, %v1635
        %v1639 = vor.u32 %v1637, %v1638
        %v1640 = vshll.u32 2475754826, %v1634
        %v1641 = vshrl.u32 2131351028, %v1635
        %v1642 = vor.u32 %v1640, %v1641
        %v1643 = vshll.u32 2131351028, %v1634
        %v1644 = vshrl.u32 2102212464, %v1635
        %v1645 = vor.u32 %v1643, %v1644
        %v1646 = vshll.u32 2102212464, %v1634
        %v1647 = vshrl.u32 920167782, %v1635
        %v1648 = vor.u32 %v1646, %v1647
        %v1649 = vshll.u32 920167782, %v1634
        %v1650 = vshrl.u32 1326507024, %v1635
        %v1651 = vor.u32 %v1649, %v1650
        %vm1652 = vcmp.lt.s32.totalorder %v1633, 1
        %vm1653 = vcmp.lt.s32.totalorder %v1633, 2
        %vm1654 = vcmp.lt.s32.totalorder %v1633, 3
        %vm1655 = vcmp.lt.s32.totalorder %v1633, 4
        %v1656 = vsel %vm1652, %v1636, %v1639
        %v1657 = vsel %vm1655, %v1645, 2102212464
        %v1658 = vsel %vm1654, %v1642, %v1657
        %v1659 = vsel %vm1653, %v1656, %v1658
        %v1660 = vsel %vm1652, %v1639, %v1642
        %v1661 = vsel %vm1655, %v1648, 920167782
        %v1662 = vsel %vm1654, %v1645, %v1661
        %v1663 = vsel %vm1653, %v1660, %v1662
        %v1664 = vsel %vm1652, %v1642, %v1645
        %v1665 = vsel %vm1655, %v1651, 1326507024
        %v1666 = vsel %vm1654, %v1648, %v1665
        %v1667 = vsel %vm1653, %v1664, %v1666
        %v1668 = vshll.u32 %v1628, 8
        %v1669 = vand.u32 %v1668, 65535
        %v1670 = vshrl.u32 %v1668, 16
        %v1671 = vand.u32 %v1667, 65535
        %v1672 = vshrl.u32 %v1667, 16
        %v1673 = vmul.u32 %v1669, %v1671
        %v1674 = vmul.u32 %v1669, %v1672
        %v1675 = vmul.u32 %v1670, %v1671
        %v1676 = vmul.u32 %v1670, %v1672
        %v1677 = vshll.u32 %v1674, 16
        %v1678 = vshrl.u32 %v1674, 16
        %v1679 = vshll.u32 %v1675, 16
        %v1680 = vshrl.u32 %v1675, 16
        %vm1681 = vc.u32 %v1673, %v1677
        %v1682 = vsel %vm1681, 1, 0
        %v1683 = vadd.s32 %v1673, %v1677
        %v1684 = vadd.s32 %v1676, %v1682
        %vm1685 = vc.u32 %v1683, %v1679
        %v1686 = vsel %vm1685, 1, 0
        %v1687 = vadd.s32 %v1683, %v1679
        %v1688 = vadd.s32 %v1684, %v1686
        %v1689 = vadd.s32 %v1688, %v1678
        %v1690 = vadd.s32 %v1689, %v1680
        %v1691 = vand.u32 %v1668, 65535
        %v1692 = vshrl.u32 %v1668, 16
        %v1693 = vand.u32 %v1663, 65535
        %v1694 = vshrl.u32 %v1663, 16
        %v1695 = vmul.u32 %v1691, %v1693
        %v1696 = vmul.u32 %v1691, %v1694
        %v1697 = vmul.u32 %v1692, %v1693
        %v1698 = vmul.u32 %v1692, %v1694
        %v1699 = vshll.u32 %v1696, 16
        %v1700 = vshrl.u32 %v1696, 16
        %v1701 = vshll.u32 %v1697, 16
        %v1702 = vshrl.u32 %v1697, 16
        %vm1703 = vc.u32 %v1695, %v1699
        %v1704 = vsel %vm1703, 1, 0
        %v1705 = vadd.s32 %v1695, %v1699
        %v1706 = vadd.s32 %v1698, %v1704
        %vm1707 = vc.u32 %v1705, %v1701
        %v1708 = vsel %vm1707, 1, 0
        %v1709 = vadd.s32 %v1705, %v1701
        %v1710 = vadd.s32 %v1706, %v1708
        %v1711 = vadd.s32 %v1710, %v1700
        %v1712 = vadd.s32 %v1711, %v1702
        %v1713 = vmul.u32 %v1668, %v1659
        %v1714 = vadd.s32 %v1690, %v1709
        %vm1715 = vc.u32 %v1690, %v1709
        %v1716 = vadd.s32 %v1712, 1
        %v1717 = vsel %vm1715, %v1716, %v1712
        %v1718 = vadd.s32 %v1713, %v1717
        %v1719 = vadd.s32 %v1718, 536870912
        %v1720 = vshrl.u32 %v1719, 30
        %v1721 = vshll.u32 %v1720, 30
        %v1722 = vsub.s32 %v1718, %v1721
        %vm1723 = vcmp.lt.s32.totalorder %v1722, 0
        %v1724 = vsub.s32 0, %v1722
        %v1725 = vsel %vm1723, %v1724, %v1722
        %v1726 = vclz %v1725
        %v1727 = vsub.s32 %v1726, 2
        %vm1728 = vcmp.gt.s32.totalorder 0, %v1727
        %v1729 = vsel %vm1728, 0, %v1727
        %v1730 = vsub.s32 32, %v1729
        %v1731 = vshll.u32 %v1722, %v1729
        %v1732 = vshrl.u32 %v1714, %v1730
        %v1733 = vor.u32 %v1731, %v1732
        %v1734 = vsub.s32 4294967266, %v1729
        %v1735 = vadd.s32 %v1734, 127
        %v1736 = vshll.u32 %v1735, 23
        %v1737 = vor.u32 4788187, %v1736
        %v1738 = vand.u32 2147483647, %v1737
        %v1740 = vcvt.s32.f32 %v1733
        %v1741 = vmul.f32 %v1740, %v1738
        %v1742 = vxor.u32 %v1741, 2147483648
        %v1743 = vsel %vm1622, %v1742, %v1741
        %v1744 = vsub.s32 4, %v1720
        %v1745 = vsel %vm1622, %v1744, %v1720
        %v1746 = vsel %vm1621, %v253, %v1743
        %v1747 = vsel %vm1621, 0, %v1745
        %v1748 = vmul.f32 %v1746, %v1746
        %v1749 = vmul.f32 %v1748, -0.001358992
        %v1750 = vadd.f32 %v1749, 0.041655596
        %v1751 = vmul.f32 %v1748, %v1750
        %v1752 = vadd.f32 %v1751, -0.4999988
        %v1753 = vmul.f32 %v1748, %v1752
        %v1754 = vadd.f32 1.0, %v1753
        %v1755 = vmul.f32 %v1746, %v1746
        %v1756 = vmul.f32 %v1755, -0.00019511016
        %v1757 = vadd.f32 %v1756, 0.008332121
        %v1758 = vmul.f32 %v1755, %v1757
        %v1759 = vadd.f32 %v1758, -0.16666654
        %v1760 = vmul.f32 %v1755, %v1759
        %v1761 = vadd.f32 %v1760, 1.0
        %v1762 = vmul.f32 %v1761, %v1746
        %vm1763 = vweird.f32 %v253
        %v1764 = vadd.s32 %v1747, 3
        %v1765 = vand.u32 %v1764, 3
        %vm1766 = vcmp.lt.s32.totalorder %v1765, 2
        %vm1767 = vcmp.eq.s32.totalorder %v1765, 0
        %v1768 = vxor.u32 %v1762, 2147483648
        %v1769 = vsel %vm1767, %v1754, %v1768
        %vm1770 = vcmp.eq.s32.totalorder %v1765, 2
        %v1771 = vxor.u32 %v1754, 2147483648
        %v1772 = vsel %vm1770, %v1771, %v1762
        %v1773 = vsel %vm1766, %v1769, %v1772
        %v1774 = vsel %vm1763, nan, %v1773
        %v1775 = vand.u32 2147483647, %v254
        %vm1776 = vcmp.le.f32.partialorder %v1775, 0.7853982
        %vm1777 = vcmp.lt.s32.totalorder %v254, 0
        %v1778 = vand.u32 %v254, 2139095040
        %v1779 = vshrl.u32 %v1778, 23
        %v1780 = vsub.s32 %v1779, 127
        %v1781 = vand.u32 2147483647, %v254
        %v1782 = vand.u32 %v1781, 8388607
        %v1783 = vor.u32 %v1782, 8388608
        %v1784 = vsub.s32 0, %v1783
        %v1785 = vadd.s32 %v1780, 1
        %vm1786 = vcmp.gt.s32.totalorder %v1785, 0
        %v1787 = vsel %vm1786, %v1785, 0
        %v1788 = vshrl.u32 %v1787, 5
        %v1789 = vand.u32 %v1787, 31
        %v1790 = vsub.s32 32, %v1789
        %v1791 = vshrl.u32 683565275, %v1790
        %v1792 = vshll.u32 683565275, %v1789
        %v1793 = vshrl.u32 2475754826, %v1790
        %v1794 = vor.u32 %v1792, %v1793
        %v1795 = vshll.u32 2475754826, %v1789
        %v1796 = vshrl.u32 2131351028, %v1790
        %v1797 = vor.u32 %v1795, %v1796
        %v1798 = vshll.u32 2131351028, %v1789
        %v1799 = vshrl.u32 2102212464, %v1790
        %v1800 = vor.u32 %v1798, %v1799
        %v1801 = vshll.u32 2102212464, %v1789
        %v1802 = vshrl.u32 920167782, %v1790
        %v1803 = vor.u32 %v1801, %v1802
        %v1804 = vshll.u32 920167782, %v1789
        %v1805 = vshrl.u32 1326507024, %v1790
        %v1806 = vor.u32 %v1804, %v1805
        %vm1807 = vcmp.lt.s32.totalorder %v1788, 1
        %vm1808 = vcmp.lt.s32.totalorder %v1788, 2
        %vm1809 = vcmp.lt.s32.totalorder %v1788, 3
        %vm1810 = vcmp.lt.s32.totalorder %v1788, 4
        %v1811 = vsel %vm1807, %v1791, %v1794
        %v1812 = vsel %vm1810, %v1800, 2102212464
        %v1813 = vsel %vm1809, %v1797, %v1812
        %v1814 = vsel %vm1808, %v1811, %v1813
        %v1815 = vsel %vm1807, %v1794, %v1797
        %v1816 = vsel %vm1810, %v1803, 920167782
        %v1817 = vsel %vm1809, %v1800, %v1816
        %v1818 = vsel %vm1808, %v1815, %v1817
        %v1819 = vsel %vm1807, %v1797, %v1800
        %v1820 = vsel %vm1810, %v1806, 1326507024
        %v1821 = vsel %vm1809, %v1803, %v1820
        %v1822 = vsel %vm1808, %v1819, %v1821
        %v1823 = vshll.u32 %v1783, 8
        %v1824 = vand.u32 %v1823, 65535
        %v1825 = vshrl.u32 %v1823, 16
        %v1826 = vand.u32 %v1822, 65535
        %v1827 = vshrl.u32 %v1822, 16
        %v1828 = vmul.u32 %v1824, %v1826
        %v1829 = vmul.u32 %v1824, %v1827
        %v1830 = vmul.u32 %v1825, %v1826
        %v1831 = vmul.u32 %v1825, %v1827
        %v1832 = vshll.u32 %v1829, 16
        %v1833 = vshrl.u32 %v1829, 16
        %v1834 = vshll.u32 %v1830, 16
        %v1835 = vshrl.u32 %v1830, 16
        %vm1836 = vc.u32 %v1828, %v1832
        %v1837 = vsel %vm1836, 1, 0
        %v1838 = vadd.s32 %v1828, %v1832
        %v1839 = vadd.s32 %v1831, %v1837
        %vm1840 = vc.u32 %v1838, %v1834
        %v1841 = vsel %vm1840, 1, 0
        %v1842 = vadd.s32 %v1838, %v1834
        %v1843 = vadd.s32 %v1839, %v1841
        %v1844 = vadd.s32 %v1843, %v1833
        %v1845 = vadd.s32 %v1844, %v1835
        %v1846 = vand.u32 %v1823, 65535
        %v1847 = vshrl.u32 %v1823, 16
        %v1848 = vand.u32 %v1818, 65535
        %v1849 = vshrl.u32 %v1818, 16
        %v1850 = vmul.u32 %v1846, %v1848
        %v1851 = vmul.u32 %v1846, %v1849
        %v1852 = vmul.u32 %v1847, %v1848
        %v1853 = vmul.u32 %v1847, %v1849
        %v1854 = vshll.u32 %v1851, 16
        %v1855 = vshrl.u32 %v1851, 16
        %v1856 = vshll.u32 %v1852, 16
        %v1857 = vshrl.u32 %v1852, 16
        %vm1858 = vc.u32 %v1850, %v1854
        %v1859 = vsel %vm1858, 1, 0
        %v1860 = vadd.s32 %v1850, %v1854
        %v1861 = vadd.s32 %v1853, %v1859
        %vm1862 = vc.u32 %v1860, %v1856
        %v1863 = vsel %vm1862, 1, 0
        %v1864 = vadd.s32 %v1860, %v1856
        %v1865 = vadd.s32 %v1861, %v1863
        %v1866 = vadd.s32 %v1865, %v1855
        %v1867 = vadd.s32 %v1866, %v1857
        %v1868 = vmul.u32 %v1823, %v1814
        %v1869 = vadd.s32 %v1845, %v1864
        %vm1870 = vc.u32 %v1845, %v1864
        %v1871 = vadd.s32 %v1867, 1
        %v1872 = vsel %vm1870, %v1871, %v1867
        %v1873 = vadd.s32 %v1868, %v1872
        %v1874 = vadd.s32 %v1873, 536870912
        %v1875 = vshrl.u32 %v1874, 30
        %v1876 = vshll.u32 %v1875, 30
        %v1877 = vsub.s32 %v1873, %v1876
        %vm1878 = vcmp.lt.s32.totalorder %v1877, 0
        %v1879 = vsub.s32 0, %v1877
        %v1880 = vsel %vm1878, %v1879, %v1877
        %v1881 = vclz %v1880
        %v1882 = vsub.s32 %v1881, 2
        %vm1883 = vcmp.gt.s32.totalorder 0, %v1882
        %v1884 = vsel %vm1883, 0, %v1882
        %v1885 = vsub.s32 32, %v1884
        %v1886 = vshll.u32 %v1877, %v1884
        %v1887 = vshrl.u32 %v1869, %v1885
        %v1888 = vor.u32 %v1886, %v1887
        %v1889 = vsub.s32 4294967266, %v1884
        %v1890 = vadd.s32 %v1889, 127
        %v1891 = vshll.u32 %v1890, 23
        %v1892 = vor.u32 4788187, %v1891
        %v1893 = vand.u32 2147483647, %v1892
        %v1895 = vcvt.s32.f32 %v1888
        %v1896 = vmul.f32 %v1895, %v1893
        %v1897 = vxor.u32 %v1896, 2147483648
        %v1898 = vsel %vm1777, %v1897, %v1896
        %v1899 = vsub.s32 4, %v1875
        %v1900 = vsel %vm1777, %v1899, %v1875
        %v1901 = vsel %vm1776, %v254, %v1898
        %v1902 = vsel %vm1776, 0, %v1900
        %v1903 = vmul.f32 %v1901, %v1901
        %v1904 = vmul.f32 %v1903, -0.001358992
        %v1905 = vadd.f32 %v1904, 0.041655596
        %v1906 = vmul.f32 %v1903, %v1905
        %v1907 = vadd.f32 %v1906, -0.4999988
        %v1908 = vmul.f32 %v1903, %v1907
        %v1909 = vadd.f32 1.0, %v1908
        %v1910 = vmul.f32 %v1901, %v1901
        %v1911 = vmul.f32 %v1910, -0.00019511016
        %v1912 = vadd.f32 %v1911, 0.008332121
        %v1913 = vmul.f32 %v1910, %v1912
        %v1914 = vadd.f32 %v1913, -0.16666654
        %v1915 = vmul.f32 %v1910, %v1914
        %v1916 = vadd.f32 %v1915, 1.0
        %v1917 = vmul.f32 %v1916, %v1901
        %vm1918 = vweird.f32 %v254
        %v1919 = vadd.s32 %v1902, 3
        %v1920 = vand.u32 %v1919, 3
        %vm1921 = vcmp.lt.s32.totalorder %v1920, 2
        %vm1922 = vcmp.eq.s32.totalorder %v1920, 0
        %v1923 = vxor.u32 %v1917, 2147483648
        %v1924 = vsel %vm1922, %v1909, %v1923
        %vm1925 = vcmp.eq.s32.totalorder %v1920, 2
        %v1926 = vxor.u32 %v1909, 2147483648
        %v1927 = vsel %vm1925, %v1926, %v1917
        %v1928 = vsel %vm1921, %v1924, %v1927
        %v1929 = vsel %vm1918, nan, %v1928
        %v1930 = vand.u32 2147483647, %v245
        %vm1931 = vcmp.le.f32.partialorder %v1930, 0.7853982
        %vm1932 = vcmp.lt.s32.totalorder %v245, 0
        %v1933 = vand.u32 %v245, 2139095040
        %v1934 = vshrl.u32 %v1933, 23
        %v1935 = vsub.s32 %v1934, 127
        %v1936 = vand.u32 2147483647, %v245
        %v1937 = vand.u32 %v1936, 8388607
        %v1938 = vor.u32 %v1937, 8388608
        %v1939 = vsub.s32 0, %v1938
        %v1940 = vadd.s32 %v1935, 1
        %vm1941 = vcmp.gt.s32.totalorder %v1940, 0
        %v1942 = vsel %vm1941, %v1940, 0
        %v1943 = vshrl.u32 %v1942, 5
        %v1944 = vand.u32 %v1942, 31
        %v1945 = vsub.s32 32, %v1944
        %v1946 = vshrl.u32 683565275, %v1945
        %v1947 = vshll.u32 683565275, %v1944
        %v1948 = vshrl.u32 2475754826, %v1945
        %v1949 = vor.u32 %v1947, %v1948
        %v1950 = vshll.u32 2475754826, %v1944
        %v1951 = vshrl.u32 2131351028, %v1945
        %v1952 = vor.u32 %v1950, %v1951
        %v1953 = vshll.u32 2131351028, %v1944
        %v1954 = vshrl.u32 2102212464, %v1945
        %v1955 = vor.u32 %v1953, %v1954
        %v1956 = vshll.u32 2102212464, %v1944
        %v1957 = vshrl.u32 920167782, %v1945
        %v1958 = vor.u32 %v1956, %v1957
        %v1959 = vshll.u32 920167782, %v1944
        %v1960 = vshrl.u32 1326507024, %v1945
        %v1961 = vor.u32 %v1959, %v1960
        %vm1962 = vcmp.lt.s32.totalorder %v1943, 1
        %vm1963 = vcmp.lt.s32.totalorder %v1943, 2
        %vm1964 = vcmp.lt.s32.totalorder %v1943, 3
        %vm1965 = vcmp.lt.s32.totalorder %v1943, 4
        %v1966 = vsel %vm1962, %v1946, %v1949
        %v1967 = vsel %vm1965, %v1955, 2102212464
        %v1968 = vsel %vm1964, %v1952, %v1967
        %v1969 = vsel %vm1963, %v1966, %v1968
        %v1970 = vsel %vm1962, %v1949, %v1952
        %v1971 = vsel %vm1965, %v1958, 920167782
        %v1972 = vsel %vm1964, %v1955, %v1971
        %v1973 = vsel %vm1963, %v1970, %v1972
        %v1974 = vsel %vm1962, %v1952, %v1955
        %v1975 = vsel %vm1965, %v1961, 1326507024
        %v1976 = vsel %vm1964, %v1958, %v1975
        %v1977 = vsel %vm1963, %v1974, %v1976
        %v1978 = vshll.u32 %v1938, 8
        %v1979 = vand.u32 %v1978, 65535
        %v1980 = vshrl.u32 %v1978, 16
        %v1981 = vand.u32 %v1977, 65535
        %v1982 = vshrl.u32 %v1977, 16
        %v1983 = vmul.u32 %v1979, %v1981
        %v1984 = vmul.u32 %v1979, %v1982
        %v1985 = vmul.u32 %v1980, %v1981
        %v1986 = vmul.u32 %v1980, %v1982
        %v1987 = vshll.u32 %v1984, 16
        %v1988 = vshrl.u32 %v1984, 16
        %v1989 = vshll.u32 %v1985, 16
        %v1990 = vshrl.u32 %v1985, 16
        %vm1991 = vc.u32 %v1983, %v1987
        %v1992 = vsel %vm1991, 1, 0
        %v1993 = vadd.s32 %v1983, %v1987
        %v1994 = vadd.s32 %v1986, %v1992
        %vm1995 = vc.u32 %v1993, %v1989
        %v1996 = vsel %vm1995, 1, 0
        %v1997 = vadd.s32 %v1993, %v1989
        %v1998 = vadd.s32 %v1994, %v1996
        %v1999 = vadd.s32 %v1998, %v1988
        %v2000 = vadd.s32 %v1999, %v1990
        %v2001 = vand.u32 %v1978, 65535
        %v2002 = vshrl.u32 %v1978, 16
        %v2003 = vand.u32 %v1973, 65535
        %v2004 = vshrl.u32 %v1973, 16
        %v2005 = vmul.u32 %v2001, %v2003
        %v2006 = vmul.u32 %v2001, %v2004
        %v2007 = vmul.u32 %v2002, %v2003
        %v2008 = vmul.u32 %v2002, %v2004
        %v2009 = vshll.u32 %v2006, 16
        %v2010 = vshrl.u32 %v2006, 16
        %v2011 = vshll.u32 %v2007, 16
        %v2012 = vshrl.u32 %v2007, 16
        %vm2013 = vc.u32 %v2005, %v2009
        %v2014 = vsel %vm2013, 1, 0
        %v2015 = vadd.s32 %v2005, %v2009
        %v2016 = vadd.s32 %v2008, %v2014
        %vm2017 = vc.u32 %v2015, %v2011
        %v2018 = vsel %vm2017, 1, 0
        %v2019 = vadd.s32 %v2015, %v2011
        %v2020 = vadd.s32 %v2016, %v2018
        %v2021 = vadd.s32 %v2020, %v2010
        %v2022 = vadd.s32 %v2021, %v2012
        %v2023 = vmul.u32 %v1978, %v1969
        %v2024 = vadd.s32 %v2000, %v2019
        %vm2025 = vc.u32 %v2000, %v2019
        %v2026 = vadd.s32 %v2022, 1
        %v2027 = vsel %vm2025, %v2026, %v2022
        %v2028 = vadd.s32 %v2023, %v2027
        %v2029 = vadd.s32 %v2028, 536870912
        %v2030 = vshrl.u32 %v2029, 30
        %v2031 = vshll.u32 %v2030, 30
        %v2032 = vsub.s32 %v2028, %v2031
        %vm2033 = vcmp.lt.s32.totalorder %v2032, 0
        %v2034 = vsub.s32 0, %v2032
        %v2035 = vsel %vm2033, %v2034, %v2032
        %v2036 = vclz %v2035
        %v2037 = vsub.s32 %v2036, 2
        %vm2038 = vcmp.gt.s32.totalorder 0, %v2037
        %v2039 = vsel %vm2038, 0, %v2037
        %v2040 = vsub.s32 32, %v2039
        %v2041 = vshll.u32 %v2032, %v2039
        %v2042 = vshrl.u32 %v2024, %v2040
        %v2043 = vor.u32 %v2041, %v2042
        %v2044 = vsub.s32 4294967266, %v2039
        %v2045 = vadd.s32 %v2044, 127
        %v2046 = vshll.u32 %v2045, 23
        %v2047 = vor.u32 4788187, %v2046
        %v2048 = vand.u32 2147483647, %v2047
        %v2050 = vcvt.s32.f32 %v2043
        %v2051 = vmul.f32 %v2050, %v2048
        %v2052 = vxor.u32 %v2051, 2147483648
        %v2053 = vsel %vm1932, %v2052, %v2051
        %v2054 = vsub.s32 4, %v2030
        %v2055 = vsel %vm1932, %v2054, %v2030
        %v2056 = vsel %vm1931, %v245, %v2053
        %v2057 = vsel %vm1931, 0, %v2055
        %v2058 = vmul.f32 %v2056, %v2056
        %v2059 = vmul.f32 %v2058, -0.001358992
        %v2060 = vadd.f32 %v2059, 0.041655596
        %v2061 = vmul.f32 %v2058, %v2060
        %v2062 = vadd.f32 %v2061, -0.4999988
        %v2063 = vmul.f32 %v2058, %v2062
        %v2064 = vadd.f32 1.0, %v2063
        %v2065 = vmul.f32 %v2056, %v2056
        %v2066 = vmul.f32 %v2065, -0.00019511016
        %v2067 = vadd.f32 %v2066, 0.008332121
        %v2068 = vmul.f32 %v2065, %v2067
        %v2069 = vadd.f32 %v2068, -0.16666654
        %v2070 = vmul.f32 %v2065, %v2069
        %v2071 = vadd.f32 %v2070, 1.0
        %v2072 = vmul.f32 %v2071, %v2056
        %vm2073 = vweird.f32 %v245
        %v2074 = vand.u32 %v2057, 3
        %vm2075 = vcmp.lt.s32.totalorder %v2074, 2
        %vm2076 = vcmp.eq.s32.totalorder %v2074, 0
        %v2077 = vxor.u32 %v2072, 2147483648
        %v2078 = vsel %vm2076, %v2064, %v2077
        %vm2079 = vcmp.eq.s32.totalorder %v2074, 2
        %v2080 = vxor.u32 %v2064, 2147483648
        %v2081 = vsel %vm2079, %v2080, %v2072
        %v2082 = vsel %vm2075, %v2078, %v2081
        %v2083 = vsel %vm2073, nan, %v2082
        %v2084 = vand.u32 2147483647, %v246
        %vm2085 = vcmp.le.f32.partialorder %v2084, 0.7853982
        %vm2086 = vcmp.lt.s32.totalorder %v246, 0
        %v2087 = vand.u32 %v246, 2139095040
        %v2088 = vshrl.u32 %v2087, 23
        %v2089 = vsub.s32 %v2088, 127
        %v2090 = vand.u32 2147483647, %v246
        %v2091 = vand.u32 %v2090, 8388607
        %v2092 = vor.u32 %v2091, 8388608
        %v2093 = vsub.s32 0, %v2092
        %v2094 = vadd.s32 %v2089, 1
        %vm2095 = vcmp.gt.s32.totalorder %v2094, 0
        %v2096 = vsel %vm2095, %v2094, 0
        %v2097 = vshrl.u32 %v2096, 5
        %v2098 = vand.u32 %v2096, 31
        %v2099 = vsub.s32 32, %v2098
        %v2100 = vshrl.u32 683565275, %v2099
        %v2101 = vshll.u32 683565275, %v2098
        %v2102 = vshrl.u32 2475754826, %v2099
        %v2103 = vor.u32 %v2101, %v2102
        %v2104 = vshll.u32 2475754826, %v2098
        %v2105 = vshrl.u32 2131351028, %v2099
        %v2106 = vor.u32 %v2104, %v2105
        %v2107 = vshll.u32 2131351028, %v2098
        %v2108 = vshrl.u32 2102212464, %v2099
        %v2109 = vor.u32 %v2107, %v2108
        %v2110 = vshll.u32 2102212464, %v2098
        %v2111 = vshrl.u32 920167782, %v2099
        %v2112 = vor.u32 %v2110, %v2111
        %v2113 = vshll.u32 920167782, %v2098
        %v2114 = vshrl.u32 1326507024, %v2099
        %v2115 = vor.u32 %v2113, %v2114
        %vm2116 = vcmp.lt.s32.totalorder %v2097, 1
        %vm2117 = vcmp.lt.s32.totalorder %v2097, 2
        %vm2118 = vcmp.lt.s32.totalorder %v2097, 3
        %vm2119 = vcmp.lt.s32.totalorder %v2097, 4
        %v2120 = vsel %vm2116, %v2100, %v2103
        %v2121 = vsel %vm2119, %v2109, 2102212464
        %v2122 = vsel %vm2118, %v2106, %v2121
        %v2123 = vsel %vm2117, %v2120, %v2122
        %v2124 = vsel %vm2116, %v2103, %v2106
        %v2125 = vsel %vm2119, %v2112, 920167782
        %v2126 = vsel %vm2118, %v2109, %v2125
        %v2127 = vsel %vm2117, %v2124, %v2126
        %v2128 = vsel %vm2116, %v2106, %v2109
        %v2129 = vsel %vm2119, %v2115, 1326507024
        %v2130 = vsel %vm2118, %v2112, %v2129
        %v2131 = vsel %vm2117, %v2128, %v2130
        %v2132 = vshll.u32 %v2092, 8
        %v2133 = vand.u32 %v2132, 65535
        %v2134 = vshrl.u32 %v2132, 16
        %v2135 = vand.u32 %v2131, 65535
        %v2136 = vshrl.u32 %v2131, 16
        %v2137 = vmul.u32 %v2133, %v2135
        %v2138 = vmul.u32 %v2133, %v2136
        %v2139 = vmul.u32 %v2134, %v2135
        %v2140 = vmul.u32 %v2134, %v2136
        %v2141 = vshll.u32 %v2138, 16
        %v2142 = vshrl.u32 %v2138, 16
        %v2143 = vshll.u32 %v2139, 16
        %v2144 = vshrl.u32 %v2139, 16
        %vm2145 = vc.u32 %v2137, %v2141
        %v2146 = vsel %vm2145, 1, 0
        %v2147 = vadd.s32 %v2137, %v2141
        %v2148 = vadd.s32 %v2140, %v2146
        %vm2149 = vc.u32 %v2147, %v2143
        %v2150 = vsel %vm2149, 1, 0
        %v2151 = vadd.s32 %v2147, %v2143
        %v2152 = vadd.s32 %v2148, %v2150
        %v2153 = vadd.s32 %v2152, %v2142
        %v2154 = vadd.s32 %v2153, %v2144
        %v2155 = vand.u32 %v2132, 65535
        %v2156 = vshrl.u32 %v2132, 16
        %v2157 = vand.u32 %v2127, 65535
        %v2158 = vshrl.u32 %v2127, 16
        %v2159 = vmul.u32 %v2155, %v2157
        %v2160 = vmul.u32 %v2155, %v2158
        %v2161 = vmul.u32 %v2156, %v2157
        %v2162 = vmul.u32 %v2156, %v2158
        %v2163 = vshll.u32 %v2160, 16
        %v2164 = vshrl.u32 %v2160, 16
        %v2165 = vshll.u32 %v2161, 16
        %v2166 = vshrl.u32 %v2161, 16
        %vm2167 = vc.u32 %v2159, %v2163
        %v2168 = vsel %vm2167, 1, 0
        %v2169 = vadd.s32 %v2159, %v2163
        %v2170 = vadd.s32 %v2162, %v2168
        %vm2171 = vc.u32 %v2169, %v2165
        %v2172 = vsel %vm2171, 1, 0
        %v2173 = vadd.s32 %v2169, %v2165
        %v2174 = vadd.s32 %v2170, %v2172
        %v2175 = vadd.s32 %v2174, %v2164
        %v2176 = vadd.s32 %v2175, %v2166
        %v2177 = vmul.u32 %v2132, %v2123
        %v2178 = vadd.s32 %v2154, %v2173
        %vm2179 = vc.u32 %v2154, %v2173
        %v2180 = vadd.s32 %v2176, 1
        %v2181 = vsel %vm2179, %v2180, %v2176
        %v2182 = vadd.s32 %v2177, %v2181
        %v2183 = vadd.s32 %v2182, 536870912
        %v2184 = vshrl.u32 %v2183, 30
        %v2185 = vshll.u32 %v2184, 30
        %v2186 = vsub.s32 %v2182, %v2185
        %vm2187 = vcmp.lt.s32.totalorder %v2186, 0
        %v2188 = vsub.s32 0, %v2186
        %v2189 = vsel %vm2187, %v2188, %v2186
        %v2190 = vclz %v2189
        %v2191 = vsub.s32 %v2190, 2
        %vm2192 = vcmp.gt.s32.totalorder 0, %v2191
        %v2193 = vsel %vm2192, 0, %v2191
        %v2194 = vsub.s32 32, %v2193
        %v2195 = vshll.u32 %v2186, %v2193
        %v2196 = vshrl.u32 %v2178, %v2194
        %v2197 = vor.u32 %v2195, %v2196
        %v2198 = vsub.s32 4294967266, %v2193
        %v2199 = vadd.s32 %v2198, 127
        %v2200 = vshll.u32 %v2199, 23
        %v2201 = vor.u32 4788187, %v2200
        %v2202 = vand.u32 2147483647, %v2201
        %v2204 = vcvt.s32.f32 %v2197
        %v2205 = vmul.f32 %v2204, %v2202
        %v2206 = vxor.u32 %v2205, 2147483648
        %v2207 = vsel %vm2086, %v2206, %v2205
        %v2208 = vsub.s32 4, %v2184
        %v2209 = vsel %vm2086, %v2208, %v2184
        %v2210 = vsel %vm2085, %v246, %v2207
        %v2211 = vsel %vm2085, 0, %v2209
        %v2212 = vmul.f32 %v2210, %v2210
        %v2213 = vmul.f32 %v2212, -0.001358992
        %v2214 = vadd.f32 %v2213, 0.041655596
        %v2215 = vmul.f32 %v2212, %v2214
        %v2216 = vadd.f32 %v2215, -0.4999988
        %v2217 = vmul.f32 %v2212, %v2216
        %v2218 = vadd.f32 1.0, %v2217
        %v2219 = vmul.f32 %v2210, %v2210
        %v2220 = vmul.f32 %v2219, -0.00019511016
        %v2221 = vadd.f32 %v2220, 0.008332121
        %v2222 = vmul.f32 %v2219, %v2221
        %v2223 = vadd.f32 %v2222, -0.16666654
        %v2224 = vmul.f32 %v2219, %v2223
        %v2225 = vadd.f32 %v2224, 1.0
        %v2226 = vmul.f32 %v2225, %v2210
        %vm2227 = vweird.f32 %v246
        %v2228 = vand.u32 %v2211, 3
        %vm2229 = vcmp.lt.s32.totalorder %v2228, 2
        %vm2230 = vcmp.eq.s32.totalorder %v2228, 0
        %v2231 = vxor.u32 %v2226, 2147483648
        %v2232 = vsel %vm2230, %v2218, %v2231
        %vm2233 = vcmp.eq.s32.totalorder %v2228, 2
        %v2234 = vxor.u32 %v2218, 2147483648
        %v2235 = vsel %vm2233, %v2234, %v2226
        %v2236 = vsel %vm2229, %v2232, %v2235
        %v2237 = vsel %vm2227, nan, %v2236
        %v2238 = vand.u32 2147483647, %v247
        %vm2239 = vcmp.le.f32.partialorder %v2238, 0.7853982
        %vm2240 = vcmp.lt.s32.totalorder %v247, 0
        %v2241 = vand.u32 %v247, 2139095040
        %v2242 = vshrl.u32 %v2241, 23
        %v2243 = vsub.s32 %v2242, 127
        %v2244 = vand.u32 2147483647, %v247
        %v2245 = vand.u32 %v2244, 8388607
        %v2246 = vor.u32 %v2245, 8388608
        %v2247 = vsub.s32 0, %v2246
        %v2248 = vadd.s32 %v2243, 1
        %vm2249 = vcmp.gt.s32.totalorder %v2248, 0
        %v2250 = vsel %vm2249, %v2248, 0
        %v2251 = vshrl.u32 %v2250, 5
        %v2252 = vand.u32 %v2250, 31
        %v2253 = vsub.s32 32, %v2252
        %v2254 = vshrl.u32 683565275, %v2253
        %v2255 = vshll.u32 683565275, %v2252
        %v2256 = vshrl.u32 2475754826, %v2253
        %v2257 = vor.u32 %v2255, %v2256
        %v2258 = vshll.u32 2475754826, %v2252
        %v2259 = vshrl.u32 2131351028, %v2253
        %v2260 = vor.u32 %v2258, %v2259
        %v2261 = vshll.u32 2131351028, %v2252
        %v2262 = vshrl.u32 2102212464, %v2253
        %v2263 = vor.u32 %v2261, %v2262
        %v2264 = vshll.u32 2102212464, %v2252
        %v2265 = vshrl.u32 920167782, %v2253
        %v2266 = vor.u32 %v2264, %v2265
        %v2267 = vshll.u32 920167782, %v2252
        %v2268 = vshrl.u32 1326507024, %v2253
        %v2269 = vor.u32 %v2267, %v2268
        %vm2270 = vcmp.lt.s32.totalorder %v2251, 1
        %vm2271 = vcmp.lt.s32.totalorder %v2251, 2
        %vm2272 = vcmp.lt.s32.totalorder %v2251, 3
        %vm2273 = vcmp.lt.s32.totalorder %v2251, 4
        %v2274 = vsel %vm2270, %v2254, %v2257
        %v2275 = vsel %vm2273, %v2263, 2102212464
        %v2276 = vsel %vm2272, %v2260, %v2275
        %v2277 = vsel %vm2271, %v2274, %v2276
        %v2278 = vsel %vm2270, %v2257, %v2260
        %v2279 = vsel %vm2273, %v2266, 920167782
        %v2280 = vsel %vm2272, %v2263, %v2279
        %v2281 = vsel %vm2271, %v2278, %v2280
        %v2282 = vsel %vm2270, %v2260, %v2263
        %v2283 = vsel %vm2273, %v2269, 1326507024
        %v2284 = vsel %vm2272, %v2266, %v2283
        %v2285 = vsel %vm2271, %v2282, %v2284
        %v2286 = vshll.u32 %v2246, 8
        %v2287 = vand.u32 %v2286, 65535
        %v2288 = vshrl.u32 %v2286, 16
        %v2289 = vand.u32 %v2285, 65535
        %v2290 = vshrl.u32 %v2285, 16
        %v2291 = vmul.u32 %v2287, %v2289
        %v2292 = vmul.u32 %v2287, %v2290
        %v2293 = vmul.u32 %v2288, %v2289
        %v2294 = vmul.u32 %v2288, %v2290
        %v2295 = vshll.u32 %v2292, 16
        %v2296 = vshrl.u32 %v2292, 16
        %v2297 = vshll.u32 %v2293, 16
        %v2298 = vshrl.u32 %v2293, 16
        %vm2299 = vc.u32 %v2291, %v2295
        %v2300 = vsel %vm2299, 1, 0
        %v2301 = vadd.s32 %v2291, %v2295
        %v2302 = vadd.s32 %v2294, %v2300
        %vm2303 = vc.u32 %v2301, %v2297
        %v2304 = vsel %vm2303, 1, 0
        %v2305 = vadd.s32 %v2301, %v2297
        %v2306 = vadd.s32 %v2302, %v2304
        %v2307 = vadd.s32 %v2306, %v2296
        %v2308 = vadd.s32 %v2307, %v2298
        %v2309 = vand.u32 %v2286, 65535
        %v2310 = vshrl.u32 %v2286, 16
        %v2311 = vand.u32 %v2281, 65535
        %v2312 = vshrl.u32 %v2281, 16
        %v2313 = vmul.u32 %v2309, %v2311
        %v2314 = vmul.u32 %v2309, %v2312
        %v2315 = vmul.u32 %v2310, %v2311
        %v2316 = vmul.u32 %v2310, %v2312
        %v2317 = vshll.u32 %v2314, 16
        %v2318 = vshrl.u32 %v2314, 16
        %v2319 = vshll.u32 %v2315, 16
        %v2320 = vshrl.u32 %v2315, 16
        %vm2321 = vc.u32 %v2313, %v2317
        %v2322 = vsel %vm2321, 1, 0
        %v2323 = vadd.s32 %v2313, %v2317
        %v2324 = vadd.s32 %v2316, %v2322
        %vm2325 = vc.u32 %v2323, %v2319
        %v2326 = vsel %vm2325, 1, 0
        %v2327 = vadd.s32 %v2323, %v2319
        %v2328 = vadd.s32 %v2324, %v2326
        %v2329 = vadd.s32 %v2328, %v2318
        %v2330 = vadd.s32 %v2329, %v2320
        %v2331 = vmul.u32 %v2286, %v2277
        %v2332 = vadd.s32 %v2308, %v2327
        %vm2333 = vc.u32 %v2308, %v2327
        %v2334 = vadd.s32 %v2330, 1
        %v2335 = vsel %vm2333, %v2334, %v2330
        %v2336 = vadd.s32 %v2331, %v2335
        %v2337 = vadd.s32 %v2336, 536870912
        %v2338 = vshrl.u32 %v2337, 30
        %v2339 = vshll.u32 %v2338, 30
        %v2340 = vsub.s32 %v2336, %v2339
        %vm2341 = vcmp.lt.s32.totalorder %v2340, 0
        %v2342 = vsub.s32 0, %v2340
        %v2343 = vsel %vm2341, %v2342, %v2340
        %v2344 = vclz %v2343
        %v2345 = vsub.s32 %v2344, 2
        %vm2346 = vcmp.gt.s32.totalorder 0, %v2345
        %v2347 = vsel %vm2346, 0, %v2345
        %v2348 = vsub.s32 32, %v2347
        %v2349 = vshll.u32 %v2340, %v2347
        %v2350 = vshrl.u32 %v2332, %v2348
        %v2351 = vor.u32 %v2349, %v2350
        %v2352 = vsub.s32 4294967266, %v2347
        %v2353 = vadd.s32 %v2352, 127
        %v2354 = vshll.u32 %v2353, 23
        %v2355 = vor.u32 4788187, %v2354
        %v2356 = vand.u32 2147483647, %v2355
        %v2358 = vcvt.s32.f32 %v2351
        %v2359 = vmul.f32 %v2358, %v2356
        %v2360 = vxor.u32 %v2359, 2147483648
        %v2361 = vsel %vm2240, %v2360, %v2359
        %v2362 = vsub.s32 4, %v2338
        %v2363 = vsel %vm2240, %v2362, %v2338
        %v2364 = vsel %vm2239, %v247, %v2361
        %v2365 = vsel %vm2239, 0, %v2363
        %v2366 = vmul.f32 %v2364, %v2364
        %v2367 = vmul.f32 %v2366, -0.001358992
        %v2368 = vadd.f32 %v2367, 0.041655596
        %v2369 = vmul.f32 %v2366, %v2368
        %v2370 = vadd.f32 %v2369, -0.4999988
        %v2371 = vmul.f32 %v2366, %v2370
        %v2372 = vadd.f32 1.0, %v2371
        %v2373 = vmul.f32 %v2364, %v2364
        %v2374 = vmul.f32 %v2373, -0.00019511016
        %v2375 = vadd.f32 %v2374, 0.008332121
        %v2376 = vmul.f32 %v2373, %v2375
        %v2377 = vadd.f32 %v2376, -0.16666654
        %v2378 = vmul.f32 %v2373, %v2377
        %v2379 = vadd.f32 %v2378, 1.0
        %v2380 = vmul.f32 %v2379, %v2364
        %vm2381 = vweird.f32 %v247
        %v2382 = vand.u32 %v2365, 3
        %vm2383 = vcmp.lt.s32.totalorder %v2382, 2
        %vm2384 = vcmp.eq.s32.totalorder %v2382, 0
        %v2385 = vxor.u32 %v2380, 2147483648
        %v2386 = vsel %vm2384, %v2372, %v2385
        %vm2387 = vcmp.eq.s32.totalorder %v2382, 2
        %v2388 = vxor.u32 %v2372, 2147483648
        %v2389 = vsel %vm2387, %v2388, %v2380
        %v2390 = vsel %vm2383, %v2386, %v2389
        %v2391 = vsel %vm2381, nan, %v2390
        %v2392 = vand.u32 2147483647, %v248
        %vm2393 = vcmp.le.f32.partialorder %v2392, 0.7853982
        %vm2394 = vcmp.lt.s32.totalorder %v248, 0
        %v2395 = vand.u32 %v248, 2139095040
        %v2396 = vshrl.u32 %v2395, 23
        %v2397 = vsub.s32 %v2396, 127
        %v2398 = vand.u32 2147483647, %v248
        %v2399 = vand.u32 %v2398, 8388607
        %v2400 = vor.u32 %v2399, 8388608
        %v2401 = vsub.s32 0, %v2400
        %v2402 = vadd.s32 %v2397, 1
        %vm2403 = vcmp.gt.s32.totalorder %v2402, 0
        %v2404 = vsel %vm2403, %v2402, 0
        %v2405 = vshrl.u32 %v2404, 5
        %v2406 = vand.u32 %v2404, 31
        %v2407 = vsub.s32 32, %v2406
        %v2408 = vshrl.u32 683565275, %v2407
        %v2409 = vshll.u32 683565275, %v2406
        %v2410 = vshrl.u32 2475754826, %v2407
        %v2411 = vor.u32 %v2409, %v2410
        %v2412 = vshll.u32 2475754826, %v2406
        %v2413 = vshrl.u32 2131351028, %v2407
        %v2414 = vor.u32 %v2412, %v2413
        %v2415 = vshll.u32 2131351028, %v2406
        %v2416 = vshrl.u32 2102212464, %v2407
        %v2417 = vor.u32 %v2415, %v2416
        %v2418 = vshll.u32 2102212464, %v2406
        %v2419 = vshrl.u32 920167782, %v2407
        %v2420 = vor.u32 %v2418, %v2419
        %v2421 = vshll.u32 920167782, %v2406
        %v2422 = vshrl.u32 1326507024, %v2407
        %v2423 = vor.u32 %v2421, %v2422
        %vm2424 = vcmp.lt.s32.totalorder %v2405, 1
        %vm2425 = vcmp.lt.s32.totalorder %v2405, 2
        %vm2426 = vcmp.lt.s32.totalorder %v2405, 3
        %vm2427 = vcmp.lt.s32.totalorder %v2405, 4
        %v2428 = vsel %vm2424, %v2408, %v2411
        %v2429 = vsel %vm2427, %v2417, 2102212464
        %v2430 = vsel %vm2426, %v2414, %v2429
        %v2431 = vsel %vm2425, %v2428, %v2430
        %v2432 = vsel %vm2424, %v2411, %v2414
        %v2433 = vsel %vm2427, %v2420, 920167782
        %v2434 = vsel %vm2426, %v2417, %v2433
        %v2435 = vsel %vm2425, %v2432, %v2434
        %v2436 = vsel %vm2424, %v2414, %v2417
        %v2437 = vsel %vm2427, %v2423, 1326507024
        %v2438 = vsel %vm2426, %v2420, %v2437
        %v2439 = vsel %vm2425, %v2436, %v2438
        %v2440 = vshll.u32 %v2400, 8
        %v2441 = vand.u32 %v2440, 65535
        %v2442 = vshrl.u32 %v2440, 16
        %v2443 = vand.u32 %v2439, 65535
        %v2444 = vshrl.u32 %v2439, 16
        %v2445 = vmul.u32 %v2441, %v2443
        %v2446 = vmul.u32 %v2441, %v2444
        %v2447 = vmul.u32 %v2442, %v2443
        %v2448 = vmul.u32 %v2442, %v2444
        %v2449 = vshll.u32 %v2446, 16
        %v2450 = vshrl.u32 %v2446, 16
        %v2451 = vshll.u32 %v2447, 16
        %v2452 = vshrl.u32 %v2447, 16
        %vm2453 = vc.u32 %v2445, %v2449
        %v2454 = vsel %vm2453, 1, 0
        %v2455 = vadd.s32 %v2445, %v2449
        %v2456 = vadd.s32 %v2448, %v2454
        %vm2457 = vc.u32 %v2455, %v2451
        %v2458 = vsel %vm2457, 1, 0
        %v2459 = vadd.s32 %v2455, %v2451
        %v2460 = vadd.s32 %v2456, %v2458
        %v2461 = vadd.s32 %v2460, %v2450
        %v2462 = vadd.s32 %v2461, %v2452
        %v2463 = vand.u32 %v2440, 65535
        %v2464 = vshrl.u32 %v2440, 16
        %v2465 = vand.u32 %v2435, 65535
        %v2466 = vshrl.u32 %v2435, 16
        %v2467 = vmul.u32 %v2463, %v2465
        %v2468 = vmul.u32 %v2463, %v2466
        %v2469 = vmul.u32 %v2464, %v2465
        %v2470 = vmul.u32 %v2464, %v2466
        %v2471 = vshll.u32 %v2468, 16
        %v2472 = vshrl.u32 %v2468, 16
        %v2473 = vshll.u32 %v2469, 16
        %v2474 = vshrl.u32 %v2469, 16
        %vm2475 = vc.u32 %v2467, %v2471
        %v2476 = vsel %vm2475, 1, 0
        %v2477 = vadd.s32 %v2467, %v2471
        %v2478 = vadd.s32 %v2470, %v2476
        %vm2479 = vc.u32 %v2477, %v2473
        %v2480 = vsel %vm2479, 1, 0
        %v2481 = vadd.s32 %v2477, %v2473
        %v2482 = vadd.s32 %v2478, %v2480
        %v2483 = vadd.s32 %v2482, %v2472
        %v2484 = vadd.s32 %v2483, %v2474
        %v2485 = vmul.u32 %v2440, %v2431
        %v2486 = vadd.s32 %v2462, %v2481
        %vm2487 = vc.u32 %v2462, %v2481
        %v2488 = vadd.s32 %v2484, 1
        %v2489 = vsel %vm2487, %v2488, %v2484
        %v2490 = vadd.s32 %v2485, %v2489
        %v2491 = vadd.s32 %v2490, 536870912
        %v2492 = vshrl.u32 %v2491, 30
        %v2493 = vshll.u32 %v2492, 30
        %v2494 = vsub.s32 %v2490, %v2493
        %vm2495 = vcmp.lt.s32.totalorder %v2494, 0
        %v2496 = vsub.s32 0, %v2494
        %v2497 = vsel %vm2495, %v2496, %v2494
        %v2498 = vclz %v2497
        %v2499 = vsub.s32 %v2498, 2
        %vm2500 = vcmp.gt.s32.totalorder 0, %v2499
        %v2501 = vsel %vm2500, 0, %v2499
        %v2502 = vsub.s32 32, %v2501
        %v2503 = vshll.u32 %v2494, %v2501
        %v2504 = vshrl.u32 %v2486, %v2502
        %v2505 = vor.u32 %v2503, %v2504
        %v2506 = vsub.s32 4294967266, %v2501
        %v2507 = vadd.s32 %v2506, 127
        %v2508 = vshll.u32 %v2507, 23
        %v2509 = vor.u32 4788187, %v2508
        %v2510 = vand.u32 2147483647, %v2509
        %v2512 = vcvt.s32.f32 %v2505
        %v2513 = vmul.f32 %v2512, %v2510
        %v2514 = vxor.u32 %v2513, 2147483648
        %v2515 = vsel %vm2394, %v2514, %v2513
        %v2516 = vsub.s32 4, %v2492
        %v2517 = vsel %vm2394, %v2516, %v2492
        %v2518 = vsel %vm2393, %v248, %v2515
        %v2519 = vsel %vm2393, 0, %v2517
        %v2520 = vmul.f32 %v2518, %v2518
        %v2521 = vmul.f32 %v2520, -0.001358992
        %v2522 = vadd.f32 %v2521, 0.041655596
        %v2523 = vmul.f32 %v2520, %v2522
        %v2524 = vadd.f32 %v2523, -0.4999988
        %v2525 = vmul.f32 %v2520, %v2524
        %v2526 = vadd.f32 1.0, %v2525
        %v2527 = vmul.f32 %v2518, %v2518
        %v2528 = vmul.f32 %v2527, -0.00019511016
        %v2529 = vadd.f32 %v2528, 0.008332121
        %v2530 = vmul.f32 %v2527, %v2529
        %v2531 = vadd.f32 %v2530, -0.16666654
        %v2532 = vmul.f32 %v2527, %v2531
        %v2533 = vadd.f32 %v2532, 1.0
        %v2534 = vmul.f32 %v2533, %v2518
        %vm2535 = vweird.f32 %v248
        %v2536 = vand.u32 %v2519, 3
        %vm2537 = vcmp.lt.s32.totalorder %v2536, 2
        %vm2538 = vcmp.eq.s32.totalorder %v2536, 0
        %v2539 = vxor.u32 %v2534, 2147483648
        %v2540 = vsel %vm2538, %v2526, %v2539
        %vm2541 = vcmp.eq.s32.totalorder %v2536, 2
        %v2542 = vxor.u32 %v2526, 2147483648
        %v2543 = vsel %vm2541, %v2542, %v2534
        %v2544 = vsel %vm2537, %v2540, %v2543
        %v2545 = vsel %vm2535, nan, %v2544
        %v2546 = vand.u32 2147483647, %v249
        %vm2547 = vcmp.le.f32.partialorder %v2546, 0.7853982
        %vm2548 = vcmp.lt.s32.totalorder %v249, 0
        %v2549 = vand.u32 %v249, 2139095040
        %v2550 = vshrl.u32 %v2549, 23
        %v2551 = vsub.s32 %v2550, 127
        %v2552 = vand.u32 2147483647, %v249
        %v2553 = vand.u32 %v2552, 8388607
        %v2554 = vor.u32 %v2553, 8388608
        %v2555 = vsub.s32 0, %v2554
        %v2556 = vadd.s32 %v2551, 1
        %vm2557 = vcmp.gt.s32.totalorder %v2556, 0
        %v2558 = vsel %vm2557, %v2556, 0
        %v2559 = vshrl.u32 %v2558, 5
        %v2560 = vand.u32 %v2558, 31
        %v2561 = vsub.s32 32, %v2560
        %v2562 = vshrl.u32 683565275, %v2561
        %v2563 = vshll.u32 683565275, %v2560
        %v2564 = vshrl.u32 2475754826, %v2561
        %v2565 = vor.u32 %v2563, %v2564
        %v2566 = vshll.u32 2475754826, %v2560
        %v2567 = vshrl.u32 2131351028, %v2561
        %v2568 = vor.u32 %v2566, %v2567
        %v2569 = vshll.u32 2131351028, %v2560
        %v2570 = vshrl.u32 2102212464, %v2561
        %v2571 = vor.u32 %v2569, %v2570
        %v2572 = vshll.u32 2102212464, %v2560
        %v2573 = vshrl.u32 920167782, %v2561
        %v2574 = vor.u32 %v2572, %v2573
        %v2575 = vshll.u32 920167782, %v2560
        %v2576 = vshrl.u32 1326507024, %v2561
        %v2577 = vor.u32 %v2575, %v2576
        %vm2578 = vcmp.lt.s32.totalorder %v2559, 1
        %vm2579 = vcmp.lt.s32.totalorder %v2559, 2
        %vm2580 = vcmp.lt.s32.totalorder %v2559, 3
        %vm2581 = vcmp.lt.s32.totalorder %v2559, 4
        %v2582 = vsel %vm2578, %v2562, %v2565
        %v2583 = vsel %vm2581, %v2571, 2102212464
        %v2584 = vsel %vm2580, %v2568, %v2583
        %v2585 = vsel %vm2579, %v2582, %v2584
        %v2586 = vsel %vm2578, %v2565, %v2568
        %v2587 = vsel %vm2581, %v2574, 920167782
        %v2588 = vsel %vm2580, %v2571, %v2587
        %v2589 = vsel %vm2579, %v2586, %v2588
        %v2590 = vsel %vm2578, %v2568, %v2571
        %v2591 = vsel %vm2581, %v2577, 1326507024
        %v2592 = vsel %vm2580, %v2574, %v2591
        %v2593 = vsel %vm2579, %v2590, %v2592
        %v2594 = vshll.u32 %v2554, 8
        %v2595 = vand.u32 %v2594, 65535
        %v2596 = vshrl.u32 %v2594, 16
        %v2597 = vand.u32 %v2593, 65535
        %v2598 = vshrl.u32 %v2593, 16
        %v2599 = vmul.u32 %v2595, %v2597
        %v2600 = vmul.u32 %v2595, %v2598
        %v2601 = vmul.u32 %v2596, %v2597
        %v2602 = vmul.u32 %v2596, %v2598
        %v2603 = vshll.u32 %v2600, 16
        %v2604 = vshrl.u32 %v2600, 16
        %v2605 = vshll.u32 %v2601, 16
        %v2606 = vshrl.u32 %v2601, 16
        %vm2607 = vc.u32 %v2599, %v2603
        %v2608 = vsel %vm2607, 1, 0
        %v2609 = vadd.s32 %v2599, %v2603
        %v2610 = vadd.s32 %v2602, %v2608
        %vm2611 = vc.u32 %v2609, %v2605
        %v2612 = vsel %vm2611, 1, 0
        %v2613 = vadd.s32 %v2609, %v2605
        %v2614 = vadd.s32 %v2610, %v2612
        %v2615 = vadd.s32 %v2614, %v2604
        %v2616 = vadd.s32 %v2615, %v2606
        %v2617 = vand.u32 %v2594, 65535
        %v2618 = vshrl.u32 %v2594, 16
        %v2619 = vand.u32 %v2589, 65535
        %v2620 = vshrl.u32 %v2589, 16
        %v2621 = vmul.u32 %v2617, %v2619
        %v2622 = vmul.u32 %v2617, %v2620
        %v2623 = vmul.u32 %v2618, %v2619
        %v2624 = vmul.u32 %v2618, %v2620
        %v2625 = vshll.u32 %v2622, 16
        %v2626 = vshrl.u32 %v2622, 16
        %v2627 = vshll.u32 %v2623, 16
        %v2628 = vshrl.u32 %v2623, 16
        %vm2629 = vc.u32 %v2621, %v2625
        %v2630 = vsel %vm2629, 1, 0
        %v2631 = vadd.s32 %v2621, %v2625
        %v2632 = vadd.s32 %v2624, %v2630
        %vm2633 = vc.u32 %v2631, %v2627
        %v2634 = vsel %vm2633, 1, 0
        %v2635 = vadd.s32 %v2631, %v2627
        %v2636 = vadd.s32 %v2632, %v2634
        %v2637 = vadd.s32 %v2636, %v2626
        %v2638 = vadd.s32 %v2637, %v2628
        %v2639 = vmul.u32 %v2594, %v2585
        %v2640 = vadd.s32 %v2616, %v2635
        %vm2641 = vc.u32 %v2616, %v2635
        %v2642 = vadd.s32 %v2638, 1
        %v2643 = vsel %vm2641, %v2642, %v2638
        %v2644 = vadd.s32 %v2639, %v2643
        %v2645 = vadd.s32 %v2644, 536870912
        %v2646 = vshrl.u32 %v2645, 30
        %v2647 = vshll.u32 %v2646, 30
        %v2648 = vsub.s32 %v2644, %v2647
        %vm2649 = vcmp.lt.s32.totalorder %v2648, 0
        %v2650 = vsub.s32 0, %v2648
        %v2651 = vsel %vm2649, %v2650, %v2648
        %v2652 = vclz %v2651
        %v2653 = vsub.s32 %v2652, 2
        %vm2654 = vcmp.gt.s32.totalorder 0, %v2653
        %v2655 = vsel %vm2654, 0, %v2653
        %v2656 = vsub.s32 32, %v2655
        %v2657 = vshll.u32 %v2648, %v2655
        %v2658 = vshrl.u32 %v2640, %v2656
        %v2659 = vor.u32 %v2657, %v2658
        %v2660 = vsub.s32 4294967266, %v2655
        %v2661 = vadd.s32 %v2660, 127
        %v2662 = vshll.u32 %v2661, 23
        %v2663 = vor.u32 4788187, %v2662
        %v2664 = vand.u32 2147483647, %v2663
        %v2666 = vcvt.s32.f32 %v2659
        %v2667 = vmul.f32 %v2666, %v2664
        %v2668 = vxor.u32 %v2667, 2147483648
        %v2669 = vsel %vm2548, %v2668, %v2667
        %v2670 = vsub.s32 4, %v2646
        %v2671 = vsel %vm2548, %v2670, %v2646
        %v2672 = vsel %vm2547, %v249, %v2669
        %v2673 = vsel %vm2547, 0, %v2671
        %v2674 = vmul.f32 %v2672, %v2672
        %v2675 = vmul.f32 %v2674, -0.001358992
        %v2676 = vadd.f32 %v2675, 0.041655596
        %v2677 = vmul.f32 %v2674, %v2676
        %v2678 = vadd.f32 %v2677, -0.4999988
        %v2679 = vmul.f32 %v2674, %v2678
        %v2680 = vadd.f32 1.0, %v2679
        %v2681 = vmul.f32 %v2672, %v2672
        %v2682 = vmul.f32 %v2681, -0.00019511016
        %v2683 = vadd.f32 %v2682, 0.008332121
        %v2684 = vmul.f32 %v2681, %v2683
        %v2685 = vadd.f32 %v2684, -0.16666654
        %v2686 = vmul.f32 %v2681, %v2685
        %v2687 = vadd.f32 %v2686, 1.0
        %v2688 = vmul.f32 %v2687, %v2672
        %vm2689 = vweird.f32 %v249
        %v2690 = vand.u32 %v2673, 3
        %vm2691 = vcmp.lt.s32.totalorder %v2690, 2
        %vm2692 = vcmp.eq.s32.totalorder %v2690, 0
        %v2693 = vxor.u32 %v2688, 2147483648
        %v2694 = vsel %vm2692, %v2680, %v2693
        %vm2695 = vcmp.eq.s32.totalorder %v2690, 2
        %v2696 = vxor.u32 %v2680, 2147483648
        %v2697 = vsel %vm2695, %v2696, %v2688
        %v2698 = vsel %vm2691, %v2694, %v2697
        %v2699 = vsel %vm2689, nan, %v2698
        %v2700 = vand.u32 2147483647, %v250
        %vm2701 = vcmp.le.f32.partialorder %v2700, 0.7853982
        %vm2702 = vcmp.lt.s32.totalorder %v250, 0
        %v2703 = vand.u32 %v250, 2139095040
        %v2704 = vshrl.u32 %v2703, 23
        %v2705 = vsub.s32 %v2704, 127
        %v2706 = vand.u32 2147483647, %v250
        %v2707 = vand.u32 %v2706, 8388607
        %v2708 = vor.u32 %v2707, 8388608
        %v2709 = vsub.s32 0, %v2708
        %v2710 = vadd.s32 %v2705, 1
        %vm2711 = vcmp.gt.s32.totalorder %v2710, 0
        %v2712 = vsel %vm2711, %v2710, 0
        %v2713 = vshrl.u32 %v2712, 5
        %v2714 = vand.u32 %v2712, 31
        %v2715 = vsub.s32 32, %v2714
        %v2716 = vshrl.u32 683565275, %v2715
        %v2717 = vshll.u32 683565275, %v2714
        %v2718 = vshrl.u32 2475754826, %v2715
        %v2719 = vor.u32 %v2717, %v2718
        %v2720 = vshll.u32 2475754826, %v2714
        %v2721 = vshrl.u32 2131351028, %v2715
        %v2722 = vor.u32 %v2720, %v2721
        %v2723 = vshll.u32 2131351028, %v2714
        %v2724 = vshrl.u32 2102212464, %v2715
        %v2725 = vor.u32 %v2723, %v2724
        %v2726 = vshll.u32 2102212464, %v2714
        %v2727 = vshrl.u32 920167782, %v2715
        %v2728 = vor.u32 %v2726, %v2727
        %v2729 = vshll.u32 920167782, %v2714
        %v2730 = vshrl.u32 1326507024, %v2715
        %v2731 = vor.u32 %v2729, %v2730
        %vm2732 = vcmp.lt.s32.totalorder %v2713, 1
        %vm2733 = vcmp.lt.s32.totalorder %v2713, 2
        %vm2734 = vcmp.lt.s32.totalorder %v2713, 3
        %vm2735 = vcmp.lt.s32.totalorder %v2713, 4
        %v2736 = vsel %vm2732, %v2716, %v2719
        %v2737 = vsel %vm2735, %v2725, 2102212464
        %v2738 = vsel %vm2734, %v2722, %v2737
        %v2739 = vsel %vm2733, %v2736, %v2738
        %v2740 = vsel %vm2732, %v2719, %v2722
        %v2741 = vsel %vm2735, %v2728, 920167782
        %v2742 = vsel %vm2734, %v2725, %v2741
        %v2743 = vsel %vm2733, %v2740, %v2742
        %v2744 = vsel %vm2732, %v2722, %v2725
        %v2745 = vsel %vm2735, %v2731, 1326507024
        %v2746 = vsel %vm2734, %v2728, %v2745
        %v2747 = vsel %vm2733, %v2744, %v2746
        %v2748 = vshll.u32 %v2708, 8
        %v2749 = vand.u32 %v2748, 65535
        %v2750 = vshrl.u32 %v2748, 16
        %v2751 = vand.u32 %v2747, 65535
        %v2752 = vshrl.u32 %v2747, 16
        %v2753 = vmul.u32 %v2749, %v2751
        %v2754 = vmul.u32 %v2749, %v2752
        %v2755 = vmul.u32 %v2750, %v2751
        %v2756 = vmul.u32 %v2750, %v2752
        %v2757 = vshll.u32 %v2754, 16
        %v2758 = vshrl.u32 %v2754, 16
        %v2759 = vshll.u32 %v2755, 16
        %v2760 = vshrl.u32 %v2755, 16
        %vm2761 = vc.u32 %v2753, %v2757
        %v2762 = vsel %vm2761, 1, 0
        %v2763 = vadd.s32 %v2753, %v2757
        %v2764 = vadd.s32 %v2756, %v2762
        %vm2765 = vc.u32 %v2763, %v2759
        %v2766 = vsel %vm2765, 1, 0
        %v2767 = vadd.s32 %v2763, %v2759
        %v2768 = vadd.s32 %v2764, %v2766
        %v2769 = vadd.s32 %v2768, %v2758
        %v2770 = vadd.s32 %v2769, %v2760
        %v2771 = vand.u32 %v2748, 65535
        %v2772 = vshrl.u32 %v2748, 16
        %v2773 = vand.u32 %v2743, 65535
        %v2774 = vshrl.u32 %v2743, 16
        %v2775 = vmul.u32 %v2771, %v2773
        %v2776 = vmul.u32 %v2771, %v2774
        %v2777 = vmul.u32 %v2772, %v2773
        %v2778 = vmul.u32 %v2772, %v2774
        %v2779 = vshll.u32 %v2776, 16
        %v2780 = vshrl.u32 %v2776, 16
        %v2781 = vshll.u32 %v2777, 16
        %v2782 = vshrl.u32 %v2777, 16
        %vm2783 = vc.u32 %v2775, %v2779
        %v2784 = vsel %vm2783, 1, 0
        %v2785 = vadd.s32 %v2775, %v2779
        %v2786 = vadd.s32 %v2778, %v2784
        %vm2787 = vc.u32 %v2785, %v2781
        %v2788 = vsel %vm2787, 1, 0
        %v2789 = vadd.s32 %v2785, %v2781
        %v2790 = vadd.s32 %v2786, %v2788
        %v2791 = vadd.s32 %v2790, %v2780
        %v2792 = vadd.s32 %v2791, %v2782
        %v2793 = vmul.u32 %v2748, %v2739
        %v2794 = vadd.s32 %v2770, %v2789
        %vm2795 = vc.u32 %v2770, %v2789
        %v2796 = vadd.s32 %v2792, 1
        %v2797 = vsel %vm2795, %v2796, %v2792
        %v2798 = vadd.s32 %v2793, %v2797
        %v2799 = vadd.s32 %v2798, 536870912
        %v2800 = vshrl.u32 %v2799, 30
        %v2801 = vshll.u32 %v2800, 30
        %v2802 = vsub.s32 %v2798, %v2801
        %vm2803 = vcmp.lt.s32.totalorder %v2802, 0
        %v2804 = vsub.s32 0, %v2802
        %v2805 = vsel %vm2803, %v2804, %v2802
        %v2806 = vclz %v2805
        %v2807 = vsub.s32 %v2806, 2
        %vm2808 = vcmp.gt.s32.totalorder 0, %v2807
        %v2809 = vsel %vm2808, 0, %v2807
        %v2810 = vsub.s32 32, %v2809
        %v2811 = vshll.u32 %v2802, %v2809
        %v2812 = vshrl.u32 %v2794, %v2810
        %v2813 = vor.u32 %v2811, %v2812
        %v2814 = vsub.s32 4294967266, %v2809
        %v2815 = vadd.s32 %v2814, 127
        %v2816 = vshll.u32 %v2815, 23
        %v2817 = vor.u32 4788187, %v2816
        %v2818 = vand.u32 2147483647, %v2817
        %v2820 = vcvt.s32.f32 %v2813
        %v2821 = vmul.f32 %v2820, %v2818
        %v2822 = vxor.u32 %v2821, 2147483648
        %v2823 = vsel %vm2702, %v2822, %v2821
        %v2824 = vsub.s32 4, %v2800
        %v2825 = vsel %vm2702, %v2824, %v2800
        %v2826 = vsel %vm2701, %v250, %v2823
        %v2827 = vsel %vm2701, 0, %v2825
        %v2828 = vmul.f32 %v2826, %v2826
        %v2829 = vmul.f32 %v2828, -0.001358992
        %v2830 = vadd.f32 %v2829, 0.041655596
        %v2831 = vmul.f32 %v2828, %v2830
        %v2832 = vadd.f32 %v2831, -0.4999988
        %v2833 = vmul.f32 %v2828, %v2832
        %v2834 = vadd.f32 1.0, %v2833
        %v2835 = vmul.f32 %v2826, %v2826
        %v2836 = vmul.f32 %v2835, -0.00019511016
        %v2837 = vadd.f32 %v2836, 0.008332121
        %v2838 = vmul.f32 %v2835, %v2837
        %v2839 = vadd.f32 %v2838, -0.16666654
        %v2840 = vmul.f32 %v2835, %v2839
        %v2841 = vadd.f32 %v2840, 1.0
        %v2842 = vmul.f32 %v2841, %v2826
        %vm2843 = vweird.f32 %v250
        %v2844 = vand.u32 %v2827, 3
        %vm2845 = vcmp.lt.s32.totalorder %v2844, 2
        %vm2846 = vcmp.eq.s32.totalorder %v2844, 0
        %v2847 = vxor.u32 %v2842, 2147483648
        %v2848 = vsel %vm2846, %v2834, %v2847
        %vm2849 = vcmp.eq.s32.totalorder %v2844, 2
        %v2850 = vxor.u32 %v2834, 2147483648
        %v2851 = vsel %vm2849, %v2850, %v2842
        %v2852 = vsel %vm2845, %v2848, %v2851
        %v2853 = vsel %vm2843, nan, %v2852
        %v2854 = vand.u32 2147483647, %v251
        %vm2855 = vcmp.le.f32.partialorder %v2854, 0.7853982
        %vm2856 = vcmp.lt.s32.totalorder %v251, 0
        %v2857 = vand.u32 %v251, 2139095040
        %v2858 = vshrl.u32 %v2857, 23
        %v2859 = vsub.s32 %v2858, 127
        %v2860 = vand.u32 2147483647, %v251
        %v2861 = vand.u32 %v2860, 8388607
        %v2862 = vor.u32 %v2861, 8388608
        %v2863 = vsub.s32 0, %v2862
        %v2864 = vadd.s32 %v2859, 1
        %vm2865 = vcmp.gt.s32.totalorder %v2864, 0
        %v2866 = vsel %vm2865, %v2864, 0
        %v2867 = vshrl.u32 %v2866, 5
        %v2868 = vand.u32 %v2866, 31
        %v2869 = vsub.s32 32, %v2868
        %v2870 = vshrl.u32 683565275, %v2869
        %v2871 = vshll.u32 683565275, %v2868
        %v2872 = vshrl.u32 2475754826, %v2869
        %v2873 = vor.u32 %v2871, %v2872
        %v2874 = vshll.u32 2475754826, %v2868
        %v2875 = vshrl.u32 2131351028, %v2869
        %v2876 = vor.u32 %v2874, %v2875
        %v2877 = vshll.u32 2131351028, %v2868
        %v2878 = vshrl.u32 2102212464, %v2869
        %v2879 = vor.u32 %v2877, %v2878
        %v2880 = vshll.u32 2102212464, %v2868
        %v2881 = vshrl.u32 920167782, %v2869
        %v2882 = vor.u32 %v2880, %v2881
        %v2883 = vshll.u32 920167782, %v2868
        %v2884 = vshrl.u32 1326507024, %v2869
        %v2885 = vor.u32 %v2883, %v2884
        %vm2886 = vcmp.lt.s32.totalorder %v2867, 1
        %vm2887 = vcmp.lt.s32.totalorder %v2867, 2
        %vm2888 = vcmp.lt.s32.totalorder %v2867, 3
        %vm2889 = vcmp.lt.s32.totalorder %v2867, 4
        %v2890 = vsel %vm2886, %v2870, %v2873
        %v2891 = vsel %vm2889, %v2879, 2102212464
        %v2892 = vsel %vm2888, %v2876, %v2891
        %v2893 = vsel %vm2887, %v2890, %v2892
        %v2894 = vsel %vm2886, %v2873, %v2876
        %v2895 = vsel %vm2889, %v2882, 920167782
        %v2896 = vsel %vm2888, %v2879, %v2895
        %v2897 = vsel %vm2887, %v2894, %v2896
        %v2898 = vsel %vm2886, %v2876, %v2879
        %v2899 = vsel %vm2889, %v2885, 1326507024
        %v2900 = vsel %vm2888, %v2882, %v2899
        %v2901 = vsel %vm2887, %v2898, %v2900
        %v2902 = vshll.u32 %v2862, 8
        %v2903 = vand.u32 %v2902, 65535
        %v2904 = vshrl.u32 %v2902, 16
        %v2905 = vand.u32 %v2901, 65535
        %v2906 = vshrl.u32 %v2901, 16
        %v2907 = vmul.u32 %v2903, %v2905
        %v2908 = vmul.u32 %v2903, %v2906
        %v2909 = vmul.u32 %v2904, %v2905
        %v2910 = vmul.u32 %v2904, %v2906
        %v2911 = vshll.u32 %v2908, 16
        %v2912 = vshrl.u32 %v2908, 16
        %v2913 = vshll.u32 %v2909, 16
        %v2914 = vshrl.u32 %v2909, 16
        %vm2915 = vc.u32 %v2907, %v2911
        %v2916 = vsel %vm2915, 1, 0
        %v2917 = vadd.s32 %v2907, %v2911
        %v2918 = vadd.s32 %v2910, %v2916
        %vm2919 = vc.u32 %v2917, %v2913
        %v2920 = vsel %vm2919, 1, 0
        %v2921 = vadd.s32 %v2917, %v2913
        %v2922 = vadd.s32 %v2918, %v2920
        %v2923 = vadd.s32 %v2922, %v2912
        %v2924 = vadd.s32 %v2923, %v2914
        %v2925 = vand.u32 %v2902, 65535
        %v2926 = vshrl.u32 %v2902, 16
        %v2927 = vand.u32 %v2897, 65535
        %v2928 = vshrl.u32 %v2897, 16
        %v2929 = vmul.u32 %v2925, %v2927
        %v2930 = vmul.u32 %v2925, %v2928
        %v2931 = vmul.u32 %v2926, %v2927
        %v2932 = vmul.u32 %v2926, %v2928
        %v2933 = vshll.u32 %v2930, 16
        %v2934 = vshrl.u32 %v2930, 16
        %v2935 = vshll.u32 %v2931, 16
        %v2936 = vshrl.u32 %v2931, 16
        %vm2937 = vc.u32 %v2929, %v2933
        %v2938 = vsel %vm2937, 1, 0
        %v2939 = vadd.s32 %v2929, %v2933
        %v2940 = vadd.s32 %v2932, %v2938
        %vm2941 = vc.u32 %v2939, %v2935
        %v2942 = vsel %vm2941, 1, 0
        %v2943 = vadd.s32 %v2939, %v2935
        %v2944 = vadd.s32 %v2940, %v2942
        %v2945 = vadd.s32 %v2944, %v2934
        %v2946 = vadd.s32 %v2945, %v2936
        %v2947 = vmul.u32 %v2902, %v2893
        %v2948 = vadd.s32 %v2924, %v2943
        %vm2949 = vc.u32 %v2924, %v2943
        %v2950 = vadd.s32 %v2946, 1
        %v2951 = vsel %vm2949, %v2950, %v2946
        %v2952 = vadd.s32 %v2947, %v2951
        %v2953 = vadd.s32 %v2952, 536870912
        %v2954 = vshrl.u32 %v2953, 30
        %v2955 = vshll.u32 %v2954, 30
        %v2956 = vsub.s32 %v2952, %v2955
        %vm2957 = vcmp.lt.s32.totalorder %v2956, 0
        %v2958 = vsub.s32 0, %v2956
        %v2959 = vsel %vm2957, %v2958, %v2956
        %v2960 = vclz %v2959
        %v2961 = vsub.s32 %v2960, 2
        %vm2962 = vcmp.gt.s32.totalorder 0, %v2961
        %v2963 = vsel %vm2962, 0, %v2961
        %v2964 = vsub.s32 32, %v2963
        %v2965 = vshll.u32 %v2956, %v2963
        %v2966 = vshrl.u32 %v2948, %v2964
        %v2967 = vor.u32 %v2965, %v2966
        %v2968 = vsub.s32 4294967266, %v2963
        %v2969 = vadd.s32 %v2968, 127
        %v2970 = vshll.u32 %v2969, 23
        %v2971 = vor.u32 4788187, %v2970
        %v2972 = vand.u32 2147483647, %v2971
        %v2974 = vcvt.s32.f32 %v2967
        %v2975 = vmul.f32 %v2974, %v2972
        %v2976 = vxor.u32 %v2975, 2147483648
        %v2977 = vsel %vm2856, %v2976, %v2975
        %v2978 = vsub.s32 4, %v2954
        %v2979 = vsel %vm2856, %v2978, %v2954
        %v2980 = vsel %vm2855, %v251, %v2977
        %v2981 = vsel %vm2855, 0, %v2979
        %v2982 = vmul.f32 %v2980, %v2980
        %v2983 = vmul.f32 %v2982, -0.001358992
        %v2984 = vadd.f32 %v2983, 0.041655596
        %v2985 = vmul.f32 %v2982, %v2984
        %v2986 = vadd.f32 %v2985, -0.4999988
        %v2987 = vmul.f32 %v2982, %v2986
        %v2988 = vadd.f32 1.0, %v2987
        %v2989 = vmul.f32 %v2980, %v2980
        %v2990 = vmul.f32 %v2989, -0.00019511016
        %v2991 = vadd.f32 %v2990, 0.008332121
        %v2992 = vmul.f32 %v2989, %v2991
        %v2993 = vadd.f32 %v2992, -0.16666654
        %v2994 = vmul.f32 %v2989, %v2993
        %v2995 = vadd.f32 %v2994, 1.0
        %v2996 = vmul.f32 %v2995, %v2980
        %vm2997 = vweird.f32 %v251
        %v2998 = vand.u32 %v2981, 3
        %vm2999 = vcmp.lt.s32.totalorder %v2998, 2
        %vm3000 = vcmp.eq.s32.totalorder %v2998, 0
        %v3001 = vxor.u32 %v2996, 2147483648
        %v3002 = vsel %vm3000, %v2988, %v3001
        %vm3003 = vcmp.eq.s32.totalorder %v2998, 2
        %v3004 = vxor.u32 %v2988, 2147483648
        %v3005 = vsel %vm3003, %v3004, %v2996
        %v3006 = vsel %vm2999, %v3002, %v3005
        %v3007 = vsel %vm2997, nan, %v3006
        %v3008 = vand.u32 2147483647, %v252
        %vm3009 = vcmp.le.f32.partialorder %v3008, 0.7853982
        %vm3010 = vcmp.lt.s32.totalorder %v252, 0
        %v3011 = vand.u32 %v252, 2139095040
        %v3012 = vshrl.u32 %v3011, 23
        %v3013 = vsub.s32 %v3012, 127
        %v3014 = vand.u32 2147483647, %v252
        %v3015 = vand.u32 %v3014, 8388607
        %v3016 = vor.u32 %v3015, 8388608
        %v3017 = vsub.s32 0, %v3016
        %v3018 = vadd.s32 %v3013, 1
        %vm3019 = vcmp.gt.s32.totalorder %v3018, 0
        %v3020 = vsel %vm3019, %v3018, 0
        %v3021 = vshrl.u32 %v3020, 5
        %v3022 = vand.u32 %v3020, 31
        %v3023 = vsub.s32 32, %v3022
        %v3024 = vshrl.u32 683565275, %v3023
        %v3025 = vshll.u32 683565275, %v3022
        %v3026 = vshrl.u32 2475754826, %v3023
        %v3027 = vor.u32 %v3025, %v3026
        %v3028 = vshll.u32 2475754826, %v3022
        %v3029 = vshrl.u32 2131351028, %v3023
        %v3030 = vor.u32 %v3028, %v3029
        %v3031 = vshll.u32 2131351028, %v3022
        %v3032 = vshrl.u32 2102212464, %v3023
        %v3033 = vor.u32 %v3031, %v3032
        %v3034 = vshll.u32 2102212464, %v3022
        %v3035 = vshrl.u32 920167782, %v3023
        %v3036 = vor.u32 %v3034, %v3035
        %v3037 = vshll.u32 920167782, %v3022
        %v3038 = vshrl.u32 1326507024, %v3023
        %v3039 = vor.u32 %v3037, %v3038
        %vm3040 = vcmp.lt.s32.totalorder %v3021, 1
        %vm3041 = vcmp.lt.s32.totalorder %v3021, 2
        %vm3042 = vcmp.lt.s32.totalorder %v3021, 3
        %vm3043 = vcmp.lt.s32.totalorder %v3021, 4
        %v3044 = vsel %vm3040, %v3024, %v3027
        %v3045 = vsel %vm3043, %v3033, 2102212464
        %v3046 = vsel %vm3042, %v3030, %v3045
        %v3047 = vsel %vm3041, %v3044, %v3046
        %v3048 = vsel %vm3040, %v3027, %v3030
        %v3049 = vsel %vm3043, %v3036, 920167782
        %v3050 = vsel %vm3042, %v3033, %v3049
        %v3051 = vsel %vm3041, %v3048, %v3050
        %v3052 = vsel %vm3040, %v3030, %v3033
        %v3053 = vsel %vm3043, %v3039, 1326507024
        %v3054 = vsel %vm3042, %v3036, %v3053
        %v3055 = vsel %vm3041, %v3052, %v3054
        %v3056 = vshll.u32 %v3016, 8
        %v3057 = vand.u32 %v3056, 65535
        %v3058 = vshrl.u32 %v3056, 16
        %v3059 = vand.u32 %v3055, 65535
        %v3060 = vshrl.u32 %v3055, 16
        %v3061 = vmul.u32 %v3057, %v3059
        %v3062 = vmul.u32 %v3057, %v3060
        %v3063 = vmul.u32 %v3058, %v3059
        %v3064 = vmul.u32 %v3058, %v3060
        %v3065 = vshll.u32 %v3062, 16
        %v3066 = vshrl.u32 %v3062, 16
        %v3067 = vshll.u32 %v3063, 16
        %v3068 = vshrl.u32 %v3063, 16
        %vm3069 = vc.u32 %v3061, %v3065
        %v3070 = vsel %vm3069, 1, 0
        %v3071 = vadd.s32 %v3061, %v3065
        %v3072 = vadd.s32 %v3064, %v3070
        %vm3073 = vc.u32 %v3071, %v3067
        %v3074 = vsel %vm3073, 1, 0
        %v3075 = vadd.s32 %v3071, %v3067
        %v3076 = vadd.s32 %v3072, %v3074
        %v3077 = vadd.s32 %v3076, %v3066
        %v3078 = vadd.s32 %v3077, %v3068
        %v3079 = vand.u32 %v3056, 65535
        %v3080 = vshrl.u32 %v3056, 16
        %v3081 = vand.u32 %v3051, 65535
        %v3082 = vshrl.u32 %v3051, 16
        %v3083 = vmul.u32 %v3079, %v3081
        %v3084 = vmul.u32 %v3079, %v3082
        %v3085 = vmul.u32 %v3080, %v3081
        %v3086 = vmul.u32 %v3080, %v3082
        %v3087 = vshll.u32 %v3084, 16
        %v3088 = vshrl.u32 %v3084, 16
        %v3089 = vshll.u32 %v3085, 16
        %v3090 = vshrl.u32 %v3085, 16
        %vm3091 = vc.u32 %v3083, %v3087
        %v3092 = vsel %vm3091, 1, 0
        %v3093 = vadd.s32 %v3083, %v3087
        %v3094 = vadd.s32 %v3086, %v3092
        %vm3095 = vc.u32 %v3093, %v3089
        %v3096 = vsel %vm3095, 1, 0
        %v3097 = vadd.s32 %v3093, %v3089
        %v3098 = vadd.s32 %v3094, %v3096
        %v3099 = vadd.s32 %v3098, %v3088
        %v3100 = vadd.s32 %v3099, %v3090
        %v3101 = vmul.u32 %v3056, %v3047
        %v3102 = vadd.s32 %v3078, %v3097
        %vm3103 = vc.u32 %v3078, %v3097
        %v3104 = vadd.s32 %v3100, 1
        %v3105 = vsel %vm3103, %v3104, %v3100
        %v3106 = vadd.s32 %v3101, %v3105
        %v3107 = vadd.s32 %v3106, 536870912
        %v3108 = vshrl.u32 %v3107, 30
        %v3109 = vshll.u32 %v3108, 30
        %v3110 = vsub.s32 %v3106, %v3109
        %vm3111 = vcmp.lt.s32.totalorder %v3110, 0
        %v3112 = vsub.s32 0, %v3110
        %v3113 = vsel %vm3111, %v3112, %v3110
        %v3114 = vclz %v3113
        %v3115 = vsub.s32 %v3114, 2
        %vm3116 = vcmp.gt.s32.totalorder 0, %v3115
        %v3117 = vsel %vm3116, 0, %v3115
        %v3118 = vsub.s32 32, %v3117
        %v3119 = vshll.u32 %v3110, %v3117
        %v3120 = vshrl.u32 %v3102, %v3118
        %v3121 = vor.u32 %v3119, %v3120
        %v3122 = vsub.s32 4294967266, %v3117
        %v3123 = vadd.s32 %v3122, 127
        %v3124 = vshll.u32 %v3123, 23
        %v3125 = vor.u32 4788187, %v3124
        %v3126 = vand.u32 2147483647, %v3125
        %v3128 = vcvt.s32.f32 %v3121
        %v3129 = vmul.f32 %v3128, %v3126
        %v3130 = vxor.u32 %v3129, 2147483648
        %v3131 = vsel %vm3010, %v3130, %v3129
        %v3132 = vsub.s32 4, %v3108
        %v3133 = vsel %vm3010, %v3132, %v3108
        %v3134 = vsel %vm3009, %v252, %v3131
        %v3135 = vsel %vm3009, 0, %v3133
        %v3136 = vmul.f32 %v3134, %v3134
        %v3137 = vmul.f32 %v3136, -0.001358992
        %v3138 = vadd.f32 %v3137, 0.041655596
        %v3139 = vmul.f32 %v3136, %v3138
        %v3140 = vadd.f32 %v3139, -0.4999988
        %v3141 = vmul.f32 %v3136, %v3140
        %v3142 = vadd.f32 1.0, %v3141
        %v3143 = vmul.f32 %v3134, %v3134
        %v3144 = vmul.f32 %v3143, -0.00019511016
        %v3145 = vadd.f32 %v3144, 0.008332121
        %v3146 = vmul.f32 %v3143, %v3145
        %v3147 = vadd.f32 %v3146, -0.16666654
        %v3148 = vmul.f32 %v3143, %v3147
        %v3149 = vadd.f32 %v3148, 1.0
        %v3150 = vmul.f32 %v3149, %v3134
        %vm3151 = vweird.f32 %v252
        %v3152 = vand.u32 %v3135, 3
        %vm3153 = vcmp.lt.s32.totalorder %v3152, 2
        %vm3154 = vcmp.eq.s32.totalorder %v3152, 0
        %v3155 = vxor.u32 %v3150, 2147483648
        %v3156 = vsel %vm3154, %v3142, %v3155
        %vm3157 = vcmp.eq.s32.totalorder %v3152, 2
        %v3158 = vxor.u32 %v3142, 2147483648
        %v3159 = vsel %vm3157, %v3158, %v3150
        %v3160 = vsel %vm3153, %v3156, %v3159
        %v3161 = vsel %vm3151, nan, %v3160
        %v3162 = vand.u32 2147483647, %v253
        %vm3163 = vcmp.le.f32.partialorder %v3162, 0.7853982
        %vm3164 = vcmp.lt.s32.totalorder %v253, 0
        %v3165 = vand.u32 %v253, 2139095040
        %v3166 = vshrl.u32 %v3165, 23
        %v3167 = vsub.s32 %v3166, 127
        %v3168 = vand.u32 2147483647, %v253
        %v3169 = vand.u32 %v3168, 8388607
        %v3170 = vor.u32 %v3169, 8388608
        %v3171 = vsub.s32 0, %v3170
        %v3172 = vadd.s32 %v3167, 1
        %vm3173 = vcmp.gt.s32.totalorder %v3172, 0
        %v3174 = vsel %vm3173, %v3172, 0
        %v3175 = vshrl.u32 %v3174, 5
        %v3176 = vand.u32 %v3174, 31
        %v3177 = vsub.s32 32, %v3176
        %v3178 = vshrl.u32 683565275, %v3177
        %v3179 = vshll.u32 683565275, %v3176
        %v3180 = vshrl.u32 2475754826, %v3177
        %v3181 = vor.u32 %v3179, %v3180
        %v3182 = vshll.u32 2475754826, %v3176
        %v3183 = vshrl.u32 2131351028, %v3177
        %v3184 = vor.u32 %v3182, %v3183
        %v3185 = vshll.u32 2131351028, %v3176
        %v3186 = vshrl.u32 2102212464, %v3177
        %v3187 = vor.u32 %v3185, %v3186
        %v3188 = vshll.u32 2102212464, %v3176
        %v3189 = vshrl.u32 920167782, %v3177
        %v3190 = vor.u32 %v3188, %v3189
        %v3191 = vshll.u32 920167782, %v3176
        %v3192 = vshrl.u32 1326507024, %v3177
        %v3193 = vor.u32 %v3191, %v3192
        %vm3194 = vcmp.lt.s32.totalorder %v3175, 1
        %vm3195 = vcmp.lt.s32.totalorder %v3175, 2
        %vm3196 = vcmp.lt.s32.totalorder %v3175, 3
        %vm3197 = vcmp.lt.s32.totalorder %v3175, 4
        %v3198 = vsel %vm3194, %v3178, %v3181
        %v3199 = vsel %vm3197, %v3187, 2102212464
        %v3200 = vsel %vm3196, %v3184, %v3199
        %v3201 = vsel %vm3195, %v3198, %v3200
        %v3202 = vsel %vm3194, %v3181, %v3184
        %v3203 = vsel %vm3197, %v3190, 920167782
        %v3204 = vsel %vm3196, %v3187, %v3203
        %v3205 = vsel %vm3195, %v3202, %v3204
        %v3206 = vsel %vm3194, %v3184, %v3187
        %v3207 = vsel %vm3197, %v3193, 1326507024
        %v3208 = vsel %vm3196, %v3190, %v3207
        %v3209 = vsel %vm3195, %v3206, %v3208
        %v3210 = vshll.u32 %v3170, 8
        %v3211 = vand.u32 %v3210, 65535
        %v3212 = vshrl.u32 %v3210, 16
        %v3213 = vand.u32 %v3209, 65535
        %v3214 = vshrl.u32 %v3209, 16
        %v3215 = vmul.u32 %v3211, %v3213
        %v3216 = vmul.u32 %v3211, %v3214
        %v3217 = vmul.u32 %v3212, %v3213
        %v3218 = vmul.u32 %v3212, %v3214
        %v3219 = vshll.u32 %v3216, 16
        %v3220 = vshrl.u32 %v3216, 16
        %v3221 = vshll.u32 %v3217, 16
        %v3222 = vshrl.u32 %v3217, 16
        %vm3223 = vc.u32 %v3215, %v3219
        %v3224 = vsel %vm3223, 1, 0
        %v3225 = vadd.s32 %v3215, %v3219
        %v3226 = vadd.s32 %v3218, %v3224
        %vm3227 = vc.u32 %v3225, %v3221
        %v3228 = vsel %vm3227, 1, 0
        %v3229 = vadd.s32 %v3225, %v3221
        %v3230 = vadd.s32 %v3226, %v3228
        %v3231 = vadd.s32 %v3230, %v3220
        %v3232 = vadd.s32 %v3231, %v3222
        %v3233 = vand.u32 %v3210, 65535
        %v3234 = vshrl.u32 %v3210, 16
        %v3235 = vand.u32 %v3205, 65535
        %v3236 = vshrl.u32 %v3205, 16
        %v3237 = vmul.u32 %v3233, %v3235
        %v3238 = vmul.u32 %v3233, %v3236
        %v3239 = vmul.u32 %v3234, %v3235
        %v3240 = vmul.u32 %v3234, %v3236
        %v3241 = vshll.u32 %v3238, 16
        %v3242 = vshrl.u32 %v3238, 16
        %v3243 = vshll.u32 %v3239, 16
        %v3244 = vshrl.u32 %v3239, 16
        %vm3245 = vc.u32 %v3237, %v3241
        %v3246 = vsel %vm3245, 1, 0
        %v3247 = vadd.s32 %v3237, %v3241
        %v3248 = vadd.s32 %v3240, %v3246
        %vm3249 = vc.u32 %v3247, %v3243
        %v3250 = vsel %vm3249, 1, 0
        %v3251 = vadd.s32 %v3247, %v3243
        %v3252 = vadd.s32 %v3248, %v3250
        %v3253 = vadd.s32 %v3252, %v3242
        %v3254 = vadd.s32 %v3253, %v3244
        %v3255 = vmul.u32 %v3210, %v3201
        %v3256 = vadd.s32 %v3232, %v3251
        %vm3257 = vc.u32 %v3232, %v3251
        %v3258 = vadd.s32 %v3254, 1
        %v3259 = vsel %vm3257, %v3258, %v3254
        %v3260 = vadd.s32 %v3255, %v3259
        %v3261 = vadd.s32 %v3260, 536870912
        %v3262 = vshrl.u32 %v3261, 30
        %v3263 = vshll.u32 %v3262, 30
        %v3264 = vsub.s32 %v3260, %v3263
        %vm3265 = vcmp.lt.s32.totalorder %v3264, 0
        %v3266 = vsub.s32 0, %v3264
        %v3267 = vsel %vm3265, %v3266, %v3264
        %v3268 = vclz %v3267
        %v3269 = vsub.s32 %v3268, 2
        %vm3270 = vcmp.gt.s32.totalorder 0, %v3269
        %v3271 = vsel %vm3270, 0, %v3269
        %v3272 = vsub.s32 32, %v3271
        %v3273 = vshll.u32 %v3264, %v3271
        %v3274 = vshrl.u32 %v3256, %v3272
        %v3275 = vor.u32 %v3273, %v3274
        %v3276 = vsub.s32 4294967266, %v3271
        %v3277 = vadd.s32 %v3276, 127
        %v3278 = vshll.u32 %v3277, 23
        %v3279 = vor.u32 4788187, %v3278
        %v3280 = vand.u32 2147483647, %v3279
        %v3282 = vcvt.s32.f32 %v3275
        %v3283 = vmul.f32 %v3282, %v3280
        %v3284 = vxor.u32 %v3283, 2147483648
        %v3285 = vsel %vm3164, %v3284, %v3283
        %v3286 = vsub.s32 4, %v3262
        %v3287 = vsel %vm3164, %v3286, %v3262
        %v3288 = vsel %vm3163, %v253, %v3285
        %v3289 = vsel %vm3163, 0, %v3287
        %v3290 = vmul.f32 %v3288, %v3288
        %v3291 = vmul.f32 %v3290, -0.001358992
        %v3292 = vadd.f32 %v3291, 0.041655596
        %v3293 = vmul.f32 %v3290, %v3292
        %v3294 = vadd.f32 %v3293, -0.4999988
        %v3295 = vmul.f32 %v3290, %v3294
        %v3296 = vadd.f32 1.0, %v3295
        %v3297 = vmul.f32 %v3288, %v3288
        %v3298 = vmul.f32 %v3297, -0.00019511016
        %v3299 = vadd.f32 %v3298, 0.008332121
        %v3300 = vmul.f32 %v3297, %v3299
        %v3301 = vadd.f32 %v3300, -0.16666654
        %v3302 = vmul.f32 %v3297, %v3301
        %v3303 = vadd.f32 %v3302, 1.0
        %v3304 = vmul.f32 %v3303, %v3288
        %vm3305 = vweird.f32 %v253
        %v3306 = vand.u32 %v3289, 3
        %vm3307 = vcmp.lt.s32.totalorder %v3306, 2
        %vm3308 = vcmp.eq.s32.totalorder %v3306, 0
        %v3309 = vxor.u32 %v3304, 2147483648
        %v3310 = vsel %vm3308, %v3296, %v3309
        %vm3311 = vcmp.eq.s32.totalorder %v3306, 2
        %v3312 = vxor.u32 %v3296, 2147483648
        %v3313 = vsel %vm3311, %v3312, %v3304
        %v3314 = vsel %vm3307, %v3310, %v3313
        %v3315 = vsel %vm3305, nan, %v3314
        %v3316 = vand.u32 2147483647, %v254
        %vm3317 = vcmp.le.f32.partialorder %v3316, 0.7853982
        %vm3318 = vcmp.lt.s32.totalorder %v254, 0
        %v3319 = vand.u32 %v254, 2139095040
        %v3320 = vshrl.u32 %v3319, 23
        %v3321 = vsub.s32 %v3320, 127
        %v3322 = vand.u32 2147483647, %v254
        %v3323 = vand.u32 %v3322, 8388607
        %v3324 = vor.u32 %v3323, 8388608
        %v3325 = vsub.s32 0, %v3324
        %v3326 = vadd.s32 %v3321, 1
        %vm3327 = vcmp.gt.s32.totalorder %v3326, 0
        %v3328 = vsel %vm3327, %v3326, 0
        %v3329 = vshrl.u32 %v3328, 5
        %v3330 = vand.u32 %v3328, 31
        %v3331 = vsub.s32 32, %v3330
        %v3332 = vshrl.u32 683565275, %v3331
        %v3333 = vshll.u32 683565275, %v3330
        %v3334 = vshrl.u32 2475754826, %v3331
        %v3335 = vor.u32 %v3333, %v3334
        %v3336 = vshll.u32 2475754826, %v3330
        %v3337 = vshrl.u32 2131351028, %v3331
        %v3338 = vor.u32 %v3336, %v3337
        %v3339 = vshll.u32 2131351028, %v3330
        %v3340 = vshrl.u32 2102212464, %v3331
        %v3341 = vor.u32 %v3339, %v3340
        %v3342 = vshll.u32 2102212464, %v3330
        %v3343 = vshrl.u32 920167782, %v3331
        %v3344 = vor.u32 %v3342, %v3343
        %v3345 = vshll.u32 920167782, %v3330
        %v3346 = vshrl.u32 1326507024, %v3331
        %v3347 = vor.u32 %v3345, %v3346
        %vm3348 = vcmp.lt.s32.totalorder %v3329, 1
        %vm3349 = vcmp.lt.s32.totalorder %v3329, 2
        %vm3350 = vcmp.lt.s32.totalorder %v3329, 3
        %vm3351 = vcmp.lt.s32.totalorder %v3329, 4
        %v3352 = vsel %vm3348, %v3332, %v3335
        %v3353 = vsel %vm3351, %v3341, 2102212464
        %v3354 = vsel %vm3350, %v3338, %v3353
        %v3355 = vsel %vm3349, %v3352, %v3354
        %v3356 = vsel %vm3348, %v3335, %v3338
        %v3357 = vsel %vm3351, %v3344, 920167782
        %v3358 = vsel %vm3350, %v3341, %v3357
        %v3359 = vsel %vm3349, %v3356, %v3358
        %v3360 = vsel %vm3348, %v3338, %v3341
        %v3361 = vsel %vm3351, %v3347, 1326507024
        %v3362 = vsel %vm3350, %v3344, %v3361
        %v3363 = vsel %vm3349, %v3360, %v3362
        %v3364 = vshll.u32 %v3324, 8
        %v3365 = vand.u32 %v3364, 65535
        %v3366 = vshrl.u32 %v3364, 16
        %v3367 = vand.u32 %v3363, 65535
        %v3368 = vshrl.u32 %v3363, 16
        %v3369 = vmul.u32 %v3365, %v3367
        %v3370 = vmul.u32 %v3365, %v3368
        %v3371 = vmul.u32 %v3366, %v3367
        %v3372 = vmul.u32 %v3366, %v3368
        %v3373 = vshll.u32 %v3370, 16
        %v3374 = vshrl.u32 %v3370, 16
        %v3375 = vshll.u32 %v3371, 16
        %v3376 = vshrl.u32 %v3371, 16
        %vm3377 = vc.u32 %v3369, %v3373
        %v3378 = vsel %vm3377, 1, 0
        %v3379 = vadd.s32 %v3369, %v3373
        %v3380 = vadd.s32 %v3372, %v3378
        %vm3381 = vc.u32 %v3379, %v3375
        %v3382 = vsel %vm3381, 1, 0
        %v3383 = vadd.s32 %v3379, %v3375
        %v3384 = vadd.s32 %v3380, %v3382
        %v3385 = vadd.s32 %v3384, %v3374
        %v3386 = vadd.s32 %v3385, %v3376
        %v3387 = vand.u32 %v3364, 65535
        %v3388 = vshrl.u32 %v3364, 16
        %v3389 = vand.u32 %v3359, 65535
        %v3390 = vshrl.u32 %v3359, 16
        %v3391 = vmul.u32 %v3387, %v3389
        %v3392 = vmul.u32 %v3387, %v3390
        %v3393 = vmul.u32 %v3388, %v3389
        %v3394 = vmul.u32 %v3388, %v3390
        %v3395 = vshll.u32 %v3392, 16
        %v3396 = vshrl.u32 %v3392, 16
        %v3397 = vshll.u32 %v3393, 16
        %v3398 = vshrl.u32 %v3393, 16
        %vm3399 = vc.u32 %v3391, %v3395
        %v3400 = vsel %vm3399, 1, 0
        %v3401 = vadd.s32 %v3391, %v3395
        %v3402 = vadd.s32 %v3394, %v3400
        %vm3403 = vc.u32 %v3401, %v3397
        %v3404 = vsel %vm3403, 1, 0
        %v3405 = vadd.s32 %v3401, %v3397
        %v3406 = vadd.s32 %v3402, %v3404
        %v3407 = vadd.s32 %v3406, %v3396
        %v3408 = vadd.s32 %v3407, %v3398
        %v3409 = vmul.u32 %v3364, %v3355
        %v3410 = vadd.s32 %v3386, %v3405
        %vm3411 = vc.u32 %v3386, %v3405
        %v3412 = vadd.s32 %v3408, 1
        %v3413 = vsel %vm3411, %v3412, %v3408
        %v3414 = vadd.s32 %v3409, %v3413
        %v3415 = vadd.s32 %v3414, 536870912
        %v3416 = vshrl.u32 %v3415, 30
        %v3417 = vshll.u32 %v3416, 30
        %v3418 = vsub.s32 %v3414, %v3417
        %vm3419 = vcmp.lt.s32.totalorder %v3418, 0
        %v3420 = vsub.s32 0, %v3418
        %v3421 = vsel %vm3419, %v3420, %v3418
        %v3422 = vclz %v3421
        %v3423 = vsub.s32 %v3422, 2
        %vm3424 = vcmp.gt.s32.totalorder 0, %v3423
        %v3425 = vsel %vm3424, 0, %v3423
        %v3426 = vsub.s32 32, %v3425
        %v3427 = vshll.u32 %v3418, %v3425
        %v3428 = vshrl.u32 %v3410, %v3426
        %v3429 = vor.u32 %v3427, %v3428
        %v3430 = vsub.s32 4294967266, %v3425
        %v3431 = vadd.s32 %v3430, 127
        %v3432 = vshll.u32 %v3431, 23
        %v3433 = vor.u32 4788187, %v3432
        %v3434 = vand.u32 2147483647, %v3433
        %v3436 = vcvt.s32.f32 %v3429
        %v3437 = vmul.f32 %v3436, %v3434
        %v3438 = vxor.u32 %v3437, 2147483648
        %v3439 = vsel %vm3318, %v3438, %v3437
        %v3440 = vsub.s32 4, %v3416
        %v3441 = vsel %vm3318, %v3440, %v3416
        %v3442 = vsel %vm3317, %v254, %v3439
        %v3443 = vsel %vm3317, 0, %v3441
        %v3444 = vmul.f32 %v3442, %v3442
        %v3445 = vmul.f32 %v3444, -0.001358992
        %v3446 = vadd.f32 %v3445, 0.041655596
        %v3447 = vmul.f32 %v3444, %v3446
        %v3448 = vadd.f32 %v3447, -0.4999988
        %v3449 = vmul.f32 %v3444, %v3448
        %v3450 = vadd.f32 1.0, %v3449
        %v3451 = vmul.f32 %v3442, %v3442
        %v3452 = vmul.f32 %v3451, -0.00019511016
        %v3453 = vadd.f32 %v3452, 0.008332121
        %v3454 = vmul.f32 %v3451, %v3453
        %v3455 = vadd.f32 %v3454, -0.16666654
        %v3456 = vmul.f32 %v3451, %v3455
        %v3457 = vadd.f32 %v3456, 1.0
        %v3458 = vmul.f32 %v3457, %v3442
        %vm3459 = vweird.f32 %v254
        %v3460 = vand.u32 %v3443, 3
        %vm3461 = vcmp.lt.s32.totalorder %v3460, 2
        %vm3462 = vcmp.eq.s32.totalorder %v3460, 0
        %v3463 = vxor.u32 %v3458, 2147483648
        %v3464 = vsel %vm3462, %v3450, %v3463
        %vm3465 = vcmp.eq.s32.totalorder %v3460, 2
        %v3466 = vxor.u32 %v3450, 2147483648
        %v3467 = vsel %vm3465, %v3466, %v3458
        %v3468 = vsel %vm3461, %v3464, %v3467
        %v3469 = vsel %vm3459, nan, %v3468
        %3480 = vst [vmem:[#allocation1] ss:$2 sm:$0xff] %v534
        %s3481 = scalar_lea.vmem [#allocation1], 16
        %3482 = vst [vmem:[%s3481] ss:$2 sm:$0xff] %v689
        %s3483 = scalar_lea.vmem [#allocation1], 32
        %3484 = vst [vmem:[%s3483] ss:$2 sm:$0xff] %v844
        %s3485 = scalar_lea.vmem [#allocation1], 48
        %3486 = vst [vmem:[%s3485] ss:$2 sm:$0xff] %v999
        %v3487 = vld.sshfl [vmem:[#allocation1] sm:$0xff pattern:$0x75316420]
        %v3488 = vld.sshfl [vmem:[#allocation1 + $0x8] sm:$0xff pattern:$0x75316420]
        %v3489 = vld.sshfl [vmem:[#allocation1 + $0x10] sm:$0xff pattern:$0x75316420]
        %v3490 = vld.sshfl [vmem:[#allocation1 + $0x18] sm:$0xff pattern:$0x75316420]
        %v3491 = vld.sshfl [vmem:[#allocation1 + $0x20] sm:$0xff pattern:$0x75316420]
        %v3492 = vld.sshfl [vmem:[#allocation1 + $0x28] sm:$0xff pattern:$0x75316420]
        %v3493 = vld.sshfl [vmem:[#allocation1 + $0x30] sm:$0xff pattern:$0x75316420]
        %v3494 = vld.sshfl [vmem:[#allocation1 + $0x38] sm:$0xff pattern:$0x75316420]
        %3495 = vst [vmem:[#allocation1] ss:$2 sm:$0xff] %v1154
        %3496 = vst [vmem:[%s3481] ss:$2 sm:$0xff] %v1309
        %3497 = vst [vmem:[%s3483] ss:$2 sm:$0xff] %v1464
        %3498 = vst [vmem:[%s3485] ss:$2 sm:$0xff] %v1619
        %v3499 = vld.sshfl [vmem:[#allocation1] sm:$0xff pattern:$0x75316420]
        %v3500 = vld.sshfl [vmem:[#allocation1 + $0x8] sm:$0xff pattern:$0x75316420]
        %v3501 = vld.sshfl [vmem:[#allocation1 + $0x10] sm:$0xff pattern:$0x75316420]
        %v3502 = vld.sshfl [vmem:[#allocation1 + $0x18] sm:$0xff pattern:$0x75316420]
        %v3503 = vld.sshfl [vmem:[#allocation1 + $0x20] sm:$0xff pattern:$0x75316420]
        %v3504 = vld.sshfl [vmem:[#allocation1 + $0x28] sm:$0xff pattern:$0x75316420]
        %v3505 = vld.sshfl [vmem:[#allocation1 + $0x30] sm:$0xff pattern:$0x75316420]
        %v3506 = vld.sshfl [vmem:[#allocation1 + $0x38] sm:$0xff pattern:$0x75316420]
        %3507 = vst [vmem:[#allocation1] ss:$2 sm:$0xff] %v1774
        %3508 = vst [vmem:[%s3481] ss:$2 sm:$0xff] %v1929
        %v3509 = vld.sshfl [vmem:[#allocation1] sm:$0xff pattern:$0x75316420]
        %v3510 = vld.sshfl [vmem:[#allocation1 + $0x8] sm:$0xff pattern:$0x75316420]
        %v3511 = vld.sshfl [vmem:[#allocation1 + $0x10] sm:$0xff pattern:$0x75316420]
        %v3512 = vld.sshfl [vmem:[#allocation1 + $0x18] sm:$0xff pattern:$0x75316420]
        %3533 = vst [vmem:[#allocation2 + $0xa0] sm:$0x7] %v3487
        %3534 = vst [vmem:[#allocation2 + $0xa8] sm:$0x7] %v3488
        %3535 = vst [vmem:[#allocation2 + $0xb0] sm:$0x7] %v3489
        %3536 = vst [vmem:[#allocation2 + $0xb8] sm:$0x7] %v3490
        %3537 = vst [vmem:[#allocation2 + $0xc0] sm:$0x7] %v3491
        %3538 = vst [vmem:[#allocation2 + $0xc8] sm:$0x7] %v3492
        %3539 = vst [vmem:[#allocation2 + $0xd0] sm:$0x7] %v3493
        %3540 = vst [vmem:[#allocation2 + $0xd8] sm:$0x7] %v3494
        %3541 = vst [vmem:[#allocation2 + $0xe0] sm:$0x7] %v3499
        %3542 = vst [vmem:[#allocation2 + $0xe8] sm:$0x7] %v3500
        %3543 = vst [vmem:[#allocation2 + $0xf0] sm:$0x7] %v3501
        %3544 = vst [vmem:[#allocation2 + $0xf8] sm:$0x7] %v3502
        %3545 = vst [vmem:[#allocation2 + $0x100] sm:$0x7] %v3503
        %3546 = vst [vmem:[#allocation2 + $0x108] sm:$0x7] %v3504
        %3547 = vst [vmem:[#allocation2 + $0x110] sm:$0x7] %v3505
        %3548 = vst [vmem:[#allocation2 + $0x118] sm:$0x7] %v3506
        %3549 = vst [vmem:[#allocation2 + $0x120] sm:$0x7] %v3509
        %3550 = vst [vmem:[#allocation2 + $0x128] sm:$0x7] %v3510
        %3551 = vst [vmem:[#allocation2 + $0x130] sm:$0x7] %v3511
        %3552 = vst [vmem:[#allocation2 + $0x138] sm:$0x7] %v3512
        %3563 = vst [vmem:[#allocation1] ss:$2 sm:$0xff] %v2083
        %s3564 = scalar_lea.vmem [#allocation1], 16
        %3565 = vst [vmem:[%s3564] ss:$2 sm:$0xff] %v2237
        %s3566 = scalar_lea.vmem [#allocation1], 32
        %3567 = vst [vmem:[%s3566] ss:$2 sm:$0xff] %v2391
        %s3568 = scalar_lea.vmem [#allocation1], 48
        %3569 = vst [vmem:[%s3568] ss:$2 sm:$0xff] %v2545
        %v3570 = vld.sshfl [vmem:[#allocation1] sm:$0xff pattern:$0x75316420]
        %v3571 = vld.sshfl [vmem:[#allocation1 + $0x8] sm:$0xff pattern:$0x75316420]
        %v3572 = vld.sshfl [vmem:[#allocation1 + $0x10] sm:$0xff pattern:$0x75316420]
        %v3573 = vld.sshfl [vmem:[#allocation1 + $0x18] sm:$0xff pattern:$0x75316420]
        %v3574 = vld.sshfl [vmem:[#allocation1 + $0x20] sm:$0xff pattern:$0x75316420]
        %v3575 = vld.sshfl [vmem:[#allocation1 + $0x28] sm:$0xff pattern:$0x75316420]
        %v3576 = vld.sshfl [vmem:[#allocation1 + $0x30] sm:$0xff pattern:$0x75316420]
        %v3577 = vld.sshfl [vmem:[#allocation1 + $0x38] sm:$0xff pattern:$0x75316420]
        %3578 = vst [vmem:[#allocation1] ss:$2 sm:$0xff] %v2699
        %3579 = vst [vmem:[%s3564] ss:$2 sm:$0xff] %v2853
        %3580 = vst [vmem:[%s3566] ss:$2 sm:$0xff] %v3007
        %3581 = vst [vmem:[%s3568] ss:$2 sm:$0xff] %v3161
        %v3582 = vld.sshfl [vmem:[#allocation1] sm:$0xff pattern:$0x75316420]
        %v3583 = vld.sshfl [vmem:[#allocation1 + $0x8] sm:$0xff pattern:$0x75316420]
        %v3584 = vld.sshfl [vmem:[#allocation1 + $0x10] sm:$0xff pattern:$0x75316420]
        %v3585 = vld.sshfl [vmem:[#allocation1 + $0x18] sm:$0xff pattern:$0x75316420]
        %v3586 = vld.sshfl [vmem:[#allocation1 + $0x20] sm:$0xff pattern:$0x75316420]
        %v3587 = vld.sshfl [vmem:[#allocation1 + $0x28] sm:$0xff pattern:$0x75316420]
        %v3588 = vld.sshfl [vmem:[#allocation1 + $0x30] sm:$0xff pattern:$0x75316420]
        %v3589 = vld.sshfl [vmem:[#allocation1 + $0x38] sm:$0xff pattern:$0x75316420]
        %3590 = vst [vmem:[#allocation1] ss:$2 sm:$0xff] %v3315
        %3591 = vst [vmem:[%s3564] ss:$2 sm:$0xff] %v3469
        %v3592 = vld.sshfl [vmem:[#allocation1] sm:$0xff pattern:$0x75316420]
        %v3593 = vld.sshfl [vmem:[#allocation1 + $0x8] sm:$0xff pattern:$0x75316420]
        %v3594 = vld.sshfl [vmem:[#allocation1 + $0x10] sm:$0xff pattern:$0x75316420]
        %v3595 = vld.sshfl [vmem:[#allocation1 + $0x18] sm:$0xff pattern:$0x75316420]
        %3616 = vst [vmem:[#allocation2 + $0x1e0] sm:$0x7] %v3570
        %3617 = vst [vmem:[#allocation2 + $0x1e8] sm:$0x7] %v3571
        %3618 = vst [vmem:[#allocation2 + $0x1f0] sm:$0x7] %v3572
        %3619 = vst [vmem:[#allocation2 + $0x1f8] sm:$0x7] %v3573
        %3620 = vst [vmem:[#allocation2 + $0x200] sm:$0x7] %v3574
        %3621 = vst [vmem:[#allocation2 + $0x208] sm:$0x7] %v3575
        %3622 = vst [vmem:[#allocation2 + $0x210] sm:$0x7] %v3576
        %3623 = vst [vmem:[#allocation2 + $0x218] sm:$0x7] %v3577
        %3624 = vst [vmem:[#allocation2 + $0x220] sm:$0x7] %v3582
        %3625 = vst [vmem:[#allocation2 + $0x228] sm:$0x7] %v3583
        %3626 = vst [vmem:[#allocation2 + $0x230] sm:$0x7] %v3584
        %3627 = vst [vmem:[#allocation2 + $0x238] sm:$0x7] %v3585
        %3628 = vst [vmem:[#allocation2 + $0x240] sm:$0x7] %v3586
        %3629 = vst [vmem:[#allocation2 + $0x248] sm:$0x7] %v3587
        %3630 = vst [vmem:[#allocation2 + $0x250] sm:$0x7] %v3588
        %3631 = vst [vmem:[#allocation2 + $0x258] sm:$0x7] %v3589
        %3632 = vst [vmem:[#allocation2 + $0x260] sm:$0x7] %v3592
        %3633 = vst [vmem:[#allocation2 + $0x268] sm:$0x7] %v3593
        %3634 = vst [vmem:[#allocation2 + $0x270] sm:$0x7] %v3594
        %3635 = vst [vmem:[#allocation2 + $0x278] sm:$0x7] %v3595
        %v3636 = vmul.f32 %v534, 2.0
        %v3637 = vmul.f32 %v689, 2.0
        %v3638 = vmul.f32 %v844, 2.0
        %v3639 = vmul.f32 %v999, 2.0
        %v3640 = vmul.f32 %v1154, 2.0
        %v3641 = vmul.f32 %v1309, 2.0
        %v3642 = vmul.f32 %v1464, 2.0
        %v3643 = vmul.f32 %v1619, 2.0
        %v3644 = vmul.f32 %v1774, 2.0
        %v3645 = vmul.f32 %v1929, 2.0
        %v3646 = vmul.f32 %v3636, %v2083
        %v3647 = vmul.f32 %v3637, %v2237
        %v3648 = vmul.f32 %v3638, %v2391
        %v3649 = vmul.f32 %v3639, %v2545
        %v3650 = vmul.f32 %v3640, %v2699
        %v3651 = vmul.f32 %v3641, %v2853
        %v3652 = vmul.f32 %v3642, %v3007
        %v3653 = vmul.f32 %v3643, %v3161
        %v3654 = vmul.f32 %v3644, %v3315
        %v3655 = vmul.f32 %v3645, %v3469
        %v3656 = vmul.f32 %v3636, %v534
        %v3657 = vmul.f32 %v3637, %v689
        %v3658 = vmul.f32 %v3638, %v844
        %v3659 = vmul.f32 %v3639, %v999
        %v3660 = vmul.f32 %v3640, %v1154
        %v3661 = vmul.f32 %v3641, %v1309
        %v3662 = vmul.f32 %v3642, %v1464
        %v3663 = vmul.f32 %v3643, %v1619
        %v3664 = vmul.f32 %v3644, %v1774
        %v3665 = vmul.f32 %v3645, %v1929
        %v3666 = vsub.f32 1.0, %v3656
        %v3667 = vsub.f32 1.0, %v3657
        %v3668 = vsub.f32 1.0, %v3658
        %v3669 = vsub.f32 1.0, %v3659
        %v3670 = vsub.f32 1.0, %v3660
        %v3671 = vsub.f32 1.0, %v3661
        %v3672 = vsub.f32 1.0, %v3662
        %v3673 = vsub.f32 1.0, %v3663
        %v3674 = vsub.f32 1.0, %v3664
        %v3675 = vsub.f32 1.0, %v3665
        %3686 = vst [vmem:[#allocation1] ss:$2 sm:$0xff] %v3646
        %s3687 = scalar_lea.vmem [#allocation1], 16
        %3688 = vst [vmem:[%s3687] ss:$2 sm:$0xff] %v3647
        %s3689 = scalar_lea.vmem [#allocation1], 32
        %3690 = vst [vmem:[%s3689] ss:$2 sm:$0xff] %v3648
        %s3691 = scalar_lea.vmem [#allocation1], 48
        %3692 = vst [vmem:[%s3691] ss:$2 sm:$0xff] %v3649
        %v3693 = vld.sshfl [vmem:[#allocation1] sm:$0xff pattern:$0x75316420]
        %v3694 = vld.sshfl [vmem:[#allocation1 + $0x8] sm:$0xff pattern:$0x75316420]
        %v3695 = vld.sshfl [vmem:[#allocation1 + $0x10] sm:$0xff pattern:$0x75316420]
        %v3696 = vld.sshfl [vmem:[#allocation1 + $0x18] sm:$0xff pattern:$0x75316420]
        %v3697 = vld.sshfl [vmem:[#allocation1 + $0x20] sm:$0xff pattern:$0x75316420]
        %v3698 = vld.sshfl [vmem:[#allocation1 + $0x28] sm:$0xff pattern:$0x75316420]
        %v3699 = vld.sshfl [vmem:[#allocation1 + $0x30] sm:$0xff pattern:$0x75316420]
        %v3700 = vld.sshfl [vmem:[#allocation1 + $0x38] sm:$0xff pattern:$0x75316420]
        %3701 = vst [vmem:[#allocation1] ss:$2 sm:$0xff] %v3650
        %3702 = vst [vmem:[%s3687] ss:$2 sm:$0xff] %v3651
        %3703 = vst [vmem:[%s3689] ss:$2 sm:$0xff] %v3652
        %3704 = vst [vmem:[%s3691] ss:$2 sm:$0xff] %v3653
        %v3705 = vld.sshfl [vmem:[#allocation1] sm:$0xff pattern:$0x75316420]
        %v3706 = vld.sshfl [vmem:[#allocation1 + $0x8] sm:$0xff pattern:$0x75316420]
        %v3707 = vld.sshfl [vmem:[#allocation1 + $0x10] sm:$0xff pattern:$0x75316420]
        %v3708 = vld.sshfl [vmem:[#allocation1 + $0x18] sm:$0xff pattern:$0x75316420]
        %v3709 = vld.sshfl [vmem:[#allocation1 + $0x20] sm:$0xff pattern:$0x75316420]
        %v3710 = vld.sshfl [vmem:[#allocation1 + $0x28] sm:$0xff pattern:$0x75316420]
        %v3711 = vld.sshfl [vmem:[#allocation1 + $0x30] sm:$0xff pattern:$0x75316420]
        %v3712 = vld.sshfl [vmem:[#allocation1 + $0x38] sm:$0xff pattern:$0x75316420]
        %3713 = vst [vmem:[#allocation1] ss:$2 sm:$0xff] %v3654
        %3714 = vst [vmem:[%s3687] ss:$2 sm:$0xff] %v3655
        %v3715 = vld.sshfl [vmem:[#allocation1] sm:$0xff pattern:$0x75316420]
        %v3716 = vld.sshfl [vmem:[#allocation1 + $0x8] sm:$0xff pattern:$0x75316420]
        %v3717 = vld.sshfl [vmem:[#allocation1 + $0x10] sm:$0xff pattern:$0x75316420]
        %v3718 = vld.sshfl [vmem:[#allocation1 + $0x18] sm:$0xff pattern:$0x75316420]
        %v3719 = vrot.slane %v3693, 5
        %v3720 = vrot.slane %v3694, 5
        %v3721 = vrot.slane %v3695, 5
        %v3722 = vrot.slane %v3696, 5
        %v3723 = vrot.slane %v3697, 5
        %v3724 = vrot.slane %v3698, 5
        %v3725 = vrot.slane %v3699, 5
        %v3726 = vrot.slane %v3700, 5
        %v3727 = vrot.slane %v3705, 5
        %v3728 = vrot.slane %v3706, 5
        %v3729 = vrot.slane %v3707, 5
        %v3730 = vrot.slane %v3708, 5
        %v3731 = vrot.slane %v3709, 5
        %v3732 = vrot.slane %v3710, 5
        %v3733 = vrot.slane %v3711, 5
        %v3734 = vrot.slane %v3712, 5
        %v3735 = vrot.slane %v3715, 5
        %v3736 = vrot.slane %v3716, 5
        %v3737 = vrot.slane %v3717, 5
        %v3738 = vrot.slane %v3718, 5
        %3759 = vst [vmem:[#allocation2 + $0xa0] sm:$0x38] %v3719
        %3760 = vst [vmem:[#allocation2 + $0xa8] sm:$0x38] %v3720
        %3761 = vst [vmem:[#allocation2 + $0xb0] sm:$0x38] %v3721
        %3762 = vst [vmem:[#allocation2 + $0xb8] sm:$0x38] %v3722
        %3763 = vst [vmem:[#allocation2 + $0xc0] sm:$0x38] %v3723
        %3764 = vst [vmem:[#allocation2 + $0xc8] sm:$0x38] %v3724
        %3765 = vst [vmem:[#allocation2 + $0xd0] sm:$0x38] %v3725
        %3766 = vst [vmem:[#allocation2 + $0xd8] sm:$0x38] %v3726
        %3767 = vst [vmem:[#allocation2 + $0xe0] sm:$0x38] %v3727
        %3768 = vst [vmem:[#allocation2 + $0xe8] sm:$0x38] %v3728
        %3769 = vst [vmem:[#allocation2 + $0xf0] sm:$0x38] %v3729
        %3770 = vst [vmem:[#allocation2 + $0xf8] sm:$0x38] %v3730
        %3771 = vst [vmem:[#allocation2 + $0x100] sm:$0x38] %v3731
        %3772 = vst [vmem:[#allocation2 + $0x108] sm:$0x38] %v3732
        %3773 = vst [vmem:[#allocation2 + $0x110] sm:$0x38] %v3733
        %3774 = vst [vmem:[#allocation2 + $0x118] sm:$0x38] %v3734
        %3775 = vst [vmem:[#allocation2 + $0x120] sm:$0x38] %v3735
        %3776 = vst [vmem:[#allocation2 + $0x128] sm:$0x38] %v3736
        %3777 = vst [vmem:[#allocation2 + $0x130] sm:$0x38] %v3737
        %3778 = vst [vmem:[#allocation2 + $0x138] sm:$0x38] %v3738
        %3789 = vst [vmem:[#allocation1] ss:$2 sm:$0xff] %v3666
        %s3790 = scalar_lea.vmem [#allocation1], 16
        %3791 = vst [vmem:[%s3790] ss:$2 sm:$0xff] %v3667
        %s3792 = scalar_lea.vmem [#allocation1], 32
        %3793 = vst [vmem:[%s3792] ss:$2 sm:$0xff] %v3668
        %s3794 = scalar_lea.vmem [#allocation1], 48
        %3795 = vst [vmem:[%s3794] ss:$2 sm:$0xff] %v3669
        %v3796 = vld.sshfl [vmem:[#allocation1] sm:$0xff pattern:$0x75316420]
        %v3797 = vld.sshfl [vmem:[#allocation1 + $0x8] sm:$0xff pattern:$0x75316420]
        %v3798 = vld.sshfl [vmem:[#allocation1 + $0x10] sm:$0xff pattern:$0x75316420]
        %v3799 = vld.sshfl [vmem:[#allocation1 + $0x18] sm:$0xff pattern:$0x75316420]
        %v3800 = vld.sshfl [vmem:[#allocation1 + $0x20] sm:$0xff pattern:$0x75316420]
        %v3801 = vld.sshfl [vmem:[#allocation1 + $0x28] sm:$0xff pattern:$0x75316420]
        %v3802 = vld.sshfl [vmem:[#allocation1 + $0x30] sm:$0xff pattern:$0x75316420]
        %v3803 = vld.sshfl [vmem:[#allocation1 + $0x38] sm:$0xff pattern:$0x75316420]
        %3804 = vst [vmem:[#allocation1] ss:$2 sm:$0xff] %v3670
        %3805 = vst [vmem:[%s3790] ss:$2 sm:$0xff] %v3671
        %3806 = vst [vmem:[%s3792] ss:$2 sm:$0xff] %v3672
        %3807 = vst [vmem:[%s3794] ss:$2 sm:$0xff] %v3673
        %v3808 = vld.sshfl [vmem:[#allocation1] sm:$0xff pattern:$0x75316420]
        %v3809 = vld.sshfl [vmem:[#allocation1 + $0x8] sm:$0xff pattern:$0x75316420]
        %v3810 = vld.sshfl [vmem:[#allocation1 + $0x10] sm:$0xff pattern:$0x75316420]
        %v3811 = vld.sshfl [vmem:[#allocation1 + $0x18] sm:$0xff pattern:$0x75316420]
        %v3812 = vld.sshfl [vmem:[#allocation1 + $0x20] sm:$0xff pattern:$0x75316420]
        %v3813 = vld.sshfl [vmem:[#allocation1 + $0x28] sm:$0xff pattern:$0x75316420]
        %v3814 = vld.sshfl [vmem:[#allocation1 + $0x30] sm:$0xff pattern:$0x75316420]
        %v3815 = vld.sshfl [vmem:[#allocation1 + $0x38] sm:$0xff pattern:$0x75316420]
        %3816 = vst [vmem:[#allocation1] ss:$2 sm:$0xff] %v3674
        %3817 = vst [vmem:[%s3790] ss:$2 sm:$0xff] %v3675
        %v3818 = vld.sshfl [vmem:[#allocation1] sm:$0xff pattern:$0x75316420]
        %v3819 = vld.sshfl [vmem:[#allocation1 + $0x8] sm:$0xff pattern:$0x75316420]
        %v3820 = vld.sshfl [vmem:[#allocation1 + $0x10] sm:$0xff pattern:$0x75316420]
        %v3821 = vld.sshfl [vmem:[#allocation1 + $0x18] sm:$0xff pattern:$0x75316420]
        %v3822 = vrot.slane %v3796, 5
        %v3823 = vrot.slane %v3797, 5
        %v3824 = vrot.slane %v3798, 5
        %v3825 = vrot.slane %v3799, 5
        %v3826 = vrot.slane %v3800, 5
        %v3827 = vrot.slane %v3801, 5
        %v3828 = vrot.slane %v3802, 5
        %v3829 = vrot.slane %v3803, 5
        %v3830 = vrot.slane %v3808, 5
        %v3831 = vrot.slane %v3809, 5
        %v3832 = vrot.slane %v3810, 5
        %v3833 = vrot.slane %v3811, 5
        %v3834 = vrot.slane %v3812, 5
        %v3835 = vrot.slane %v3813, 5
        %v3836 = vrot.slane %v3814, 5
        %v3837 = vrot.slane %v3815, 5
        %v3838 = vrot.slane %v3818, 5
        %v3839 = vrot.slane %v3819, 5
        %v3840 = vrot.slane %v3820, 5
        %v3841 = vrot.slane %v3821, 5
        %3862 = vst [vmem:[#allocation2 + $0x1e0] sm:$0x38] %v3822
        %3863 = vst [vmem:[#allocation2 + $0x1e8] sm:$0x38] %v3823
        %3864 = vst [vmem:[#allocation2 + $0x1f0] sm:$0x38] %v3824
        %3865 = vst [vmem:[#allocation2 + $0x1f8] sm:$0x38] %v3825
        %3866 = vst [vmem:[#allocation2 + $0x200] sm:$0x38] %v3826
        %3867 = vst [vmem:[#allocation2 + $0x208] sm:$0x38] %v3827
        %3868 = vst [vmem:[#allocation2 + $0x210] sm:$0x38] %v3828
        %3869 = vst [vmem:[#allocation2 + $0x218] sm:$0x38] %v3829
        %3870 = vst [vmem:[#allocation2 + $0x220] sm:$0x38] %v3830
        %3871 = vst [vmem:[#allocation2 + $0x228] sm:$0x38] %v3831
        %3872 = vst [vmem:[#allocation2 + $0x230] sm:$0x38] %v3832
        %3873 = vst [vmem:[#allocation2 + $0x238] sm:$0x38] %v3833
        %3874 = vst [vmem:[#allocation2 + $0x240] sm:$0x38] %v3834
        %3875 = vst [vmem:[#allocation2 + $0x248] sm:$0x38] %v3835
        %3876 = vst [vmem:[#allocation2 + $0x250] sm:$0x38] %v3836
        %3877 = vst [vmem:[#allocation2 + $0x258] sm:$0x38] %v3837
        %3878 = vst [vmem:[#allocation2 + $0x260] sm:$0x38] %v3838
        %3879 = vst [vmem:[#allocation2 + $0x268] sm:$0x38] %v3839
        %3880 = vst [vmem:[#allocation2 + $0x270] sm:$0x38] %v3840
        %3881 = vst [vmem:[#allocation2 + $0x278] sm:$0x38] %v3841
        %v3882 = vmul.f32 %v3646, 2.0
        %v3883 = vmul.f32 %v3647, 2.0
        %v3884 = vmul.f32 %v3648, 2.0
        %v3885 = vmul.f32 %v3649, 2.0
        %v3886 = vmul.f32 %v3650, 2.0
        %v3887 = vmul.f32 %v3651, 2.0
        %v3888 = vmul.f32 %v3652, 2.0
        %v3889 = vmul.f32 %v3653, 2.0
        %v3890 = vmul.f32 %v3654, 2.0
        %v3891 = vmul.f32 %v3655, 2.0
        %v3892 = vmul.f32 %v3882, %v3666
        %v3893 = vmul.f32 %v3883, %v3667
        %v3894 = vmul.f32 %v3884, %v3668
        %v3895 = vmul.f32 %v3885, %v3669
        %v3896 = vmul.f32 %v3886, %v3670
        %v3897 = vmul.f32 %v3887, %v3671
        %v3898 = vmul.f32 %v3888, %v3672
        %v3899 = vmul.f32 %v3889, %v3673
        %v3900 = vmul.f32 %v3890, %v3674
        %v3901 = vmul.f32 %v3891, %v3675
        %v3902 = vmul.f32 %v3882, %v3646
        %v3903 = vmul.f32 %v3883, %v3647
        %v3904 = vmul.f32 %v3884, %v3648
        %v3905 = vmul.f32 %v3885, %v3649
        %v3906 = vmul.f32 %v3886, %v3650
        %v3907 = vmul.f32 %v3887, %v3651
        %v3908 = vmul.f32 %v3888, %v3652
        %v3909 = vmul.f32 %v3889, %v3653
        %v3910 = vmul.f32 %v3890, %v3654
        %v3911 = vmul.f32 %v3891, %v3655
        %v3912 = vsub.f32 1.0, %v3902
        %v3913 = vsub.f32 1.0, %v3903
        %v3914 = vsub.f32 1.0, %v3904
        %v3915 = vsub.f32 1.0, %v3905
        %v3916 = vsub.f32 1.0, %v3906
        %v3917 = vsub.f32 1.0, %v3907
        %v3918 = vsub.f32 1.0, %v3908
        %v3919 = vsub.f32 1.0, %v3909
        %v3920 = vsub.f32 1.0, %v3910
        %v3921 = vsub.f32 1.0, %v3911
        %3932 = vst [vmem:[#allocation1] ss:$2 sm:$0xff] %v3892
        %s3933 = scalar_lea.vmem [#allocation1], 16
        %3934 = vst [vmem:[%s3933] ss:$2 sm:$0xff] %v3893
        %s3935 = scalar_lea.vmem [#allocation1], 32
        %3936 = vst [vmem:[%s3935] ss:$2 sm:$0xff] %v3894
        %s3937 = scalar_lea.vmem [#allocation1], 48
        %3938 = vst [vmem:[%s3937] ss:$2 sm:$0xff] %v3895
        %v3939 = vld.sshfl [vmem:[#allocation1] sm:$0xff pattern:$0x75316420]
        %v3940 = vld.sshfl [vmem:[#allocation1 + $0x8] sm:$0xff pattern:$0x75316420]
        %v3941 = vld.sshfl [vmem:[#allocation1 + $0x10] sm:$0xff pattern:$0x75316420]
        %v3942 = vld.sshfl [vmem:[#allocation1 + $0x18] sm:$0xff pattern:$0x75316420]
        %v3943 = vld.sshfl [vmem:[#allocation1 + $0x20] sm:$0xff pattern:$0x75316420]
        %v3944 = vld.sshfl [vmem:[#allocation1 + $0x28] sm:$0xff pattern:$0x75316420]
        %v3945 = vld.sshfl [vmem:[#allocation1 + $0x30] sm:$0xff pattern:$0x75316420]
        %v3946 = vld.sshfl [vmem:[#allocation1 + $0x38] sm:$0xff pattern:$0x75316420]
        %3947 = vst [vmem:[#allocation1] ss:$2 sm:$0xff] %v3896
        %3948 = vst [vmem:[%s3933] ss:$2 sm:$0xff] %v3897
        %3949 = vst [vmem:[%s3935] ss:$2 sm:$0xff] %v3898
        %3950 = vst [vmem:[%s3937] ss:$2 sm:$0xff] %v3899
        %v3951 = vld.sshfl [vmem:[#allocation1] sm:$0xff pattern:$0x75316420]
        %v3952 = vld.sshfl [vmem:[#allocation1 + $0x8] sm:$0xff pattern:$0x75316420]
        %v3953 = vld.sshfl [vmem:[#allocation1 + $0x10] sm:$0xff pattern:$0x75316420]
        %v3954 = vld.sshfl [vmem:[#allocation1 + $0x18] sm:$0xff pattern:$0x75316420]
        %v3955 = vld.sshfl [vmem:[#allocation1 + $0x20] sm:$0xff pattern:$0x75316420]
        %v3956 = vld.sshfl [vmem:[#allocation1 + $0x28] sm:$0xff pattern:$0x75316420]
        %v3957 = vld.sshfl [vmem:[#allocation1 + $0x30] sm:$0xff pattern:$0x75316420]
        %v3958 = vld.sshfl [vmem:[#allocation1 + $0x38] sm:$0xff pattern:$0x75316420]
        %3959 = vst [vmem:[#allocation1] ss:$2 sm:$0xff] %v3900
        %3960 = vst [vmem:[%s3933] ss:$2 sm:$0xff] %v3901
        %v3961 = vld.sshfl [vmem:[#allocation1] sm:$0xff pattern:$0x75316420]
        %v3962 = vld.sshfl [vmem:[#allocation1 + $0x8] sm:$0xff pattern:$0x75316420]
        %v3963 = vld.sshfl [vmem:[#allocation1 + $0x10] sm:$0xff pattern:$0x75316420]
        %v3964 = vld.sshfl [vmem:[#allocation1 + $0x18] sm:$0xff pattern:$0x75316420]
        %v3965 = vrot.slane %v3939, 2
        %v3966 = vrot.slane %v3940, 2
        %v3967 = vrot.slane %v3941, 2
        %v3968 = vrot.slane %v3942, 2
        %v3969 = vrot.slane %v3943, 2
        %v3970 = vrot.slane %v3944, 2
        %v3971 = vrot.slane %v3945, 2
        %v3972 = vrot.slane %v3946, 2
        %v3973 = vrot.slane %v3951, 2
        %v3974 = vrot.slane %v3952, 2
        %v3975 = vrot.slane %v3953, 2
        %v3976 = vrot.slane %v3954, 2
        %v3977 = vrot.slane %v3955, 2
        %v3978 = vrot.slane %v3956, 2
        %v3979 = vrot.slane %v3957, 2
        %v3980 = vrot.slane %v3958, 2
        %v3981 = vrot.slane %v3961, 2
        %v3982 = vrot.slane %v3962, 2
        %v3983 = vrot.slane %v3963, 2
        %v3984 = vrot.slane %v3964, 2
        %4005 = vst [vmem:[#allocation2 + $0xa0] sm:$0xc0] %v3965
        %4006 = vst [vmem:[#allocation2 + $0xa8] sm:$0xc0] %v3966
        %4007 = vst [vmem:[#allocation2 + $0xb0] sm:$0xc0] %v3967
        %4008 = vst [vmem:[#allocation2 + $0xb8] sm:$0xc0] %v3968
        %4009 = vst [vmem:[#allocation2 + $0xc0] sm:$0xc0] %v3969
        %4010 = vst [vmem:[#allocation2 + $0xc8] sm:$0xc0] %v3970
        %4011 = vst [vmem:[#allocation2 + $0xd0] sm:$0xc0] %v3971
        %4012 = vst [vmem:[#allocation2 + $0xd8] sm:$0xc0] %v3972
        %4013 = vst [vmem:[#allocation2 + $0xe0] sm:$0xc0] %v3973
        %4014 = vst [vmem:[#allocation2 + $0xe8] sm:$0xc0] %v3974
        %4015 = vst [vmem:[#allocation2 + $0xf0] sm:$0xc0] %v3975
        %4016 = vst [vmem:[#allocation2 + $0xf8] sm:$0xc0] %v3976
        %4017 = vst [vmem:[#allocation2 + $0x100] sm:$0xc0] %v3977
        %4018 = vst [vmem:[#allocation2 + $0x108] sm:$0xc0] %v3978
        %4019 = vst [vmem:[#allocation2 + $0x110] sm:$0xc0] %v3979
        %4020 = vst [vmem:[#allocation2 + $0x118] sm:$0xc0] %v3980
        %4021 = vst [vmem:[#allocation2 + $0x120] sm:$0xc0] %v3981
        %4022 = vst [vmem:[#allocation2 + $0x128] sm:$0xc0] %v3982
        %4023 = vst [vmem:[#allocation2 + $0x130] sm:$0xc0] %v3983
        %4024 = vst [vmem:[#allocation2 + $0x138] sm:$0xc0] %v3984
        %4025 = vst [vmem:[#allocation2 + $0x140] sm:$0x1] %v3965
        %4026 = vst [vmem:[#allocation2 + $0x148] sm:$0x1] %v3966
        %4027 = vst [vmem:[#allocation2 + $0x150] sm:$0x1] %v3967
        %4028 = vst [vmem:[#allocation2 + $0x158] sm:$0x1] %v3968
        %4029 = vst [vmem:[#allocation2 + $0x160] sm:$0x1] %v3969
        %4030 = vst [vmem:[#allocation2 + $0x168] sm:$0x1] %v3970
        %4031 = vst [vmem:[#allocation2 + $0x170] sm:$0x1] %v3971
        %4032 = vst [vmem:[#allocation2 + $0x178] sm:$0x1] %v3972
        %4033 = vst [vmem:[#allocation2 + $0x180] sm:$0x1] %v3973
        %4034 = vst [vmem:[#allocation2 + $0x188] sm:$0x1] %v3974
        %4035 = vst [vmem:[#allocation2 + $0x190] sm:$0x1] %v3975
        %4036 = vst [vmem:[#allocation2 + $0x198] sm:$0x1] %v3976
        %4037 = vst [vmem:[#allocation2 + $0x1a0] sm:$0x1] %v3977
        %4038 = vst [vmem:[#allocation2 + $0x1a8] sm:$0x1] %v3978
        %4039 = vst [vmem:[#allocation2 + $0x1b0] sm:$0x1] %v3979
        %4040 = vst [vmem:[#allocation2 + $0x1b8] sm:$0x1] %v3980
        %4041 = vst [vmem:[#allocation2 + $0x1c0] sm:$0x1] %v3981
        %4042 = vst [vmem:[#allocation2 + $0x1c8] sm:$0x1] %v3982
        %4043 = vst [vmem:[#allocation2 + $0x1d0] sm:$0x1] %v3983
        %4044 = vst [vmem:[#allocation2 + $0x1d8] sm:$0x1] %v3984
        %4055 = vst [vmem:[#allocation1] ss:$2 sm:$0xff] %v3912
        %s4056 = scalar_lea.vmem [#allocation1], 16
        %4057 = vst [vmem:[%s4056] ss:$2 sm:$0xff] %v3913
        %s4058 = scalar_lea.vmem [#allocation1], 32
        %4059 = vst [vmem:[%s4058] ss:$2 sm:$0xff] %v3914
        %s4060 = scalar_lea.vmem [#allocation1], 48
        %4061 = vst [vmem:[%s4060] ss:$2 sm:$0xff] %v3915
        %v4062 = vld.sshfl [vmem:[#allocation1] sm:$0xff pattern:$0x75316420]
        %v4063 = vld.sshfl [vmem:[#allocation1 + $0x8] sm:$0xff pattern:$0x75316420]
        %v4064 = vld.sshfl [vmem:[#allocation1 + $0x10] sm:$0xff pattern:$0x75316420]
        %v4065 = vld.sshfl [vmem:[#allocation1 + $0x18] sm:$0xff pattern:$0x75316420]
        %v4066 = vld.sshfl [vmem:[#allocation1 + $0x20] sm:$0xff pattern:$0x75316420]
        %v4067 = vld.sshfl [vmem:[#allocation1 + $0x28] sm:$0xff pattern:$0x75316420]
        %v4068 = vld.sshfl [vmem:[#allocation1 + $0x30] sm:$0xff pattern:$0x75316420]
        %v4069 = vld.sshfl [vmem:[#allocation1 + $0x38] sm:$0xff pattern:$0x75316420]
        %4070 = vst [vmem:[#allocation1] ss:$2 sm:$0xff] %v3916
        %4071 = vst [vmem:[%s4056] ss:$2 sm:$0xff] %v3917
        %4072 = vst [vmem:[%s4058] ss:$2 sm:$0xff] %v3918
        %4073 = vst [vmem:[%s4060] ss:$2 sm:$0xff] %v3919
        %v4074 = vld.sshfl [vmem:[#allocation1] sm:$0xff pattern:$0x75316420]
        %v4075 = vld.sshfl [vmem:[#allocation1 + $0x8] sm:$0xff pattern:$0x75316420]
        %v4076 = vld.sshfl [vmem:[#allocation1 + $0x10] sm:$0xff pattern:$0x75316420]
        %v4077 = vld.sshfl [vmem:[#allocation1 + $0x18] sm:$0xff pattern:$0x75316420]
        %v4078 = vld.sshfl [vmem:[#allocation1 + $0x20] sm:$0xff pattern:$0x75316420]
        %v4079 = vld.sshfl [vmem:[#allocation1 + $0x28] sm:$0xff pattern:$0x75316420]
        %v4080 = vld.sshfl [vmem:[#allocation1 + $0x30] sm:$0xff pattern:$0x75316420]
        %v4081 = vld.sshfl [vmem:[#allocation1 + $0x38] sm:$0xff pattern:$0x75316420]
        %4082 = vst [vmem:[#allocation1] ss:$2 sm:$0xff] %v3920
        %4083 = vst [vmem:[%s4056] ss:$2 sm:$0xff] %v3921
        %v4084 = vld.sshfl [vmem:[#allocation1] sm:$0xff pattern:$0x75316420]
        %v4085 = vld.sshfl [vmem:[#allocation1 + $0x8] sm:$0xff pattern:$0x75316420]
        %v4086 = vld.sshfl [vmem:[#allocation1 + $0x10] sm:$0xff pattern:$0x75316420]
        %v4087 = vld.sshfl [vmem:[#allocation1 + $0x18] sm:$0xff pattern:$0x75316420]
        %v4088 = vrot.slane %v4062, 2
        %v4089 = vrot.slane %v4063, 2
        %v4090 = vrot.slane %v4064, 2
        %v4091 = vrot.slane %v4065, 2
        %v4092 = vrot.slane %v4066, 2
        %v4093 = vrot.slane %v4067, 2
        %v4094 = vrot.slane %v4068, 2
        %v4095 = vrot.slane %v4069, 2
        %v4096 = vrot.slane %v4074, 2
        %v4097 = vrot.slane %v4075, 2
        %v4098 = vrot.slane %v4076, 2
        %v4099 = vrot.slane %v4077, 2
        %v4100 = vrot.slane %v4078, 2
        %v4101 = vrot.slane %v4079, 2
        %v4102 = vrot.slane %v4080, 2
        %v4103 = vrot.slane %v4081, 2
        %v4104 = vrot.slane %v4084, 2
        %v4105 = vrot.slane %v4085, 2
        %v4106 = vrot.slane %v4086, 2
        %v4107 = vrot.slane %v4087, 2
        %4128 = vst [vmem:[#allocation2 + $0x1e0] sm:$0xc0] %v4088
        %4129 = vst [vmem:[#allocation2 + $0x1e8] sm:$0xc0] %v4089
        %4130 = vst [vmem:[#allocation2 + $0x1f0] sm:$0xc0] %v4090
        %4131 = vst [vmem:[#allocation2 + $0x1f8] sm:$0xc0] %v4091
        %4132 = vst [vmem:[#allocation2 + $0x200] sm:$0xc0] %v4092
        %4133 = vst [vmem:[#allocation2 + $0x208] sm:$0xc0] %v4093
        %4134 = vst [vmem:[#allocation2 + $0x210] sm:$0xc0] %v4094
        %4135 = vst [vmem:[#allocation2 + $0x218] sm:$0xc0] %v4095
        %4136 = vst [vmem:[#allocation2 + $0x220] sm:$0xc0] %v4096
        %4137 = vst [vmem:[#allocation2 + $0x228] sm:$0xc0] %v4097
        %4138 = vst [vmem:[#allocation2 + $0x230] sm:$0xc0] %v4098
        %4139 = vst [vmem:[#allocation2 + $0x238] sm:$0xc0] %v4099
        %4140 = vst [vmem:[#allocation2 + $0x240] sm:$0xc0] %v4100
        %4141 = vst [vmem:[#allocation2 + $0x248] sm:$0xc0] %v4101
        %4142 = vst [vmem:[#allocation2 + $0x250] sm:$0xc0] %v4102
        %4143 = vst [vmem:[#allocation2 + $0x258] sm:$0xc0] %v4103
        %4144 = vst [vmem:[#allocation2 + $0x260] sm:$0xc0] %v4104
        %4145 = vst [vmem:[#allocation2 + $0x268] sm:$0xc0] %v4105
        %4146 = vst [vmem:[#allocation2 + $0x270] sm:$0xc0] %v4106
        %4147 = vst [vmem:[#allocation2 + $0x278] sm:$0xc0] %v4107
        %4148 = vst [vmem:[#allocation2 + $0x280] sm:$0x1] %v4088
        %4149 = vst [vmem:[#allocation2 + $0x288] sm:$0x1] %v4089
        %4150 = vst [vmem:[#allocation2 + $0x290] sm:$0x1] %v4090
        %4151 = vst [vmem:[#allocation2 + $0x298] sm:$0x1] %v4091
        %4152 = vst [vmem:[#allocation2 + $0x2a0] sm:$0x1] %v4092
        %4153 = vst [vmem:[#allocation2 + $0x2a8] sm:$0x1] %v4093
        %4154 = vst [vmem:[#allocation2 + $0x2b0] sm:$0x1] %v4094
        %4155 = vst [vmem:[#allocation2 + $0x2b8] sm:$0x1] %v4095
        %4156 = vst [vmem:[#allocation2 + $0x2c0] sm:$0x1] %v4096
        %4157 = vst [vmem:[#allocation2 + $0x2c8] sm:$0x1] %v4097
        %4158 = vst [vmem:[#allocation2 + $0x2d0] sm:$0x1] %v4098
        %4159 = vst [vmem:[#allocation2 + $0x2d8] sm:$0x1] %v4099
        %4160 = vst [vmem:[#allocation2 + $0x2e0] sm:$0x1] %v4100
        %4161 = vst [vmem:[#allocation2 + $0x2e8] sm:$0x1] %v4101
        %4162 = vst [vmem:[#allocation2 + $0x2f0] sm:$0x1] %v4102
        %4163 = vst [vmem:[#allocation2 + $0x2f8] sm:$0x1] %v4103
        %4164 = vst [vmem:[#allocation2 + $0x300] sm:$0x1] %v4104
        %4165 = vst [vmem:[#allocation2 + $0x308] sm:$0x1] %v4105
        %4166 = vst [vmem:[#allocation2 + $0x310] sm:$0x1] %v4106
        %4167 = vst [vmem:[#allocation2 + $0x318] sm:$0x1] %v4107
        %v4168 = vmul.f32 %v3892, 2.0
        %v4169 = vmul.f32 %v3893, 2.0
        %v4170 = vmul.f32 %v3894, 2.0
        %v4171 = vmul.f32 %v3895, 2.0
        %v4172 = vmul.f32 %v3896, 2.0
        %v4173 = vmul.f32 %v3897, 2.0
        %v4174 = vmul.f32 %v3898, 2.0
        %v4175 = vmul.f32 %v3899, 2.0
        %v4176 = vmul.f32 %v3900, 2.0
        %v4177 = vmul.f32 %v3901, 2.0
        %v4178 = vmul.f32 %v4168, %v3912
        %v4179 = vmul.f32 %v4169, %v3913
        %v4180 = vmul.f32 %v4170, %v3914
        %v4181 = vmul.f32 %v4171, %v3915
        %v4182 = vmul.f32 %v4172, %v3916
        %v4183 = vmul.f32 %v4173, %v3917
        %v4184 = vmul.f32 %v4174, %v3918
        %v4185 = vmul.f32 %v4175, %v3919
        %v4186 = vmul.f32 %v4176, %v3920
        %v4187 = vmul.f32 %v4177, %v3921
        %v4188 = vmul.f32 %v4168, %v3892
        %v4189 = vmul.f32 %v4169, %v3893
        %v4190 = vmul.f32 %v4170, %v3894
        %v4191 = vmul.f32 %v4171, %v3895
        %v4192 = vmul.f32 %v4172, %v3896
        %v4193 = vmul.f32 %v4173, %v3897
        %v4194 = vmul.f32 %v4174, %v3898
        %v4195 = vmul.f32 %v4175, %v3899
        %v4196 = vmul.f32 %v4176, %v3900
        %v4197 = vmul.f32 %v4177, %v3901
        %v4198 = vsub.f32 1.0, %v4188
        %v4199 = vsub.f32 1.0, %v4189
        %v4200 = vsub.f32 1.0, %v4190
        %v4201 = vsub.f32 1.0, %v4191
        %v4202 = vsub.f32 1.0, %v4192
        %v4203 = vsub.f32 1.0, %v4193
        %v4204 = vsub.f32 1.0, %v4194
        %v4205 = vsub.f32 1.0, %v4195
        %v4206 = vsub.f32 1.0, %v4196
        %v4207 = vsub.f32 1.0, %v4197
        %4218 = vst [vmem:[#allocation1] ss:$2 sm:$0xff] %v4178
        %s4219 = scalar_lea.vmem [#allocation1], 16
        %4220 = vst [vmem:[%s4219] ss:$2 sm:$0xff] %v4179
        %s4221 = scalar_lea.vmem [#allocation1], 32
        %4222 = vst [vmem:[%s4221] ss:$2 sm:$0xff] %v4180
        %s4223 = scalar_lea.vmem [#allocation1], 48
        %4224 = vst [vmem:[%s4223] ss:$2 sm:$0xff] %v4181
        %v4225 = vld.sshfl [vmem:[#allocation1] sm:$0xff pattern:$0x75316420]
        %v4226 = vld.sshfl [vmem:[#allocation1 + $0x8] sm:$0xff pattern:$0x75316420]
        %v4227 = vld.sshfl [vmem:[#allocation1 + $0x10] sm:$0xff pattern:$0x75316420]
        %v4228 = vld.sshfl [vmem:[#allocation1 + $0x18] sm:$0xff pattern:$0x75316420]
        %v4229 = vld.sshfl [vmem:[#allocation1 + $0x20] sm:$0xff pattern:$0x75316420]
        %v4230 = vld.sshfl [vmem:[#allocation1 + $0x28] sm:$0xff pattern:$0x75316420]
        %v4231 = vld.sshfl [vmem:[#allocation1 + $0x30] sm:$0xff pattern:$0x75316420]
        %v4232 = vld.sshfl [vmem:[#allocation1 + $0x38] sm:$0xff pattern:$0x75316420]
        %4233 = vst [vmem:[#allocation1] ss:$2 sm:$0xff] %v4182
        %4234 = vst [vmem:[%s4219] ss:$2 sm:$0xff] %v4183
        %4235 = vst [vmem:[%s4221] ss:$2 sm:$0xff] %v4184
        %4236 = vst [vmem:[%s4223] ss:$2 sm:$0xff] %v4185
        %v4237 = vld.sshfl [vmem:[#allocation1] sm:$0xff pattern:$0x75316420]
        %v4238 = vld.sshfl [vmem:[#allocation1 + $0x8] sm:$0xff pattern:$0x75316420]
        %v4239 = vld.sshfl [vmem:[#allocation1 + $0x10] sm:$0xff pattern:$0x75316420]
        %v4240 = vld.sshfl [vmem:[#allocation1 + $0x18] sm:$0xff pattern:$0x75316420]
        %v4241 = vld.sshfl [vmem:[#allocation1 + $0x20] sm:$0xff pattern:$0x75316420]
        %v4242 = vld.sshfl [vmem:[#allocation1 + $0x28] sm:$0xff pattern:$0x75316420]
        %v4243 = vld.sshfl [vmem:[#allocation1 + $0x30] sm:$0xff pattern:$0x75316420]
        %v4244 = vld.sshfl [vmem:[#allocation1 + $0x38] sm:$0xff pattern:$0x75316420]
        %4245 = vst [vmem:[#allocation1] ss:$2 sm:$0xff] %v4186
        %4246 = vst [vmem:[%s4219] ss:$2 sm:$0xff] %v4187
        %v4247 = vld.sshfl [vmem:[#allocation1] sm:$0xff pattern:$0x75316420]
        %v4248 = vld.sshfl [vmem:[#allocation1 + $0x8] sm:$0xff pattern:$0x75316420]
        %v4249 = vld.sshfl [vmem:[#allocation1 + $0x10] sm:$0xff pattern:$0x75316420]
        %v4250 = vld.sshfl [vmem:[#allocation1 + $0x18] sm:$0xff pattern:$0x75316420]
        %v4251 = vrot.slane %v4225, 7
        %v4252 = vrot.slane %v4226, 7
        %v4253 = vrot.slane %v4227, 7
        %v4254 = vrot.slane %v4228, 7
        %v4255 = vrot.slane %v4229, 7
        %v4256 = vrot.slane %v4230, 7
        %v4257 = vrot.slane %v4231, 7
        %v4258 = vrot.slane %v4232, 7
        %v4259 = vrot.slane %v4237, 7
        %v4260 = vrot.slane %v4238, 7
        %v4261 = vrot.slane %v4239, 7
        %v4262 = vrot.slane %v4240, 7
        %v4263 = vrot.slane %v4241, 7
        %v4264 = vrot.slane %v4242, 7
        %v4265 = vrot.slane %v4243, 7
        %v4266 = vrot.slane %v4244, 7
        %v4267 = vrot.slane %v4247, 7
        %v4268 = vrot.slane %v4248, 7
        %v4269 = vrot.slane %v4249, 7
        %v4270 = vrot.slane %v4250, 7
        %4291 = vst [vmem:[#allocation2 + $0x140] sm:$0xe] %v4251
        %4292 = vst [vmem:[#allocation2 + $0x148] sm:$0xe] %v4252
        %4293 = vst [vmem:[#allocation2 + $0x150] sm:$0xe] %v4253
        %4294 = vst [vmem:[#allocation2 + $0x158] sm:$0xe] %v4254
        %4295 = vst [vmem:[#allocation2 + $0x160] sm:$0xe] %v4255
        %4296 = vst [vmem:[#allocation2 + $0x168] sm:$0xe] %v4256
        %4297 = vst [vmem:[#allocation2 + $0x170] sm:$0xe] %v4257
        %4298 = vst [vmem:[#allocation2 + $0x178] sm:$0xe] %v4258
        %4299 = vst [vmem:[#allocation2 + $0x180] sm:$0xe] %v4259
        %4300 = vst [vmem:[#allocation2 + $0x188] sm:$0xe] %v4260
        %4301 = vst [vmem:[#allocation2 + $0x190] sm:$0xe] %v4261
        %4302 = vst [vmem:[#allocation2 + $0x198] sm:$0xe] %v4262
        %4303 = vst [vmem:[#allocation2 + $0x1a0] sm:$0xe] %v4263
        %4304 = vst [vmem:[#allocation2 + $0x1a8] sm:$0xe] %v4264
        %4305 = vst [vmem:[#allocation2 + $0x1b0] sm:$0xe] %v4265
        %4306 = vst [vmem:[#allocation2 + $0x1b8] sm:$0xe] %v4266
        %4307 = vst [vmem:[#allocation2 + $0x1c0] sm:$0xe] %v4267
        %4308 = vst [vmem:[#allocation2 + $0x1c8] sm:$0xe] %v4268
        %4309 = vst [vmem:[#allocation2 + $0x1d0] sm:$0xe] %v4269
        %4310 = vst [vmem:[#allocation2 + $0x1d8] sm:$0xe] %v4270
        %4321 = vst [vmem:[#allocation1] ss:$2 sm:$0xff] %v4198
        %s4322 = scalar_lea.vmem [#allocation1], 16
        %4323 = vst [vmem:[%s4322] ss:$2 sm:$0xff] %v4199
        %s4324 = scalar_lea.vmem [#allocation1], 32
        %4325 = vst [vmem:[%s4324] ss:$2 sm:$0xff] %v4200
        %s4326 = scalar_lea.vmem [#allocation1], 48
        %4327 = vst [vmem:[%s4326] ss:$2 sm:$0xff] %v4201
        %v4328 = vld.sshfl [vmem:[#allocation1] sm:$0xff pattern:$0x75316420]
        %v4329 = vld.sshfl [vmem:[#allocation1 + $0x8] sm:$0xff pattern:$0x75316420]
        %v4330 = vld.sshfl [vmem:[#allocation1 + $0x10] sm:$0xff pattern:$0x75316420]
        %v4331 = vld.sshfl [vmem:[#allocation1 + $0x18] sm:$0xff pattern:$0x75316420]
        %v4332 = vld.sshfl [vmem:[#allocation1 + $0x20] sm:$0xff pattern:$0x75316420]
        %v4333 = vld.sshfl [vmem:[#allocation1 + $0x28] sm:$0xff pattern:$0x75316420]
        %v4334 = vld.sshfl [vmem:[#allocation1 + $0x30] sm:$0xff pattern:$0x75316420]
        %v4335 = vld.sshfl [vmem:[#allocation1 + $0x38] sm:$0xff pattern:$0x75316420]
        %4336 = vst [vmem:[#allocation1] ss:$2 sm:$0xff] %v4202
        %4337 = vst [vmem:[%s4322] ss:$2 sm:$0xff] %v4203
        %4338 = vst [vmem:[%s4324] ss:$2 sm:$0xff] %v4204
        %4339 = vst [vmem:[%s4326] ss:$2 sm:$0xff] %v4205
        %v4340 = vld.sshfl [vmem:[#allocation1] sm:$0xff pattern:$0x75316420]
        %v4341 = vld.sshfl [vmem:[#allocation1 + $0x8] sm:$0xff pattern:$0x75316420]
        %v4342 = vld.sshfl [vmem:[#allocation1 + $0x10] sm:$0xff pattern:$0x75316420]
        %v4343 = vld.sshfl [vmem:[#allocation1 + $0x18] sm:$0xff pattern:$0x75316420]
        %v4344 = vld.sshfl [vmem:[#allocation1 + $0x20] sm:$0xff pattern:$0x75316420]
        %v4345 = vld.sshfl [vmem:[#allocation1 + $0x28] sm:$0xff pattern:$0x75316420]
        %v4346 = vld.sshfl [vmem:[#allocation1 + $0x30] sm:$0xff pattern:$0x75316420]
        %v4347 = vld.sshfl [vmem:[#allocation1 + $0x38] sm:$0xff pattern:$0x75316420]
        %4348 = vst [vmem:[#allocation1] ss:$2 sm:$0xff] %v4206
        %4349 = vst [vmem:[%s4322] ss:$2 sm:$0xff] %v4207
        %v4350 = vld.sshfl [vmem:[#allocation1] sm:$0xff pattern:$0x75316420]
        %v4351 = vld.sshfl [vmem:[#allocation1 + $0x8] sm:$0xff pattern:$0x75316420]
        %v4352 = vld.sshfl [vmem:[#allocation1 + $0x10] sm:$0xff pattern:$0x75316420]
        %v4353 = vld.sshfl [vmem:[#allocation1 + $0x18] sm:$0xff pattern:$0x75316420]
        %v4354 = vrot.slane %v4328, 7
        %v4355 = vrot.slane %v4329, 7
        %v4356 = vrot.slane %v4330, 7
        %v4357 = vrot.slane %v4331, 7
        %v4358 = vrot.slane %v4332, 7
        %v4359 = vrot.slane %v4333, 7
        %v4360 = vrot.slane %v4334, 7
        %v4361 = vrot.slane %v4335, 7
        %v4362 = vrot.slane %v4340, 7
        %v4363 = vrot.slane %v4341, 7
        %v4364 = vrot.slane %v4342, 7
        %v4365 = vrot.slane %v4343, 7
        %v4366 = vrot.slane %v4344, 7
        %v4367 = vrot.slane %v4345, 7
        %v4368 = vrot.slane %v4346, 7
        %v4369 = vrot.slane %v4347, 7
        %v4370 = vrot.slane %v4350, 7
        %v4371 = vrot.slane %v4351, 7
        %v4372 = vrot.slane %v4352, 7
        %v4373 = vrot.slane %v4353, 7
        %4394 = vst [vmem:[#allocation2 + $0x280] sm:$0xe] %v4354
        %4395 = vst [vmem:[#allocation2 + $0x288] sm:$0xe] %v4355
        %4396 = vst [vmem:[#allocation2 + $0x290] sm:$0xe] %v4356
        %4397 = vst [vmem:[#allocation2 + $0x298] sm:$0xe] %v4357
        %4398 = vst [vmem:[#allocation2 + $0x2a0] sm:$0xe] %v4358
        %4399 = vst [vmem:[#allocation2 + $0x2a8] sm:$0xe] %v4359
        %4400 = vst [vmem:[#allocation2 + $0x2b0] sm:$0xe] %v4360
        %4401 = vst [vmem:[#allocation2 + $0x2b8] sm:$0xe] %v4361
        %4402 = vst [vmem:[#allocation2 + $0x2c0] sm:$0xe] %v4362
        %4403 = vst [vmem:[#allocation2 + $0x2c8] sm:$0xe] %v4363
        %4404 = vst [vmem:[#allocation2 + $0x2d0] sm:$0xe] %v4364
        %4405 = vst [vmem:[#allocation2 + $0x2d8] sm:$0xe] %v4365
        %4406 = vst [vmem:[#allocation2 + $0x2e0] sm:$0xe] %v4366
        %4407 = vst [vmem:[#allocation2 + $0x2e8] sm:$0xe] %v4367
        %4408 = vst [vmem:[#allocation2 + $0x2f0] sm:$0xe] %v4368
        %4409 = vst [vmem:[#allocation2 + $0x2f8] sm:$0xe] %v4369
        %4410 = vst [vmem:[#allocation2 + $0x300] sm:$0xe] %v4370
        %4411 = vst [vmem:[#allocation2 + $0x308] sm:$0xe] %v4371
        %4412 = vst [vmem:[#allocation2 + $0x310] sm:$0xe] %v4372
        %4413 = vst [vmem:[#allocation2 + $0x318] sm:$0xe] %v4373
        %v4414 = vmul.f32 %v4178, 2.0
        %v4415 = vmul.f32 %v4179, 2.0
        %v4416 = vmul.f32 %v4180, 2.0
        %v4417 = vmul.f32 %v4181, 2.0
        %v4418 = vmul.f32 %v4182, 2.0
        %v4419 = vmul.f32 %v4183, 2.0
        %v4420 = vmul.f32 %v4184, 2.0
        %v4421 = vmul.f32 %v4185, 2.0
        %v4422 = vmul.f32 %v4186, 2.0
        %v4423 = vmul.f32 %v4187, 2.0
        %v4424 = vmul.f32 %v4414, %v4198
        %v4425 = vmul.f32 %v4415, %v4199
        %v4426 = vmul.f32 %v4416, %v4200
        %v4427 = vmul.f32 %v4417, %v4201
        %v4428 = vmul.f32 %v4418, %v4202
        %v4429 = vmul.f32 %v4419, %v4203
        %v4430 = vmul.f32 %v4420, %v4204
        %v4431 = vmul.f32 %v4421, %v4205
        %v4432 = vmul.f32 %v4422, %v4206
        %v4433 = vmul.f32 %v4423, %v4207
        %v4434 = vmul.f32 %v4414, %v4178
        %v4435 = vmul.f32 %v4415, %v4179
        %v4436 = vmul.f32 %v4416, %v4180
        %v4437 = vmul.f32 %v4417, %v4181
        %v4438 = vmul.f32 %v4418, %v4182
        %v4439 = vmul.f32 %v4419, %v4183
        %v4440 = vmul.f32 %v4420, %v4184
        %v4441 = vmul.f32 %v4421, %v4185
        %v4442 = vmul.f32 %v4422, %v4186
        %v4443 = vmul.f32 %v4423, %v4187
        %v4444 = vsub.f32 1.0, %v4434
        %v4445 = vsub.f32 1.0, %v4435
        %v4446 = vsub.f32 1.0, %v4436
        %v4447 = vsub.f32 1.0, %v4437
        %v4448 = vsub.f32 1.0, %v4438
        %v4449 = vsub.f32 1.0, %v4439
        %v4450 = vsub.f32 1.0, %v4440
        %v4451 = vsub.f32 1.0, %v4441
        %v4452 = vsub.f32 1.0, %v4442
        %v4453 = vsub.f32 1.0, %v4443
        %s4464 = scalar_lea.vmem [#allocation1], 1
        %4465 = vst [vmem:[%s4464] ss:$2 sm:$0xff] %v4424
        %s4466 = scalar_lea.vmem [#allocation1], 17
        %4467 = vst [vmem:[%s4466] ss:$2 sm:$0xff] %v4425
        %s4468 = scalar_lea.vmem [#allocation1], 33
        %4469 = vst [vmem:[%s4468] ss:$2 sm:$0xff] %v4426
        %s4470 = scalar_lea.vmem [#allocation1], 49
        %4471 = vst [vmem:[%s4470] ss:$2 sm:$0xff] %v4427
        %v4472 = vld.sshfl [vmem:[#allocation1] sm:$0xff pattern:$0x75316420]
        %v4473 = vld.sshfl [vmem:[#allocation1 + $0x8] sm:$0xff pattern:$0x75316420]
        %v4474 = vld.sshfl [vmem:[#allocation1 + $0x10] sm:$0xff pattern:$0x75316420]
        %v4475 = vld.sshfl [vmem:[#allocation1 + $0x18] sm:$0xff pattern:$0x75316420]
        %v4476 = vld.sshfl [vmem:[#allocation1 + $0x20] sm:$0xff pattern:$0x75316420]
        %v4477 = vld.sshfl [vmem:[#allocation1 + $0x28] sm:$0xff pattern:$0x75316420]
        %v4478 = vld.sshfl [vmem:[#allocation1 + $0x30] sm:$0xff pattern:$0x75316420]
        %v4479 = vld.sshfl [vmem:[#allocation1 + $0x38] sm:$0xff pattern:$0x75316420]
        %4480 = vst [vmem:[%s4464] ss:$2 sm:$0xff] %v4428
        %4481 = vst [vmem:[%s4466] ss:$2 sm:$0xff] %v4429
        %4482 = vst [vmem:[%s4468] ss:$2 sm:$0xff] %v4430
        %4483 = vst [vmem:[%s4470] ss:$2 sm:$0xff] %v4431
        %v4484 = vld.sshfl [vmem:[#allocation1] sm:$0xff pattern:$0x75316420]
        %v4485 = vld.sshfl [vmem:[#allocation1 + $0x8] sm:$0xff pattern:$0x75316420]
        %v4486 = vld.sshfl [vmem:[#allocation1 + $0x10] sm:$0xff pattern:$0x75316420]
        %v4487 = vld.sshfl [vmem:[#allocation1 + $0x18] sm:$0xff pattern:$0x75316420]
        %v4488 = vld.sshfl [vmem:[#allocation1 + $0x20] sm:$0xff pattern:$0x75316420]
        %v4489 = vld.sshfl [vmem:[#allocation1 + $0x28] sm:$0xff pattern:$0x75316420]
        %v4490 = vld.sshfl [vmem:[#allocation1 + $0x30] sm:$0xff pattern:$0x75316420]
        %v4491 = vld.sshfl [vmem:[#allocation1 + $0x38] sm:$0xff pattern:$0x75316420]
        %4492 = vst [vmem:[%s4464] ss:$2 sm:$0xff] %v4432
        %4493 = vst [vmem:[%s4466] ss:$2 sm:$0xff] %v4433
        %v4494 = vld.sshfl [vmem:[#allocation1] sm:$0xff pattern:$0x75316420]
        %v4495 = vld.sshfl [vmem:[#allocation1 + $0x8] sm:$0xff pattern:$0x75316420]
        %v4496 = vld.sshfl [vmem:[#allocation1 + $0x10] sm:$0xff pattern:$0x75316420]
        %v4497 = vld.sshfl [vmem:[#allocation1 + $0x18] sm:$0xff pattern:$0x75316420]
        %4518 = vst [vmem:[#allocation2 + $0x140] sm:$0x70] %v4472
        %4519 = vst [vmem:[#allocation2 + $0x148] sm:$0x70] %v4473
        %4520 = vst [vmem:[#allocation2 + $0x150] sm:$0x70] %v4474
        %4521 = vst [vmem:[#allocation2 + $0x158] sm:$0x70] %v4475
        %4522 = vst [vmem:[#allocation2 + $0x160] sm:$0x70] %v4476
        %4523 = vst [vmem:[#allocation2 + $0x168] sm:$0x70] %v4477
        %4524 = vst [vmem:[#allocation2 + $0x170] sm:$0x70] %v4478
        %4525 = vst [vmem:[#allocation2 + $0x178] sm:$0x70] %v4479
        %4526 = vst [vmem:[#allocation2 + $0x180] sm:$0x70] %v4484
        %4527 = vst [vmem:[#allocation2 + $0x188] sm:$0x70] %v4485
        %4528 = vst [vmem:[#allocation2 + $0x190] sm:$0x70] %v4486
        %4529 = vst [vmem:[#allocation2 + $0x198] sm:$0x70] %v4487
        %4530 = vst [vmem:[#allocation2 + $0x1a0] sm:$0x70] %v4488
        %4531 = vst [vmem:[#allocation2 + $0x1a8] sm:$0x70] %v4489
        %4532 = vst [vmem:[#allocation2 + $0x1b0] sm:$0x70] %v4490
        %4533 = vst [vmem:[#allocation2 + $0x1b8] sm:$0x70] %v4491
        %4534 = vst [vmem:[#allocation2 + $0x1c0] sm:$0x70] %v4494
        %4535 = vst [vmem:[#allocation2 + $0x1c8] sm:$0x70] %v4495
        %4536 = vst [vmem:[#allocation2 + $0x1d0] sm:$0x70] %v4496
        %4537 = vst [vmem:[#allocation2 + $0x1d8] sm:$0x70] %v4497
        %s4548 = scalar_lea.vmem [#allocation1], 1
        %4549 = vst [vmem:[%s4548] ss:$2 sm:$0xff] %v4444
        %s4550 = scalar_lea.vmem [#allocation1], 17
        %4551 = vst [vmem:[%s4550] ss:$2 sm:$0xff] %v4445
        %s4552 = scalar_lea.vmem [#allocation1], 33
        %4553 = vst [vmem:[%s4552] ss:$2 sm:$0xff] %v4446
        %s4554 = scalar_lea.vmem [#allocation1], 49
        %4555 = vst [vmem:[%s4554] ss:$2 sm:$0xff] %v4447
        %v4556 = vld.sshfl [vmem:[#allocation1] sm:$0xff pattern:$0x75316420]
        %v4557 = vld.sshfl [vmem:[#allocation1 + $0x8] sm:$0xff pattern:$0x75316420]
        %v4558 = vld.sshfl [vmem:[#allocation1 + $0x10] sm:$0xff pattern:$0x75316420]
        %v4559 = vld.sshfl [vmem:[#allocation1 + $0x18] sm:$0xff pattern:$0x75316420]
        %v4560 = vld.sshfl [vmem:[#allocation1 + $0x20] sm:$0xff pattern:$0x75316420]
        %v4561 = vld.sshfl [vmem:[#allocation1 + $0x28] sm:$0xff pattern:$0x75316420]
        %v4562 = vld.sshfl [vmem:[#allocation1 + $0x30] sm:$0xff pattern:$0x75316420]
        %v4563 = vld.sshfl [vmem:[#allocation1 + $0x38] sm:$0xff pattern:$0x75316420]
        %4564 = vst [vmem:[%s4548] ss:$2 sm:$0xff] %v4448
        %4565 = vst [vmem:[%s4550] ss:$2 sm:$0xff] %v4449
        %4566 = vst [vmem:[%s4552] ss:$2 sm:$0xff] %v4450
        %4567 = vst [vmem:[%s4554] ss:$2 sm:$0xff] %v4451
        %v4568 = vld.sshfl [vmem:[#allocation1] sm:$0xff pattern:$0x75316420]
        %v4569 = vld.sshfl [vmem:[#allocation1 + $0x8] sm:$0xff pattern:$0x75316420]
        %v4570 = vld.sshfl [vmem:[#allocation1 + $0x10] sm:$0xff pattern:$0x75316420]
        %v4571 = vld.sshfl [vmem:[#allocation1 + $0x18] sm:$0xff pattern:$0x75316420]
        %v4572 = vld.sshfl [vmem:[#allocation1 + $0x20] sm:$0xff pattern:$0x75316420]
        %v4573 = vld.sshfl [vmem:[#allocation1 + $0x28] sm:$0xff pattern:$0x75316420]
        %v4574 = vld.sshfl [vmem:[#allocation1 + $0x30] sm:$0xff pattern:$0x75316420]
        %v4575 = vld.sshfl [vmem:[#allocation1 + $0x38] sm:$0xff pattern:$0x75316420]
        %4576 = vst [vmem:[%s4548] ss:$2 sm:$0xff] %v4452
        %4577 = vst [vmem:[%s4550] ss:$2 sm:$0xff] %v4453
        %v4578 = vld.sshfl [vmem:[#allocation1] sm:$0xff pattern:$0x75316420]
        %v4579 = vld.sshfl [vmem:[#allocation1 + $0x8] sm:$0xff pattern:$0x75316420]
        %v4580 = vld.sshfl [vmem:[#allocation1 + $0x10] sm:$0xff pattern:$0x75316420]
        %v4581 = vld.sshfl [vmem:[#allocation1 + $0x18] sm:$0xff pattern:$0x75316420]
        %4602 = vst [vmem:[#allocation2 + $0x280] sm:$0x70] %v4556
        %4603 = vst [vmem:[#allocation2 + $0x288] sm:$0x70] %v4557
        %4604 = vst [vmem:[#allocation2 + $0x290] sm:$0x70] %v4558
        %4605 = vst [vmem:[#allocation2 + $0x298] sm:$0x70] %v4559
        %4606 = vst [vmem:[#allocation2 + $0x2a0] sm:$0x70] %v4560
        %4607 = vst [vmem:[#allocation2 + $0x2a8] sm:$0x70] %v4561
        %4608 = vst [vmem:[#allocation2 + $0x2b0] sm:$0x70] %v4562
        %4609 = vst [vmem:[#allocation2 + $0x2b8] sm:$0x70] %v4563
        %4610 = vst [vmem:[#allocation2 + $0x2c0] sm:$0x70] %v4568
        %4611 = vst [vmem:[#allocation2 + $0x2c8] sm:$0x70] %v4569
        %4612 = vst [vmem:[#allocation2 + $0x2d0] sm:$0x70] %v4570
        %4613 = vst [vmem:[#allocation2 + $0x2d8] sm:$0x70] %v4571
        %4614 = vst [vmem:[#allocation2 + $0x2e0] sm:$0x70] %v4572
        %4615 = vst [vmem:[#allocation2 + $0x2e8] sm:$0x70] %v4573
        %4616 = vst [vmem:[#allocation2 + $0x2f0] sm:$0x70] %v4574
        %4617 = vst [vmem:[#allocation2 + $0x2f8] sm:$0x70] %v4575
        %4618 = vst [vmem:[#allocation2 + $0x300] sm:$0x70] %v4578
        %4619 = vst [vmem:[#allocation2 + $0x308] sm:$0x70] %v4579
        %4620 = vst [vmem:[#allocation2 + $0x310] sm:$0x70] %v4580
        %4621 = vst [vmem:[#allocation2 + $0x318] sm:$0x70] %v4581
        %v4622 = vld [vmem:[%s3] sm:$0xff]
        %v4623 = vld [vmem:[%s3 + $0x8] sm:$0xff]
        %v4624 = vld [vmem:[%s3 + $0x10] sm:$0xff]
        %v4625 = vld [vmem:[%s3 + $0x18] sm:$0xff]
        %v4626 = vld [vmem:[#allocation2] sm:$0xff]
        %v4627 = vld [vmem:[#allocation2 + $0x8] sm:$0xff]
        %v4628 = vld [vmem:[#allocation2 + $0x10] sm:$0xff]
        %v4629 = vld [vmem:[#allocation2 + $0x18] sm:$0xff]
        %v4630 = vld [vmem:[#allocation2 + $0x20] sm:$0xff]
        %v4631 = vld [vmem:[#allocation2 + $0x28] sm:$0xff]
        %v4632 = vld [vmem:[#allocation2 + $0x30] sm:$0xff]
        %v4633 = vld [vmem:[#allocation2 + $0x38] sm:$0xff]
        %v4634 = vld [vmem:[#allocation2 + $0x40] sm:$0xff]
        %v4635 = vld [vmem:[#allocation2 + $0x48] sm:$0xff]
        %v4636 = vld [vmem:[#allocation2 + $0x50] sm:$0xff]
        %v4637 = vld [vmem:[#allocation2 + $0x58] sm:$0xff]
        %v4638 = vld [vmem:[#allocation2 + $0x60] sm:$0xff]
        %v4639 = vld [vmem:[#allocation2 + $0x68] sm:$0xff]
        %v4640 = vld [vmem:[#allocation2 + $0x70] sm:$0xff]
        %v4641 = vld [vmem:[#allocation2 + $0x78] sm:$0xff]
        %v4642 = vld [vmem:[#allocation2 + $0x80] sm:$0xff]
        %v4643 = vld [vmem:[#allocation2 + $0x88] sm:$0xff]
        %v4644 = vld [vmem:[#allocation2 + $0x90] sm:$0xff]
        %v4645 = vld [vmem:[#allocation2 + $0x98] sm:$0xff]
        %v4646 = vld [vmem:[#allocation2 + $0xa0] sm:$0xff]
        %v4647 = vld [vmem:[#allocation2 + $0xa8] sm:$0xff]
        %v4648 = vld [vmem:[#allocation2 + $0xb0] sm:$0xff]
        %v4649 = vld [vmem:[#allocation2 + $0xb8] sm:$0xff]
        %v4650 = vld [vmem:[#allocation2 + $0xc0] sm:$0xff]
        %v4651 = vld [vmem:[#allocation2 + $0xc8] sm:$0xff]
        %v4652 = vld [vmem:[#allocation2 + $0xd0] sm:$0xff]
        %v4653 = vld [vmem:[#allocation2 + $0xd8] sm:$0xff]
        %v4654 = vld [vmem:[#allocation2 + $0xe0] sm:$0xff]
        %v4655 = vld [vmem:[#allocation2 + $0xe8] sm:$0xff]
        %v4656 = vld [vmem:[#allocation2 + $0xf0] sm:$0xff]
        %v4657 = vld [vmem:[#allocation2 + $0xf8] sm:$0xff]
        %v4658 = vld [vmem:[#allocation2 + $0x100] sm:$0xff]
        %v4659 = vld [vmem:[#allocation2 + $0x108] sm:$0xff]
        %v4660 = vld [vmem:[#allocation2 + $0x110] sm:$0xff]
        %v4661 = vld [vmem:[#allocation2 + $0x118] sm:$0xff]
        %v4662 = vld [vmem:[#allocation2 + $0x120] sm:$0xff]
        %v4663 = vld [vmem:[#allocation2 + $0x128] sm:$0xff]
        %v4664 = vld [vmem:[#allocation2 + $0x130] sm:$0xff]
        %v4665 = vld [vmem:[#allocation2 + $0x138] sm:$0xff]
        %v4666 = vld [vmem:[#allocation2 + $0x140] sm:$0xff]
        %v4667 = vld [vmem:[#allocation2 + $0x148] sm:$0xff]
        %v4668 = vld [vmem:[#allocation2 + $0x150] sm:$0xff]
        %v4669 = vld [vmem:[#allocation2 + $0x158] sm:$0xff]
        %v4670 = vld [vmem:[#allocation2 + $0x160] sm:$0xff]
        %v4671 = vld [vmem:[#allocation2 + $0x168] sm:$0xff]
        %v4672 = vld [vmem:[#allocation2 + $0x170] sm:$0xff]
        %v4673 = vld [vmem:[#allocation2 + $0x178] sm:$0xff]
        %v4674 = vld [vmem:[#allocation2 + $0x180] sm:$0xff]
        %v4675 = vld [vmem:[#allocation2 + $0x188] sm:$0xff]
        %v4676 = vld [vmem:[#allocation2 + $0x190] sm:$0xff]
        %v4677 = vld [vmem:[#allocation2 + $0x198] sm:$0xff]
        %v4678 = vld [vmem:[#allocation2 + $0x1a0] sm:$0xff]
        %v4679 = vld [vmem:[#allocation2 + $0x1a8] sm:$0xff]
        %v4680 = vld [vmem:[#allocation2 + $0x1b0] sm:$0xff]
        %v4681 = vld [vmem:[#allocation2 + $0x1b8] sm:$0xff]
        %v4682 = vld [vmem:[#allocation2 + $0x1c0] sm:$0xff]
        %v4683 = vld [vmem:[#allocation2 + $0x1c8] sm:$0xff]
        %v4684 = vld [vmem:[#allocation2 + $0x1d0] sm:$0xff]
        %v4685 = vld [vmem:[#allocation2 + $0x1d8] sm:$0xff]
        %v4686 = vld [vmem:[#allocation2 + $0x1e0] sm:$0xff]
        %v4687 = vld [vmem:[#allocation2 + $0x1e8] sm:$0xff]
        %v4688 = vld [vmem:[#allocation2 + $0x1f0] sm:$0xff]
        %v4689 = vld [vmem:[#allocation2 + $0x1f8] sm:$0xff]
        %v4690 = vld [vmem:[#allocation2 + $0x200] sm:$0xff]
        %v4691 = vld [vmem:[#allocation2 + $0x208] sm:$0xff]
        %v4692 = vld [vmem:[#allocation2 + $0x210] sm:$0xff]
        %v4693 = vld [vmem:[#allocation2 + $0x218] sm:$0xff]
        %v4694 = vld [vmem:[#allocation2 + $0x220] sm:$0xff]
        %v4695 = vld [vmem:[#allocation2 + $0x228] sm:$0xff]
        %v4696 = vld [vmem:[#allocation2 + $0x230] sm:$0xff]
        %v4697 = vld [vmem:[#allocation2 + $0x238] sm:$0xff]
        %v4698 = vld [vmem:[#allocation2 + $0x240] sm:$0xff]
        %v4699 = vld [vmem:[#allocation2 + $0x248] sm:$0xff]
        %v4700 = vld [vmem:[#allocation2 + $0x250] sm:$0xff]
        %v4701 = vld [vmem:[#allocation2 + $0x258] sm:$0xff]
        %v4702 = vld [vmem:[#allocation2 + $0x260] sm:$0xff]
        %v4703 = vld [vmem:[#allocation2 + $0x268] sm:$0xff]
        %v4704 = vld [vmem:[#allocation2 + $0x270] sm:$0xff]
        %v4705 = vld [vmem:[#allocation2 + $0x278] sm:$0xff]
        %v4706 = vld [vmem:[#allocation2 + $0x280] sm:$0xff]
        %v4707 = vld [vmem:[#allocation2 + $0x288] sm:$0xff]
        %v4708 = vld [vmem:[#allocation2 + $0x290] sm:$0xff]
        %v4709 = vld [vmem:[#allocation2 + $0x298] sm:$0xff]
        %v4710 = vld [vmem:[#allocation2 + $0x2a0] sm:$0xff]
        %v4711 = vld [vmem:[#allocation2 + $0x2a8] sm:$0xff]
        %v4712 = vld [vmem:[#allocation2 + $0x2b0] sm:$0xff]
        %v4713 = vld [vmem:[#allocation2 + $0x2b8] sm:$0xff]
        %v4714 = vld [vmem:[#allocation2 + $0x2c0] sm:$0xff]
        %v4715 = vld [vmem:[#allocation2 + $0x2c8] sm:$0xff]
        %v4716 = vld [vmem:[#allocation2 + $0x2d0] sm:$0xff]
        %v4717 = vld [vmem:[#allocation2 + $0x2d8] sm:$0xff]
        %v4718 = vld [vmem:[#allocation2 + $0x2e0] sm:$0xff]
        %v4719 = vld [vmem:[#allocation2 + $0x2e8] sm:$0xff]
        %v4720 = vld [vmem:[#allocation2 + $0x2f0] sm:$0xff]
        %v4721 = vld [vmem:[#allocation2 + $0x2f8] sm:$0xff]
        %v4722 = vld [vmem:[#allocation2 + $0x300] sm:$0xff]
        %v4723 = vld [vmem:[#allocation2 + $0x308] sm:$0xff]
        %v4724 = vld [vmem:[#allocation2 + $0x310] sm:$0xff]
        %v4725 = vld [vmem:[#allocation2 + $0x318] sm:$0xff]
        %vm4726 = vcmask 326656
        %v4728 = vsel %vm4726, %v4622, 0
        %v4731 = vsel %vm4726, %v4623, 0
        %v4734 = vsel %vm4726, %v4624, 0
        %v4737 = vsel %vm4726, %v4625, 0
        %4739 = vmatpush.msra.mxu0 0.0
        %4740 = vmatpush.msra.mxu0 0.0
        %4741 = vmatpush.msra.mxu0 0.0
        %4742 = vmatpush.msra.mxu0 0.0
        %4743 = vmatpush.msra.mxu0 0.0
        %4744 = vmatpush.msra.mxu0 0.0
        %4745 = vmatpush.msra.mxu0 0.0
        %4746 = vmatpush.msra.mxu0 0.0
        %4747 = vmatpush.msra.mxu0 0.0
        %4748 = vmatpush.msra.mxu0 0.0
        %4749 = vmatpush.msra.mxu0 0.0
        %4750 = vmatpush.msra.mxu0 %v4706
        %4751 = vmatpush.msra.mxu0 %v4686
        %4752 = vmatpush.msra.mxu0 %v4666
        %4753 = vmatpush.msra.mxu0 %v4646
        %4754 = vmatpush.msra.mxu0 %v4626
        %4755 = vmatmul.f32.gmra.mxu0 %v4728
        %v4756 = vpop.f32.mrf.mxu0
        %v4757 = vadd.f32 0.0, %v4756
        %4758 = vmatmul.f32.gmra.mxu0 %v4731
        %v4759 = vpop.f32.mrf.mxu0
        %v4760 = vadd.f32 0.0, %v4759
        %4761 = vmatmul.f32.gmra.mxu0 %v4734
        %v4762 = vpop.f32.mrf.mxu0
        %v4763 = vadd.f32 0.0, %v4762
        %4764 = vmatmul.f32.gmra.mxu0 %v4737
        %v4765 = vpop.f32.mrf.mxu0
        %v4766 = vadd.f32 0.0, %v4765
        %4767 = vdwg.mxu0
        %4768 = vmatpush.msra.mxu0 0.0
        %4769 = vmatpush.msra.mxu0 0.0
        %4770 = vmatpush.msra.mxu0 0.0
        %4771 = vmatpush.msra.mxu0 0.0
        %4772 = vmatpush.msra.mxu0 0.0
        %4773 = vmatpush.msra.mxu0 0.0
        %4774 = vmatpush.msra.mxu0 0.0
        %4775 = vmatpush.msra.mxu0 0.0
        %4776 = vmatpush.msra.mxu0 0.0
        %4777 = vmatpush.msra.mxu0 0.0
        %4778 = vmatpush.msra.mxu0 0.0
        %4779 = vmatpush.msra.mxu0 %v4707
        %4780 = vmatpush.msra.mxu0 %v4687
        %4781 = vmatpush.msra.mxu0 %v4667
        %4782 = vmatpush.msra.mxu0 %v4647
        %4783 = vmatpush.msra.mxu0 %v4627
        %4784 = vmatmul.f32.gmra.mxu0 %v4728
        %v4785 = vpop.f32.mrf.mxu0
        %v4786 = vadd.f32 0.0, %v4785
        %4787 = vmatmul.f32.gmra.mxu0 %v4731
        %v4788 = vpop.f32.mrf.mxu0
        %v4789 = vadd.f32 0.0, %v4788
        %4790 = vmatmul.f32.gmra.mxu0 %v4734
        %v4791 = vpop.f32.mrf.mxu0
        %v4792 = vadd.f32 0.0, %v4791
        %4793 = vmatmul.f32.gmra.mxu0 %v4737
        %v4794 = vpop.f32.mrf.mxu0
        %v4795 = vadd.f32 0.0, %v4794
        %4796 = vdwg.mxu0
        %4797 = vmatpush.msra.mxu0 0.0
        %4798 = vmatpush.msra.mxu0 0.0
        %4799 = vmatpush.msra.mxu0 0.0
        %4800 = vmatpush.msra.mxu0 0.0
        %4801 = vmatpush.msra.mxu0 0.0
        %4802 = vmatpush.msra.mxu0 0.0
        %4803 = vmatpush.msra.mxu0 0.0
        %4804 = vmatpush.msra.mxu0 0.0
        %4805 = vmatpush.msra.mxu0 0.0
        %4806 = vmatpush.msra.mxu0 0.0
        %4807 = vmatpush.msra.mxu0 0.0
        %4808 = vmatpush.msra.mxu0 %v4708
        %4809 = vmatpush.msra.mxu0 %v4688
        %4810 = vmatpush.msra.mxu0 %v4668
        %4811 = vmatpush.msra.mxu0 %v4648
        %4812 = vmatpush.msra.mxu0 %v4628
        %4813 = vmatmul.f32.gmra.mxu0 %v4728
        %v4814 = vpop.f32.mrf.mxu0
        %v4815 = vadd.f32 0.0, %v4814
        %4816 = vmatmul.f32.gmra.mxu0 %v4731
        %v4817 = vpop.f32.mrf.mxu0
        %v4818 = vadd.f32 0.0, %v4817
        %4819 = vmatmul.f32.gmra.mxu0 %v4734
        %v4820 = vpop.f32.mrf.mxu0
        %v4821 = vadd.f32 0.0, %v4820
        %4822 = vmatmul.f32.gmra.mxu0 %v4737
        %v4823 = vpop.f32.mrf.mxu0
        %v4824 = vadd.f32 0.0, %v4823
        %4825 = vdwg.mxu0
        %4826 = vmatpush.msra.mxu0 0.0
        %4827 = vmatpush.msra.mxu0 0.0
        %4828 = vmatpush.msra.mxu0 0.0
        %4829 = vmatpush.msra.mxu0 0.0
        %4830 = vmatpush.msra.mxu0 0.0
        %4831 = vmatpush.msra.mxu0 0.0
        %4832 = vmatpush.msra.mxu0 0.0
        %4833 = vmatpush.msra.mxu0 0.0
        %4834 = vmatpush.msra.mxu0 0.0
        %4835 = vmatpush.msra.mxu0 0.0
        %4836 = vmatpush.msra.mxu0 0.0
        %4837 = vmatpush.msra.mxu0 %v4709
        %4838 = vmatpush.msra.mxu0 %v4689
        %4839 = vmatpush.msra.mxu0 %v4669
        %4840 = vmatpush.msra.mxu0 %v4649
        %4841 = vmatpush.msra.mxu0 %v4629
        %4842 = vmatmul.f32.gmra.mxu0 %v4728
        %v4843 = vpop.f32.mrf.mxu0
        %v4844 = vadd.f32 0.0, %v4843
        %4845 = vmatmul.f32.gmra.mxu0 %v4731
        %v4846 = vpop.f32.mrf.mxu0
        %v4847 = vadd.f32 0.0, %v4846
        %4848 = vmatmul.f32.gmra.mxu0 %v4734
        %v4849 = vpop.f32.mrf.mxu0
        %v4850 = vadd.f32 0.0, %v4849
        %4851 = vmatmul.f32.gmra.mxu0 %v4737
        %v4852 = vpop.f32.mrf.mxu0
        %v4853 = vadd.f32 0.0, %v4852
        %4854 = vdwg.mxu0
        %4855 = vmatpush.msra.mxu0 0.0
        %4856 = vmatpush.msra.mxu0 0.0
        %4857 = vmatpush.msra.mxu0 0.0
        %4858 = vmatpush.msra.mxu0 0.0
        %4859 = vmatpush.msra.mxu0 0.0
        %4860 = vmatpush.msra.mxu0 0.0
        %4861 = vmatpush.msra.mxu0 0.0
        %4862 = vmatpush.msra.mxu0 0.0
        %4863 = vmatpush.msra.mxu0 0.0
        %4864 = vmatpush.msra.mxu0 0.0
        %4865 = vmatpush.msra.mxu0 0.0
        %4866 = vmatpush.msra.mxu0 %v4710
        %4867 = vmatpush.msra.mxu0 %v4690
        %4868 = vmatpush.msra.mxu0 %v4670
        %4869 = vmatpush.msra.mxu0 %v4650
        %4870 = vmatpush.msra.mxu0 %v4630
        %4871 = vmatmul.f32.gmra.mxu0 %v4728
        %v4872 = vpop.f32.mrf.mxu0
        %v4873 = vadd.f32 0.0, %v4872
        %4874 = vmatmul.f32.gmra.mxu0 %v4731
        %v4875 = vpop.f32.mrf.mxu0
        %v4876 = vadd.f32 0.0, %v4875
        %4877 = vmatmul.f32.gmra.mxu0 %v4734
        %v4878 = vpop.f32.mrf.mxu0
        %v4879 = vadd.f32 0.0, %v4878
        %4880 = vmatmul.f32.gmra.mxu0 %v4737
        %v4881 = vpop.f32.mrf.mxu0
        %v4882 = vadd.f32 0.0, %v4881
        %4883 = vdwg.mxu0
        %4884 = vmatpush.msra.mxu0 0.0
        %4885 = vmatpush.msra.mxu0 0.0
        %4886 = vmatpush.msra.mxu0 0.0
        %4887 = vmatpush.msra.mxu0 0.0
        %4888 = vmatpush.msra.mxu0 0.0
        %4889 = vmatpush.msra.mxu0 0.0
        %4890 = vmatpush.msra.mxu0 0.0
        %4891 = vmatpush.msra.mxu0 0.0
        %4892 = vmatpush.msra.mxu0 0.0
        %4893 = vmatpush.msra.mxu0 0.0
        %4894 = vmatpush.msra.mxu0 0.0
        %4895 = vmatpush.msra.mxu0 %v4711
        %4896 = vmatpush.msra.mxu0 %v4691
        %4897 = vmatpush.msra.mxu0 %v4671
        %4898 = vmatpush.msra.mxu0 %v4651
        %4899 = vmatpush.msra.mxu0 %v4631
        %4900 = vmatmul.f32.gmra.mxu0 %v4728
        %v4901 = vpop.f32.mrf.mxu0
        %v4902 = vadd.f32 0.0, %v4901
        %4903 = vmatmul.f32.gmra.mxu0 %v4731
        %v4904 = vpop.f32.mrf.mxu0
        %v4905 = vadd.f32 0.0, %v4904
        %4906 = vmatmul.f32.gmra.mxu0 %v4734
        %v4907 = vpop.f32.mrf.mxu0
        %v4908 = vadd.f32 0.0, %v4907
        %4909 = vmatmul.f32.gmra.mxu0 %v4737
        %v4910 = vpop.f32.mrf.mxu0
        %v4911 = vadd.f32 0.0, %v4910
        %4912 = vdwg.mxu0
        %4913 = vmatpush.msra.mxu0 0.0
        %4914 = vmatpush.msra.mxu0 0.0
        %4915 = vmatpush.msra.mxu0 0.0
        %4916 = vmatpush.msra.mxu0 0.0
        %4917 = vmatpush.msra.mxu0 0.0
        %4918 = vmatpush.msra.mxu0 0.0
        %4919 = vmatpush.msra.mxu0 0.0
        %4920 = vmatpush.msra.mxu0 0.0
        %4921 = vmatpush.msra.mxu0 0.0
        %4922 = vmatpush.msra.mxu0 0.0
        %4923 = vmatpush.msra.mxu0 0.0
        %4924 = vmatpush.msra.mxu0 %v4712
        %4925 = vmatpush.msra.mxu0 %v4692
        %4926 = vmatpush.msra.mxu0 %v4672
        %4927 = vmatpush.msra.mxu0 %v4652
        %4928 = vmatpush.msra.mxu0 %v4632
        %4929 = vmatmul.f32.gmra.mxu0 %v4728
        %v4930 = vpop.f32.mrf.mxu0
        %v4931 = vadd.f32 0.0, %v4930
        %4932 = vmatmul.f32.gmra.mxu0 %v4731
        %v4933 = vpop.f32.mrf.mxu0
        %v4934 = vadd.f32 0.0, %v4933
        %4935 = vmatmul.f32.gmra.mxu0 %v4734
        %v4936 = vpop.f32.mrf.mxu0
        %v4937 = vadd.f32 0.0, %v4936
        %4938 = vmatmul.f32.gmra.mxu0 %v4737
        %v4939 = vpop.f32.mrf.mxu0
        %v4940 = vadd.f32 0.0, %v4939
        %4941 = vdwg.mxu0
        %4942 = vmatpush.msra.mxu0 0.0
        %4943 = vmatpush.msra.mxu0 0.0
        %4944 = vmatpush.msra.mxu0 0.0
        %4945 = vmatpush.msra.mxu0 0.0
        %4946 = vmatpush.msra.mxu0 0.0
        %4947 = vmatpush.msra.mxu0 0.0
        %4948 = vmatpush.msra.mxu0 0.0
        %4949 = vmatpush.msra.mxu0 0.0
        %4950 = vmatpush.msra.mxu0 0.0
        %4951 = vmatpush.msra.mxu0 0.0
        %4952 = vmatpush.msra.mxu0 0.0
        %4953 = vmatpush.msra.mxu0 %v4713
        %4954 = vmatpush.msra.mxu0 %v4693
        %4955 = vmatpush.msra.mxu0 %v4673
        %4956 = vmatpush.msra.mxu0 %v4653
        %4957 = vmatpush.msra.mxu0 %v4633
        %4958 = vmatmul.f32.gmra.mxu0 %v4728
        %v4959 = vpop.f32.mrf.mxu0
        %v4960 = vadd.f32 0.0, %v4959
        %4961 = vmatmul.f32.gmra.mxu0 %v4731
        %v4962 = vpop.f32.mrf.mxu0
        %v4963 = vadd.f32 0.0, %v4962
        %4964 = vmatmul.f32.gmra.mxu0 %v4734
        %v4965 = vpop.f32.mrf.mxu0
        %v4966 = vadd.f32 0.0, %v4965
        %4967 = vmatmul.f32.gmra.mxu0 %v4737
        %v4968 = vpop.f32.mrf.mxu0
        %v4969 = vadd.f32 0.0, %v4968
        %4970 = vdwg.mxu0
        %4971 = vmatpush.msra.mxu0 0.0
        %4972 = vmatpush.msra.mxu0 0.0
        %4973 = vmatpush.msra.mxu0 0.0
        %4974 = vmatpush.msra.mxu0 0.0
        %4975 = vmatpush.msra.mxu0 0.0
        %4976 = vmatpush.msra.mxu0 0.0
        %4977 = vmatpush.msra.mxu0 0.0
        %4978 = vmatpush.msra.mxu0 0.0
        %4979 = vmatpush.msra.mxu0 0.0
        %4980 = vmatpush.msra.mxu0 0.0
        %4981 = vmatpush.msra.mxu0 0.0
        %4982 = vmatpush.msra.mxu0 %v4714
        %4983 = vmatpush.msra.mxu0 %v4694
        %4984 = vmatpush.msra.mxu0 %v4674
        %4985 = vmatpush.msra.mxu0 %v4654
        %4986 = vmatpush.msra.mxu0 %v4634
        %4987 = vmatmul.f32.gmra.mxu0 %v4728
        %v4988 = vpop.f32.mrf.mxu0
        %v4989 = vadd.f32 0.0, %v4988
        %4990 = vmatmul.f32.gmra.mxu0 %v4731
        %v4991 = vpop.f32.mrf.mxu0
        %v4992 = vadd.f32 0.0, %v4991
        %4993 = vmatmul.f32.gmra.mxu0 %v4734
        %v4994 = vpop.f32.mrf.mxu0
        %v4995 = vadd.f32 0.0, %v4994
        %4996 = vmatmul.f32.gmra.mxu0 %v4737
        %v4997 = vpop.f32.mrf.mxu0
        %v4998 = vadd.f32 0.0, %v4997
        %4999 = vdwg.mxu0
        %5000 = vmatpush.msra.mxu0 0.0
        %5001 = vmatpush.msra.mxu0 0.0
        %5002 = vmatpush.msra.mxu0 0.0
        %5003 = vmatpush.msra.mxu0 0.0
        %5004 = vmatpush.msra.mxu0 0.0
        %5005 = vmatpush.msra.mxu0 0.0
        %5006 = vmatpush.msra.mxu0 0.0
        %5007 = vmatpush.msra.mxu0 0.0
        %5008 = vmatpush.msra.mxu0 0.0
        %5009 = vmatpush.msra.mxu0 0.0
        %5010 = vmatpush.msra.mxu0 0.0
        %5011 = vmatpush.msra.mxu0 %v4715
        %5012 = vmatpush.msra.mxu0 %v4695
        %5013 = vmatpush.msra.mxu0 %v4675
        %5014 = vmatpush.msra.mxu0 %v4655
        %5015 = vmatpush.msra.mxu0 %v4635
        %5016 = vmatmul.f32.gmra.mxu0 %v4728
        %v5017 = vpop.f32.mrf.mxu0
        %v5018 = vadd.f32 0.0, %v5017
        %5019 = vmatmul.f32.gmra.mxu0 %v4731
        %v5020 = vpop.f32.mrf.mxu0
        %v5021 = vadd.f32 0.0, %v5020
        %5022 = vmatmul.f32.gmra.mxu0 %v4734
        %v5023 = vpop.f32.mrf.mxu0
        %v5024 = vadd.f32 0.0, %v5023
        %5025 = vmatmul.f32.gmra.mxu0 %v4737
        %v5026 = vpop.f32.mrf.mxu0
        %v5027 = vadd.f32 0.0, %v5026
        %5028 = vdwg.mxu0
        %5029 = vmatpush.msra.mxu0 0.0
        %5030 = vmatpush.msra.mxu0 0.0
        %5031 = vmatpush.msra.mxu0 0.0
        %5032 = vmatpush.msra.mxu0 0.0
        %5033 = vmatpush.msra.mxu0 0.0
        %5034 = vmatpush.msra.mxu0 0.0
        %5035 = vmatpush.msra.mxu0 0.0
        %5036 = vmatpush.msra.mxu0 0.0
        %5037 = vmatpush.msra.mxu0 0.0
        %5038 = vmatpush.msra.mxu0 0.0
        %5039 = vmatpush.msra.mxu0 0.0
        %5040 = vmatpush.msra.mxu0 %v4716
        %5041 = vmatpush.msra.mxu0 %v4696
        %5042 = vmatpush.msra.mxu0 %v4676
        %5043 = vmatpush.msra.mxu0 %v4656
        %5044 = vmatpush.msra.mxu0 %v4636
        %5045 = vmatmul.f32.gmra.mxu0 %v4728
        %v5046 = vpop.f32.mrf.mxu0
        %v5047 = vadd.f32 0.0, %v5046
        %5048 = vmatmul.f32.gmra.mxu0 %v4731
        %v5049 = vpop.f32.mrf.mxu0
        %v5050 = vadd.f32 0.0, %v5049
        %5051 = vmatmul.f32.gmra.mxu0 %v4734
        %v5052 = vpop.f32.mrf.mxu0
        %v5053 = vadd.f32 0.0, %v5052
        %5054 = vmatmul.f32.gmra.mxu0 %v4737
        %v5055 = vpop.f32.mrf.mxu0
        %v5056 = vadd.f32 0.0, %v5055
        %5057 = vdwg.mxu0
        %5058 = vmatpush.msra.mxu0 0.0
        %5059 = vmatpush.msra.mxu0 0.0
        %5060 = vmatpush.msra.mxu0 0.0
        %5061 = vmatpush.msra.mxu0 0.0
        %5062 = vmatpush.msra.mxu0 0.0
        %5063 = vmatpush.msra.mxu0 0.0
        %5064 = vmatpush.msra.mxu0 0.0
        %5065 = vmatpush.msra.mxu0 0.0
        %5066 = vmatpush.msra.mxu0 0.0
        %5067 = vmatpush.msra.mxu0 0.0
        %5068 = vmatpush.msra.mxu0 0.0
        %5069 = vmatpush.msra.mxu0 %v4717
        %5070 = vmatpush.msra.mxu0 %v4697
        %5071 = vmatpush.msra.mxu0 %v4677
        %5072 = vmatpush.msra.mxu0 %v4657
        %5073 = vmatpush.msra.mxu0 %v4637
        %5074 = vmatmul.f32.gmra.mxu0 %v4728
        %v5075 = vpop.f32.mrf.mxu0
        %v5076 = vadd.f32 0.0, %v5075
        %5077 = vmatmul.f32.gmra.mxu0 %v4731
        %v5078 = vpop.f32.mrf.mxu0
        %v5079 = vadd.f32 0.0, %v5078
        %5080 = vmatmul.f32.gmra.mxu0 %v4734
        %v5081 = vpop.f32.mrf.mxu0
        %v5082 = vadd.f32 0.0, %v5081
        %5083 = vmatmul.f32.gmra.mxu0 %v4737
        %v5084 = vpop.f32.mrf.mxu0
        %v5085 = vadd.f32 0.0, %v5084
        %5086 = vdwg.mxu0
        %5087 = vmatpush.msra.mxu0 0.0
        %5088 = vmatpush.msra.mxu0 0.0
        %5089 = vmatpush.msra.mxu0 0.0
        %5090 = vmatpush.msra.mxu0 0.0
        %5091 = vmatpush.msra.mxu0 0.0
        %5092 = vmatpush.msra.mxu0 0.0
        %5093 = vmatpush.msra.mxu0 0.0
        %5094 = vmatpush.msra.mxu0 0.0
        %5095 = vmatpush.msra.mxu0 0.0
        %5096 = vmatpush.msra.mxu0 0.0
        %5097 = vmatpush.msra.mxu0 0.0
        %5098 = vmatpush.msra.mxu0 %v4718
        %5099 = vmatpush.msra.mxu0 %v4698
        %5100 = vmatpush.msra.mxu0 %v4678
        %5101 = vmatpush.msra.mxu0 %v4658
        %5102 = vmatpush.msra.mxu0 %v4638
        %5103 = vmatmul.f32.gmra.mxu0 %v4728
        %v5104 = vpop.f32.mrf.mxu0
        %v5105 = vadd.f32 0.0, %v5104
        %5106 = vmatmul.f32.gmra.mxu0 %v4731
        %v5107 = vpop.f32.mrf.mxu0
        %v5108 = vadd.f32 0.0, %v5107
        %5109 = vmatmul.f32.gmra.mxu0 %v4734
        %v5110 = vpop.f32.mrf.mxu0
        %v5111 = vadd.f32 0.0, %v5110
        %5112 = vmatmul.f32.gmra.mxu0 %v4737
        %v5113 = vpop.f32.mrf.mxu0
        %v5114 = vadd.f32 0.0, %v5113
        %5115 = vdwg.mxu0
        %5116 = vmatpush.msra.mxu0 0.0
        %5117 = vmatpush.msra.mxu0 0.0
        %5118 = vmatpush.msra.mxu0 0.0
        %5119 = vmatpush.msra.mxu0 0.0
        %5120 = vmatpush.msra.mxu0 0.0
        %5121 = vmatpush.msra.mxu0 0.0
        %5122 = vmatpush.msra.mxu0 0.0
        %5123 = vmatpush.msra.mxu0 0.0
        %5124 = vmatpush.msra.mxu0 0.0
        %5125 = vmatpush.msra.mxu0 0.0
        %5126 = vmatpush.msra.mxu0 0.0
        %5127 = vmatpush.msra.mxu0 %v4719
        %5128 = vmatpush.msra.mxu0 %v4699
        %5129 = vmatpush.msra.mxu0 %v4679
        %5130 = vmatpush.msra.mxu0 %v4659
        %5131 = vmatpush.msra.mxu0 %v4639
        %5132 = vmatmul.f32.gmra.mxu0 %v4728
        %v5133 = vpop.f32.mrf.mxu0
        %v5134 = vadd.f32 0.0, %v5133
        %5135 = vmatmul.f32.gmra.mxu0 %v4731
        %v5136 = vpop.f32.mrf.mxu0
        %v5137 = vadd.f32 0.0, %v5136
        %5138 = vmatmul.f32.gmra.mxu0 %v4734
        %v5139 = vpop.f32.mrf.mxu0
        %v5140 = vadd.f32 0.0, %v5139
        %5141 = vmatmul.f32.gmra.mxu0 %v4737
        %v5142 = vpop.f32.mrf.mxu0
        %v5143 = vadd.f32 0.0, %v5142
        %5144 = vdwg.mxu0
        %5145 = vmatpush.msra.mxu0 0.0
        %5146 = vmatpush.msra.mxu0 0.0
        %5147 = vmatpush.msra.mxu0 0.0
        %5148 = vmatpush.msra.mxu0 0.0
        %5149 = vmatpush.msra.mxu0 0.0
        %5150 = vmatpush.msra.mxu0 0.0
        %5151 = vmatpush.msra.mxu0 0.0
        %5152 = vmatpush.msra.mxu0 0.0
        %5153 = vmatpush.msra.mxu0 0.0
        %5154 = vmatpush.msra.mxu0 0.0
        %5155 = vmatpush.msra.mxu0 0.0
        %5156 = vmatpush.msra.mxu0 %v4720
        %5157 = vmatpush.msra.mxu0 %v4700
        %5158 = vmatpush.msra.mxu0 %v4680
        %5159 = vmatpush.msra.mxu0 %v4660
        %5160 = vmatpush.msra.mxu0 %v4640
        %5161 = vmatmul.f32.gmra.mxu0 %v4728
        %v5162 = vpop.f32.mrf.mxu0
        %v5163 = vadd.f32 0.0, %v5162
        %5164 = vmatmul.f32.gmra.mxu0 %v4731
        %v5165 = vpop.f32.mrf.mxu0
        %v5166 = vadd.f32 0.0, %v5165
        %5167 = vmatmul.f32.gmra.mxu0 %v4734
        %v5168 = vpop.f32.mrf.mxu0
        %v5169 = vadd.f32 0.0, %v5168
        %5170 = vmatmul.f32.gmra.mxu0 %v4737
        %v5171 = vpop.f32.mrf.mxu0
        %v5172 = vadd.f32 0.0, %v5171
        %5173 = vdwg.mxu0
        %5174 = vmatpush.msra.mxu0 0.0
        %5175 = vmatpush.msra.mxu0 0.0
        %5176 = vmatpush.msra.mxu0 0.0
        %5177 = vmatpush.msra.mxu0 0.0
        %5178 = vmatpush.msra.mxu0 0.0
        %5179 = vmatpush.msra.mxu0 0.0
        %5180 = vmatpush.msra.mxu0 0.0
        %5181 = vmatpush.msra.mxu0 0.0
        %5182 = vmatpush.msra.mxu0 0.0
        %5183 = vmatpush.msra.mxu0 0.0
        %5184 = vmatpush.msra.mxu0 0.0
        %5185 = vmatpush.msra.mxu0 %v4721
        %5186 = vmatpush.msra.mxu0 %v4701
        %5187 = vmatpush.msra.mxu0 %v4681
        %5188 = vmatpush.msra.mxu0 %v4661
        %5189 = vmatpush.msra.mxu0 %v4641
        %5190 = vmatmul.f32.gmra.mxu0 %v4728
        %v5191 = vpop.f32.mrf.mxu0
        %v5192 = vadd.f32 0.0, %v5191
        %5193 = vmatmul.f32.gmra.mxu0 %v4731
        %v5194 = vpop.f32.mrf.mxu0
        %v5195 = vadd.f32 0.0, %v5194
        %5196 = vmatmul.f32.gmra.mxu0 %v4734
        %v5197 = vpop.f32.mrf.mxu0
        %v5198 = vadd.f32 0.0, %v5197
        %5199 = vmatmul.f32.gmra.mxu0 %v4737
        %v5200 = vpop.f32.mrf.mxu0
        %v5201 = vadd.f32 0.0, %v5200
        %5202 = vdwg.mxu0
        %5203 = vmatpush.msra.mxu0 0.0
        %5204 = vmatpush.msra.mxu0 0.0
        %5205 = vmatpush.msra.mxu0 0.0
        %5206 = vmatpush.msra.mxu0 0.0
        %5207 = vmatpush.msra.mxu0 0.0
        %5208 = vmatpush.msra.mxu0 0.0
        %5209 = vmatpush.msra.mxu0 0.0
        %5210 = vmatpush.msra.mxu0 0.0
        %5211 = vmatpush.msra.mxu0 0.0
        %5212 = vmatpush.msra.mxu0 0.0
        %5213 = vmatpush.msra.mxu0 0.0
        %5214 = vmatpush.msra.mxu0 %v4722
        %5215 = vmatpush.msra.mxu0 %v4702
        %5216 = vmatpush.msra.mxu0 %v4682
        %5217 = vmatpush.msra.mxu0 %v4662
        %5218 = vmatpush.msra.mxu0 %v4642
        %5219 = vmatmul.f32.gmra.mxu0 %v4728
        %v5220 = vpop.f32.mrf.mxu0
        %v5221 = vadd.f32 0.0, %v5220
        %5222 = vmatmul.f32.gmra.mxu0 %v4731
        %v5223 = vpop.f32.mrf.mxu0
        %v5224 = vadd.f32 0.0, %v5223
        %5225 = vmatmul.f32.gmra.mxu0 %v4734
        %v5226 = vpop.f32.mrf.mxu0
        %v5227 = vadd.f32 0.0, %v5226
        %5228 = vmatmul.f32.gmra.mxu0 %v4737
        %v5229 = vpop.f32.mrf.mxu0
        %v5230 = vadd.f32 0.0, %v5229
        %5231 = vdwg.mxu0
        %5232 = vmatpush.msra.mxu0 0.0
        %5233 = vmatpush.msra.mxu0 0.0
        %5234 = vmatpush.msra.mxu0 0.0
        %5235 = vmatpush.msra.mxu0 0.0
        %5236 = vmatpush.msra.mxu0 0.0
        %5237 = vmatpush.msra.mxu0 0.0
        %5238 = vmatpush.msra.mxu0 0.0
        %5239 = vmatpush.msra.mxu0 0.0
        %5240 = vmatpush.msra.mxu0 0.0
        %5241 = vmatpush.msra.mxu0 0.0
        %5242 = vmatpush.msra.mxu0 0.0
        %5243 = vmatpush.msra.mxu0 %v4723
        %5244 = vmatpush.msra.mxu0 %v4703
        %5245 = vmatpush.msra.mxu0 %v4683
        %5246 = vmatpush.msra.mxu0 %v4663
        %5247 = vmatpush.msra.mxu0 %v4643
        %5248 = vmatmul.f32.gmra.mxu0 %v4728
        %v5249 = vpop.f32.mrf.mxu0
        %v5250 = vadd.f32 0.0, %v5249
        %5251 = vmatmul.f32.gmra.mxu0 %v4731
        %v5252 = vpop.f32.mrf.mxu0
        %v5253 = vadd.f32 0.0, %v5252
        %5254 = vmatmul.f32.gmra.mxu0 %v4734
        %v5255 = vpop.f32.mrf.mxu0
        %v5256 = vadd.f32 0.0, %v5255
        %5257 = vmatmul.f32.gmra.mxu0 %v4737
        %v5258 = vpop.f32.mrf.mxu0
        %v5259 = vadd.f32 0.0, %v5258
        %5260 = vdwg.mxu0
        %5261 = vmatpush.msra.mxu0 0.0
        %5262 = vmatpush.msra.mxu0 0.0
        %5263 = vmatpush.msra.mxu0 0.0
        %5264 = vmatpush.msra.mxu0 0.0
        %5265 = vmatpush.msra.mxu0 0.0
        %5266 = vmatpush.msra.mxu0 0.0
        %5267 = vmatpush.msra.mxu0 0.0
        %5268 = vmatpush.msra.mxu0 0.0
        %5269 = vmatpush.msra.mxu0 0.0
        %5270 = vmatpush.msra.mxu0 0.0
        %5271 = vmatpush.msra.mxu0 0.0
        %5272 = vmatpush.msra.mxu0 %v4724
        %5273 = vmatpush.msra.mxu0 %v4704
        %5274 = vmatpush.msra.mxu0 %v4684
        %5275 = vmatpush.msra.mxu0 %v4664
        %5276 = vmatpush.msra.mxu0 %v4644
        %5277 = vmatmul.f32.gmra.mxu0 %v4728
        %v5278 = vpop.f32.mrf.mxu0
        %v5279 = vadd.f32 0.0, %v5278
        %5280 = vmatmul.f32.gmra.mxu0 %v4731
        %v5281 = vpop.f32.mrf.mxu0
        %v5282 = vadd.f32 0.0, %v5281
        %5283 = vmatmul.f32.gmra.mxu0 %v4734
        %v5284 = vpop.f32.mrf.mxu0
        %v5285 = vadd.f32 0.0, %v5284
        %5286 = vmatmul.f32.gmra.mxu0 %v4737
        %v5287 = vpop.f32.mrf.mxu0
        %v5288 = vadd.f32 0.0, %v5287
        %5289 = vdwg.mxu0
        %5290 = vmatpush.msra.mxu0 0.0
        %5291 = vmatpush.msra.mxu0 0.0
        %5292 = vmatpush.msra.mxu0 0.0
        %5293 = vmatpush.msra.mxu0 0.0
        %5294 = vmatpush.msra.mxu0 0.0
        %5295 = vmatpush.msra.mxu0 0.0
        %5296 = vmatpush.msra.mxu0 0.0
        %5297 = vmatpush.msra.mxu0 0.0
        %5298 = vmatpush.msra.mxu0 0.0
        %5299 = vmatpush.msra.mxu0 0.0
        %5300 = vmatpush.msra.mxu0 0.0
        %5301 = vmatpush.msra.mxu0 %v4725
        %5302 = vmatpush.msra.mxu0 %v4705
        %5303 = vmatpush.msra.mxu0 %v4685
        %5304 = vmatpush.msra.mxu0 %v4665
        %5305 = vmatpush.msra.mxu0 %v4645
        %5306 = vmatmul.f32.gmra.mxu0 %v4728
        %v5307 = vpop.f32.mrf.mxu0
        %v5308 = vadd.f32 0.0, %v5307
        %5309 = vmatmul.f32.gmra.mxu0 %v4731
        %v5310 = vpop.f32.mrf.mxu0
        %v5311 = vadd.f32 0.0, %v5310
        %5312 = vmatmul.f32.gmra.mxu0 %v4734
        %v5313 = vpop.f32.mrf.mxu0
        %v5314 = vadd.f32 0.0, %v5313
        %5315 = vmatmul.f32.gmra.mxu0 %v4737
        %v5316 = vpop.f32.mrf.mxu0
        %v5317 = vadd.f32 0.0, %v5316
        %5318 = vdwg.mxu0
        %5319 = vst [vmem:[%s187] sm:$0xff] %v4757
        %5320 = vst [vmem:[%s187 + $0x8] sm:$0xff] %v4786
        %5321 = vst [vmem:[%s187 + $0x10] sm:$0xff] %v4815
        %5322 = vst [vmem:[%s187 + $0x18] sm:$0xff] %v4844
        %5323 = vst [vmem:[%s187 + $0x20] sm:$0xff] %v4873
        %5324 = vst [vmem:[%s187 + $0x28] sm:$0xff] %v4902
        %5325 = vst [vmem:[%s187 + $0x30] sm:$0xff] %v4931
        %5326 = vst [vmem:[%s187 + $0x38] sm:$0xff] %v4960
        %5327 = vst [vmem:[%s187 + $0x40] sm:$0xff] %v4989
        %5328 = vst [vmem:[%s187 + $0x48] sm:$0xff] %v5018
        %5329 = vst [vmem:[%s187 + $0x50] sm:$0xff] %v5047
        %5330 = vst [vmem:[%s187 + $0x58] sm:$0xff] %v5076
        %5331 = vst [vmem:[%s187 + $0x60] sm:$0xff] %v5105
        %5332 = vst [vmem:[%s187 + $0x68] sm:$0xff] %v5134
        %5333 = vst [vmem:[%s187 + $0x70] sm:$0xff] %v5163
        %5334 = vst [vmem:[%s187 + $0x78] sm:$0xff] %v5192
        %5335 = vst [vmem:[%s187 + $0x80] sm:$0xff] %v5221
        %5336 = vst [vmem:[%s187 + $0x88] sm:$0xff] %v5250
        %5337 = vst [vmem:[%s187 + $0x90] sm:$0xff] %v5279
        %5338 = vst [vmem:[%s187 + $0x98] sm:$0xff] %v5308
        %5339 = vst [vmem:[%s187 + $0xa0] sm:$0xff] %v4760
        %5340 = vst [vmem:[%s187 + $0xa8] sm:$0xff] %v4789
        %5341 = vst [vmem:[%s187 + $0xb0] sm:$0xff] %v4818
        %5342 = vst [vmem:[%s187 + $0xb8] sm:$0xff] %v4847
        %5343 = vst [vmem:[%s187 + $0xc0] sm:$0xff] %v4876
        %5344 = vst [vmem:[%s187 + $0xc8] sm:$0xff] %v4905
        %5345 = vst [vmem:[%s187 + $0xd0] sm:$0xff] %v4934
        %5346 = vst [vmem:[%s187 + $0xd8] sm:$0xff] %v4963
        %5347 = vst [vmem:[%s187 + $0xe0] sm:$0xff] %v4992
        %5348 = vst [vmem:[%s187 + $0xe8] sm:$0xff] %v5021
        %5349 = vst [vmem:[%s187 + $0xf0] sm:$0xff] %v5050
        %5350 = vst [vmem:[%s187 + $0xf8] sm:$0xff] %v5079
        %5351 = vst [vmem:[%s187 + $0x100] sm:$0xff] %v5108
        %5352 = vst [vmem:[%s187 + $0x108] sm:$0xff] %v5137
        %5353 = vst [vmem:[%s187 + $0x110] sm:$0xff] %v5166
        %5354 = vst [vmem:[%s187 + $0x118] sm:$0xff] %v5195
        %5355 = vst [vmem:[%s187 + $0x120] sm:$0xff] %v5224
        %5356 = vst [vmem:[%s187 + $0x128] sm:$0xff] %v5253
        %5357 = vst [vmem:[%s187 + $0x130] sm:$0xff] %v5282
        %5358 = vst [vmem:[%s187 + $0x138] sm:$0xff] %v5311
        %5359 = vst [vmem:[%s187 + $0x140] sm:$0xff] %v4763
        %5360 = vst [vmem:[%s187 + $0x148] sm:$0xff] %v4792
        %5361 = vst [vmem:[%s187 + $0x150] sm:$0xff] %v4821
        %5362 = vst [vmem:[%s187 + $0x158] sm:$0xff] %v4850
        %5363 = vst [vmem:[%s187 + $0x160] sm:$0xff] %v4879
        %5364 = vst [vmem:[%s187 + $0x168] sm:$0xff] %v4908
        %5365 = vst [vmem:[%s187 + $0x170] sm:$0xff] %v4937
        %5366 = vst [vmem:[%s187 + $0x178] sm:$0xff] %v4966
        %5367 = vst [vmem:[%s187 + $0x180] sm:$0xff] %v4995
        %5368 = vst [vmem:[%s187 + $0x188] sm:$0xff] %v5024
        %5369 = vst [vmem:[%s187 + $0x190] sm:$0xff] %v5053
        %5370 = vst [vmem:[%s187 + $0x198] sm:$0xff] %v5082
        %5371 = vst [vmem:[%s187 + $0x1a0] sm:$0xff] %v5111
        %5372 = vst [vmem:[%s187 + $0x1a8] sm:$0xff] %v5140
        %5373 = vst [vmem:[%s187 + $0x1b0] sm:$0xff] %v5169
        %5374 = vst [vmem:[%s187 + $0x1b8] sm:$0xff] %v5198
        %5375 = vst [vmem:[%s187 + $0x1c0] sm:$0xff] %v5227
        %5376 = vst [vmem:[%s187 + $0x1c8] sm:$0xff] %v5256
        %5377 = vst [vmem:[%s187 + $0x1d0] sm:$0xff] %v5285
        %5378 = vst [vmem:[%s187 + $0x1d8] sm:$0xff] %v5314
        %5379 = vst [vmem:[%s187 + $0x1e0] sm:$0xff] %v4766
        %5380 = vst [vmem:[%s187 + $0x1e8] sm:$0xff] %v4795
        %5381 = vst [vmem:[%s187 + $0x1f0] sm:$0xff] %v4824
        %5382 = vst [vmem:[%s187 + $0x1f8] sm:$0xff] %v4853
        %5383 = vst [vmem:[%s187 + $0x200] sm:$0xff] %v4882
        %5384 = vst [vmem:[%s187 + $0x208] sm:$0xff] %v4911
        %5385 = vst [vmem:[%s187 + $0x210] sm:$0xff] %v4940
        %5386 = vst [vmem:[%s187 + $0x218] sm:$0xff] %v4969
        %5387 = vst [vmem:[%s187 + $0x220] sm:$0xff] %v4998
        %5388 = vst [vmem:[%s187 + $0x228] sm:$0xff] %v5027
        %5389 = vst [vmem:[%s187 + $0x230] sm:$0xff] %v5056
        %5390 = vst [vmem:[%s187 + $0x238] sm:$0xff] %v5085
        %5391 = vst [vmem:[%s187 + $0x240] sm:$0xff] %v5114
        %5392 = vst [vmem:[%s187 + $0x248] sm:$0xff] %v5143
        %5393 = vst [vmem:[%s187 + $0x250] sm:$0xff] %v5172
        %5394 = vst [vmem:[%s187 + $0x258] sm:$0xff] %v5201
        %5395 = vst [vmem:[%s187 + $0x260] sm:$0xff] %v5230
        %5396 = vst [vmem:[%s187 + $0x268] sm:$0xff] %v5259
        %5397 = vst [vmem:[%s187 + $0x270] sm:$0xff] %v5288
        %5398 = vst [vmem:[%s187 + $0x278] sm:$0xff] %v5317
        %s5399 = sand.u32 %s112, 1
        %s5400 = sand.u32 %s112, 1
        %s5401 = smul.addr %s5400, 640
        %s5402 = scalar_lea.vmem [#allocation3], %s5401
        // Predicated region
        $region37: #{encoder_forward.1} parent=35 // pred_check
          %p5403 = pneg %p122
        $region38: #{encoder_forward.1} parent=35 // pred_check_branch
          %5405 = sbr.rel (%p5403) target = $region40
        $region39: #{encoder_forward.1} parent=35 // pred_region
          %s5406 = smul.u32 20, %s15
          %s5407 = smul.addr %s5406, 8
          %s5408 = scalar_lea.vmem %s4, %s5407
          // Predicated region
          $region41: #{encoder_forward.1} parent=39 // pred_check
            _
          $region42: #{encoder_forward.1} parent=39 // pred_check_branch
            %5410 = sbr.rel (0) target = $region44
          $region43: #{encoder_forward.1} parent=39 // pred_region
            // Predicated region
            $region45: #{encoder_forward.1} parent=43 // pred_check
              _
            $region46: #{encoder_forward.1} parent=43 // pred_check_branch
              %5412 = sbr.rel (0) target = $region48
            $region47: #{encoder_forward.1} parent=43 // pred_region
              loop: start=0, step=1, limit=1
              $region49: #{encoder_forward.1} parent=47 // loop_pre_header
                _
              $region50: #{encoder_forward.1} parent=47 // loop_header
                %s5414 = sphi 0, %s5418
                %p5415 = scmp.ge.s32.totalorder %s5414, 1
                %s5419 = sphi %s5402, %s5402
                %s5420 = sphi %s5408, %s5408
              $region51: #{encoder_forward.1} parent=47 // loop_header_branch
                %5417 = sbr.rel (%p5415) target = $region55
              $region52: #{encoder_forward.1} parent=47 // loop_body
                %v5421 = vld [vmem:[%s5419] sm:$0xff]
                %5422 = vst [vmem:[%s5420] sm:$0xff] %v5421
                %v5423 = vld [vmem:[%s5419 + $0x8] sm:$0xff]
                %5424 = vst [vmem:[%s5420 + $0x8] sm:$0xff] %v5423
                %v5425 = vld [vmem:[%s5419 + $0x10] sm:$0xff]
                %5426 = vst [vmem:[%s5420 + $0x10] sm:$0xff] %v5425
                %v5427 = vld [vmem:[%s5419 + $0x18] sm:$0xff]
                %5428 = vst [vmem:[%s5420 + $0x18] sm:$0xff] %v5427
                %v5429 = vld [vmem:[%s5419 + $0x20] sm:$0xff]
                %5430 = vst [vmem:[%s5420 + $0x20] sm:$0xff] %v5429
                %v5431 = vld [vmem:[%s5419 + $0x28] sm:$0xff]
                %5432 = vst [vmem:[%s5420 + $0x28] sm:$0xff] %v5431
                %v5433 = vld [vmem:[%s5419 + $0x30] sm:$0xff]
                %5434 = vst [vmem:[%s5420 + $0x30] sm:$0xff] %v5433
                %v5435 = vld [vmem:[%s5419 + $0x38] sm:$0xff]
                %5436 = vst [vmem:[%s5420 + $0x38] sm:$0xff] %v5435
                %v5437 = vld [vmem:[%s5419 + $0x40] sm:$0xff]
                %5438 = vst [vmem:[%s5420 + $0x40] sm:$0xff] %v5437
                %v5439 = vld [vmem:[%s5419 + $0x48] sm:$0xff]
                %5440 = vst [vmem:[%s5420 + $0x48] sm:$0xff] %v5439
                %v5441 = vld [vmem:[%s5419 + $0x50] sm:$0xff]
                %5442 = vst [vmem:[%s5420 + $0x50] sm:$0xff] %v5441
                %v5443 = vld [vmem:[%s5419 + $0x58] sm:$0xff]
                %5444 = vst [vmem:[%s5420 + $0x58] sm:$0xff] %v5443
                %v5445 = vld [vmem:[%s5419 + $0x60] sm:$0xff]
                %5446 = vst [vmem:[%s5420 + $0x60] sm:$0xff] %v5445
                %v5447 = vld [vmem:[%s5419 + $0x68] sm:$0xff]
                %5448 = vst [vmem:[%s5420 + $0x68] sm:$0xff] %v5447
                %v5449 = vld [vmem:[%s5419 + $0x70] sm:$0xff]
                %5450 = vst [vmem:[%s5420 + $0x70] sm:$0xff] %v5449
                %v5451 = vld [vmem:[%s5419 + $0x78] sm:$0xff]
                %5452 = vst [vmem:[%s5420 + $0x78] sm:$0xff] %v5451
                %v5453 = vld [vmem:[%s5419 + $0x80] sm:$0xff]
                %5454 = vst [vmem:[%s5420 + $0x80] sm:$0xff] %v5453
                %v5455 = vld [vmem:[%s5419 + $0x88] sm:$0xff]
                %5456 = vst [vmem:[%s5420 + $0x88] sm:$0xff] %v5455
                %v5457 = vld [vmem:[%s5419 + $0x90] sm:$0xff]
                %5458 = vst [vmem:[%s5420 + $0x90] sm:$0xff] %v5457
                %v5459 = vld [vmem:[%s5419 + $0x98] sm:$0xff]
                %5460 = vst [vmem:[%s5420 + $0x98] sm:$0xff] %v5459
                %v5461 = vld [vmem:[%s5419 + $0xa0] sm:$0xff]
                %5462 = vst [vmem:[%s5420 + $0x140] sm:$0xff] %v5461
                %v5463 = vld [vmem:[%s5419 + $0xa8] sm:$0xff]
                %5464 = vst [vmem:[%s5420 + $0x148] sm:$0xff] %v5463
                %v5465 = vld [vmem:[%s5419 + $0xb0] sm:$0xff]
                %5466 = vst [vmem:[%s5420 + $0x150] sm:$0xff] %v5465
                %v5467 = vld [vmem:[%s5419 + $0xb8] sm:$0xff]
                %5468 = vst [vmem:[%s5420 + $0x158] sm:$0xff] %v5467
                %v5469 = vld [vmem:[%s5419 + $0xc0] sm:$0xff]
                %5470 = vst [vmem:[%s5420 + $0x160] sm:$0xff] %v5469
                %v5471 = vld [vmem:[%s5419 + $0xc8] sm:$0xff]
                %5472 = vst [vmem:[%s5420 + $0x168] sm:$0xff] %v5471
                %v5473 = vld [vmem:[%s5419 + $0xd0] sm:$0xff]
                %5474 = vst [vmem:[%s5420 + $0x170] sm:$0xff] %v5473
                %v5475 = vld [vmem:[%s5419 + $0xd8] sm:$0xff]
                %5476 = vst [vmem:[%s5420 + $0x178] sm:$0xff] %v5475
                %v5477 = vld [vmem:[%s5419 + $0xe0] sm:$0xff]
                %5478 = vst [vmem:[%s5420 + $0x180] sm:$0xff] %v5477
                %v5479 = vld [vmem:[%s5419 + $0xe8] sm:$0xff]
                %5480 = vst [vmem:[%s5420 + $0x188] sm:$0xff] %v5479
                %v5481 = vld [vmem:[%s5419 + $0xf0] sm:$0xff]
                %5482 = vst [vmem:[%s5420 + $0x190] sm:$0xff] %v5481
                %v5483 = vld [vmem:[%s5419 + $0xf8] sm:$0xff]
                %5484 = vst [vmem:[%s5420 + $0x198] sm:$0xff] %v5483
                %v5485 = vld [vmem:[%s5419 + $0x100] sm:$0xff]
                %5486 = vst [vmem:[%s5420 + $0x1a0] sm:$0xff] %v5485
                %v5487 = vld [vmem:[%s5419 + $0x108] sm:$0xff]
                %5488 = vst [vmem:[%s5420 + $0x1a8] sm:$0xff] %v5487
                %v5489 = vld [vmem:[%s5419 + $0x110] sm:$0xff]
                %5490 = vst [vmem:[%s5420 + $0x1b0] sm:$0xff] %v5489
                %v5491 = vld [vmem:[%s5419 + $0x118] sm:$0xff]
                %5492 = vst [vmem:[%s5420 + $0x1b8] sm:$0xff] %v5491
                %v5493 = vld [vmem:[%s5419 + $0x120] sm:$0xff]
                %5494 = vst [vmem:[%s5420 + $0x1c0] sm:$0xff] %v5493
                %v5495 = vld [vmem:[%s5419 + $0x128] sm:$0xff]
                %5496 = vst [vmem:[%s5420 + $0x1c8] sm:$0xff] %v5495
                %v5497 = vld [vmem:[%s5419 + $0x130] sm:$0xff]
                %5498 = vst [vmem:[%s5420 + $0x1d0] sm:$0xff] %v5497
                %v5499 = vld [vmem:[%s5419 + $0x138] sm:$0xff]
                %5500 = vst [vmem:[%s5420 + $0x1d8] sm:$0xff] %v5499
                %v5501 = vld [vmem:[%s5419 + $0x140] sm:$0xff]
                %5502 = vst [vmem:[%s5420 + $0x280] sm:$0xff] %v5501
                %v5503 = vld [vmem:[%s5419 + $0x148] sm:$0xff]
                %5504 = vst [vmem:[%s5420 + $0x288] sm:$0xff] %v5503
                %v5505 = vld [vmem:[%s5419 + $0x150] sm:$0xff]
                %5506 = vst [vmem:[%s5420 + $0x290] sm:$0xff] %v5505
                %v5507 = vld [vmem:[%s5419 + $0x158] sm:$0xff]
                %5508 = vst [vmem:[%s5420 + $0x298] sm:$0xff] %v5507
                %v5509 = vld [vmem:[%s5419 + $0x160] sm:$0xff]
                %5510 = vst [vmem:[%s5420 + $0x2a0] sm:$0xff] %v5509
                %v5511 = vld [vmem:[%s5419 + $0x168] sm:$0xff]
                %5512 = vst [vmem:[%s5420 + $0x2a8] sm:$0xff] %v5511
                %v5513 = vld [vmem:[%s5419 + $0x170] sm:$0xff]
                %5514 = vst [vmem:[%s5420 + $0x2b0] sm:$0xff] %v5513
                %v5515 = vld [vmem:[%s5419 + $0x178] sm:$0xff]
                %5516 = vst [vmem:[%s5420 + $0x2b8] sm:$0xff] %v5515
                %v5517 = vld [vmem:[%s5419 + $0x180] sm:$0xff]
                %5518 = vst [vmem:[%s5420 + $0x2c0] sm:$0xff] %v5517
                %v5519 = vld [vmem:[%s5419 + $0x188] sm:$0xff]
                %5520 = vst [vmem:[%s5420 + $0x2c8] sm:$0xff] %v5519
                %v5521 = vld [vmem:[%s5419 + $0x190] sm:$0xff]
                %5522 = vst [vmem:[%s5420 + $0x2d0] sm:$0xff] %v5521
                %v5523 = vld [vmem:[%s5419 + $0x198] sm:$0xff]
                %5524 = vst [vmem:[%s5420 + $0x2d8] sm:$0xff] %v5523
                %v5525 = vld [vmem:[%s5419 + $0x1a0] sm:$0xff]
                %5526 = vst [vmem:[%s5420 + $0x2e0] sm:$0xff] %v5525
                %v5527 = vld [vmem:[%s5419 + $0x1a8] sm:$0xff]
                %5528 = vst [vmem:[%s5420 + $0x2e8] sm:$0xff] %v5527
                %v5529 = vld [vmem:[%s5419 + $0x1b0] sm:$0xff]
                %5530 = vst [vmem:[%s5420 + $0x2f0] sm:$0xff] %v5529
                %v5531 = vld [vmem:[%s5419 + $0x1b8] sm:$0xff]
                %5532 = vst [vmem:[%s5420 + $0x2f8] sm:$0xff] %v5531
                %v5533 = vld [vmem:[%s5419 + $0x1c0] sm:$0xff]
                %5534 = vst [vmem:[%s5420 + $0x300] sm:$0xff] %v5533
                %v5535 = vld [vmem:[%s5419 + $0x1c8] sm:$0xff]
                %5536 = vst [vmem:[%s5420 + $0x308] sm:$0xff] %v5535
                %v5537 = vld [vmem:[%s5419 + $0x1d0] sm:$0xff]
                %5538 = vst [vmem:[%s5420 + $0x310] sm:$0xff] %v5537
                %v5539 = vld [vmem:[%s5419 + $0x1d8] sm:$0xff]
                %5540 = vst [vmem:[%s5420 + $0x318] sm:$0xff] %v5539
                %v5541 = vld [vmem:[%s5419 + $0x1e0] sm:$0xff]
                %5542 = vst [vmem:[%s5420 + $0x3c0] sm:$0xff] %v5541
                %v5543 = vld [vmem:[%s5419 + $0x1e8] sm:$0xff]
                %5544 = vst [vmem:[%s5420 + $0x3c8] sm:$0xff] %v5543
                %v5545 = vld [vmem:[%s5419 + $0x1f0] sm:$0xff]
                %5546 = vst [vmem:[%s5420 + $0x3d0] sm:$0xff] %v5545
                %v5547 = vld [vmem:[%s5419 + $0x1f8] sm:$0xff]
                %5548 = vst [vmem:[%s5420 + $0x3d8] sm:$0xff] %v5547
                %v5549 = vld [vmem:[%s5419 + $0x200] sm:$0xff]
                %5550 = vst [vmem:[%s5420 + $0x3e0] sm:$0xff] %v5549
                %v5551 = vld [vmem:[%s5419 + $0x208] sm:$0xff]
                %5552 = vst [vmem:[%s5420 + $0x3e8] sm:$0xff] %v5551
                %v5553 = vld [vmem:[%s5419 + $0x210] sm:$0xff]
                %5554 = vst [vmem:[%s5420 + $0x3f0] sm:$0xff] %v5553
                %v5555 = vld [vmem:[%s5419 + $0x218] sm:$0xff]
                %5556 = vst [vmem:[%s5420 + $0x3f8] sm:$0xff] %v5555
                %v5557 = vld [vmem:[%s5419 + $0x220] sm:$0xff]
                %5558 = vst [vmem:[%s5420 + $0x400] sm:$0xff] %v5557
                %v5559 = vld [vmem:[%s5419 + $0x228] sm:$0xff]
                %5560 = vst [vmem:[%s5420 + $0x408] sm:$0xff] %v5559
                %v5561 = vld [vmem:[%s5419 + $0x230] sm:$0xff]
                %5562 = vst [vmem:[%s5420 + $0x410] sm:$0xff] %v5561
                %v5563 = vld [vmem:[%s5419 + $0x238] sm:$0xff]
                %5564 = vst [vmem:[%s5420 + $0x418] sm:$0xff] %v5563
                %v5565 = vld [vmem:[%s5419 + $0x240] sm:$0xff]
                %5566 = vst [vmem:[%s5420 + $0x420] sm:$0xff] %v5565
                %v5567 = vld [vmem:[%s5419 + $0x248] sm:$0xff]
                %5568 = vst [vmem:[%s5420 + $0x428] sm:$0xff] %v5567
                %v5569 = vld [vmem:[%s5419 + $0x250] sm:$0xff]
                %5570 = vst [vmem:[%s5420 + $0x430] sm:$0xff] %v5569
                %v5571 = vld [vmem:[%s5419 + $0x258] sm:$0xff]
                %5572 = vst [vmem:[%s5420 + $0x438] sm:$0xff] %v5571
                %v5573 = vld [vmem:[%s5419 + $0x260] sm:$0xff]
                %5574 = vst [vmem:[%s5420 + $0x440] sm:$0xff] %v5573
                %v5575 = vld [vmem:[%s5419 + $0x268] sm:$0xff]
                %5576 = vst [vmem:[%s5420 + $0x448] sm:$0xff] %v5575
                %v5577 = vld [vmem:[%s5419 + $0x270] sm:$0xff]
                %5578 = vst [vmem:[%s5420 + $0x450] sm:$0xff] %v5577
                %v5579 = vld [vmem:[%s5419 + $0x278] sm:$0xff]
                %5580 = vst [vmem:[%s5420 + $0x458] sm:$0xff] %v5579
              $region53: #{encoder_forward.1} parent=47 // loop_footer
                %s5418 = sadd.s32 1, %s5414
              $region54: #{encoder_forward.1} parent=47 // loop_footer_branch
                %5413 = sbr.rel target = $region50
              $region55: #{encoder_forward.1} parent=47 // loop_exit
                _
            $region48: #{encoder_forward.1} parent=43 // pred_fallthru
              _
            // Predicated region
            $region56: #{encoder_forward.1} parent=43 // pred_check
              _
            $region57: #{encoder_forward.1} parent=43 // pred_check_branch
              %5582 = sbr.rel target = $region59
            $region58: #{encoder_forward.1} parent=43 // pred_region
              _
            $region59: #{encoder_forward.1} parent=43 // pred_fallthru
              _
          $region44: #{encoder_forward.1} parent=39 // pred_fallthru
            _
          %5583 = vnop
        $region40: #{encoder_forward.1} parent=35 // pred_fallthru
          _
      $region36: #{encoder_forward.1} parent=5 // pred_fallthru
        _
      %p5584 = scmp.le.s32.totalorder 2, %s10
      // Predicated region
      $region60: #{encoder_forward.1} parent=5 // pred_check
        %p5585 = pneg %p5584
      $region61: #{encoder_forward.1} parent=5 // pred_check_branch
        %5587 = sbr.rel (%p5585) target = $region63
      $region62: #{encoder_forward.1} parent=5 // pred_region
        %s5588 = ssub.s32 %s10, 2
        // Predicated region
        $region64: #{encoder_forward.1} parent=62 // pred_check
          %p5589 = pneg %p128
        $region65: #{encoder_forward.1} parent=62 // pred_check_branch
          %5591 = sbr.rel (%p5589) target = $region67
        $region66: #{encoder_forward.1} parent=62 // pred_region
          %s5592 = sand.u32 %s113, 1
          %s5593 = sand.u32 %s113, 1
          %s5594 = smul.addr %s5593, 640
          %s5595 = scalar_lea.vmem [#allocation3], %s5594
        $region67: #{encoder_forward.1} parent=62 // pred_fallthru
          _
      $region63: #{encoder_forward.1} parent=5 // pred_fallthru
        _
    $region6: #{encoder_forward.1} parent=1 // loop_footer
      %s14 = sadd.s32 1, %s10
    $region7: #{encoder_forward.1} parent=1 // loop_footer_branch
      %9 = sbr.rel target = $region3
    $region8: #{encoder_forward.1} parent=1 // loop_exit
      _

</llo_original>
